<compile_context>
chip_gen: v7x
topology: tpu7x:2x2x1
jax: 0.10.0
libtpu: 0.0.40
codegen_flags: <defaults>
</compile_context>

<pallas_src>
import functools

import jax
import jax.numpy as jnp
from jax.experimental import pallas as pl
from jax.experimental.pallas import tpu as pltpu

_EPS = 1e-5
_WPAD = 16   # left/right zero-pad (columns) of the bf16 conv1 scratch (aligned stores)


# ---------------------------------------------------------------------------
# Fused Bottleneck kernel (one grid step == one image)
# ---------------------------------------------------------------------------
def _bottleneck_kernel(*refs, stride, hs, ws, final_relu, has_conv_sc):
    if has_conv_sc:
        (x_ref, w1_ref, s1_ref, b1_ref, w2_ref, s2_ref, b2_ref,
         w3_ref, b3_ref, o_ref, y1_ref, slab_ref, z_ref) = refs
    else:
        (x_ref, w1_ref, s1_ref, b1_ref, w2_ref, s2_ref, b2_ref,
         w3_ref, b3_ref, o_ref, y1_ref, slab_ref) = refs
        z_ref = None

    s = stride
    mo = hs * ws                        # output pixels of this image (Ho*Wo)
    planes = w1_ref.shape[1]
    cin = x_ref.shape[4]
    wp = _WPAD
    padded_w = y1_ref.shape[3]          # ws + 2*_WPAD

    # ---- zero ONLY the halo cells conv2 reads (rows 0 / hs+1, cols wp-1 / wp+ws).
    #      The interior is fully rewritten below; the halo is never written. ----
    zrow = jnp.zeros((1, padded_w, planes), jnp.bfloat16)
    zcol = jnp.zeros((hs + 2, 1, planes), jnp.bfloat16)
    for ph in range(s):
        for pw in range(s):
            y1_ref[ph, pw, 0:1, :, :] = zrow
            y1_ref[ph, pw, hs + 1:hs + 2, :, :] = zrow
            y1_ref[ph, pw, :, wp - 1:wp, :] = zcol
            y1_ref[ph, pw, :, wp + ws:wp + ws + 1, :] = zcol

    # ---- conv1 (1x1) + bn1 + relu: ONE matmul over all stride phases ----------
    xi = x_ref[...].reshape(s * s * mo, cin)                        # bf16
    a1 = jnp.dot(xi, w1_ref[...], preferred_element_type=jnp.float32)
    y1 = jnp.maximum(a1 * s1_ref[...] + b1_ref[...], 0.0).astype(jnp.bfloat16)
    y1 = y1.reshape(s, s, hs, ws, planes)
    for ph in range(s):
        for pw in range(s):
            y1_ref[ph, pw, 1:hs + 1, wp:wp + ws, :] = y1[ph, pw]

    # ---- conv2 (3x3, stride, pad=1): bf16 im2col slab + ONE matmul, K=9*planes -
    for kh in range(3):
        p_h = (kh - 1) % s
        o_h = (kh - 1 - p_h) // s
        for kw in range(3):
            p_w = (kw - 1) % s
            o_w = (kw - 1 - p_w) // s
            t = kh * 3 + kw
            win = y1_ref[p_h, p_w,
                         1 + o_h:1 + o_h + hs,
                         wp + o_w:wp + o_w + ws, :]
            slab_ref[:, t * planes:(t + 1) * planes] = win.reshape(mo, planes)
    a2 = jnp.dot(slab_ref[...], w2_ref[...], preferred_element_type=jnp.float32)
    y2 = jnp.maximum(a2 * s2_ref[...] + b2_ref[...], 0.0).astype(jnp.bfloat16)

    # ---- conv3 (1x1) + bn3 (+ fused shortcut conv) + residual + final relu -----
    x00 = x_ref[0, 0, 0]            # stride-s 1x1 shortcut / identity == phase (0,0)
    if has_conv_sc:
        # fused [conv3 | shortcut]: K = planes + Cin; BN scales already folded
        # into the bf16 weights, biases pre-summed.
        z_ref[:, :planes] = y2
        z_ref[:, planes:planes + cin] = x00
        out = jnp.dot(z_ref[...], w3_ref[...], preferred_element_type=jnp.float32)
        out = out + b3_ref[...]
    else:
        out = jnp.dot(y2, w3_ref[...], preferred_element_type=jnp.float32)
        out = out + b3_ref[...] + x00.astype(jnp.float32)
    if final_relu:
        out = jnp.maximum(out, 0.0)
    o_ref[0] = out.astype(o_ref.dtype)


# ---------------------------------------------------------------------------
# Wrapper: phase decomposition + pallas_call
# ---------------------------------------------------------------------------
def _vmem_limit_bytes():
    # ~48 MiB on v7x (64 MiB VMEM), ~96 MiB on v5e/v6e (128 MiB VMEM).
    try:
        cap = getattr(pltpu.get_tpu_info(), "vmem_capacity_bytes", None)
        if cap:
            return min(int(cap) * 3 // 4, 96 * 1024 * 1024)
    except Exception:
        pass
    return 32 * 1024 * 1024


def bottleneck_forward(x_nchw, params, stride, final_relu=True):
    x = jnp.transpose(x_nchw, (0, 2, 3, 1)).astype(jnp.bfloat16)   # NCHW -> NHWC bf16
    n, h, w, cin = x.shape
    s = stride
    assert h % s == 0 and w % s == 0, "spatial dims must be divisible by stride"
    hs, ws = h // s, w // s
    mo = hs * ws

    # space-to-batch by stride phase: xp[ph,pw,n,a*ws+b,c] = x[n, a*s+ph, b*s+pw, c]
    xp = x.reshape(n, hs, s, ws, s, cin).transpose(2, 4, 0, 1, 3, 5)
    xp = xp.reshape(s, s, n, mo, cin)

    w1, (s1, b1) = params["w1"], params["bn1"]
    w2, (s2, b2) = params["w2"], params["bn2"]
    w3, b3 = params["w3"], params["b3"]
    planes = w1.shape[1]
    cout = w3.shape[1]
    has_conv_sc = params["has_conv_sc"]

    def resident(arr):               # whole array, same block every grid step
        nd = arr.ndim
        return pl.BlockSpec(arr.shape, lambda b, nd=nd: (0,) * nd)

    in_specs = [pl.BlockSpec((s, s, 1, mo, cin), lambda b: (0, 0, b, 0, 0)),
                resident(w1), resident(s1), resident(b1),
                resident(w2), resident(s2), resident(b2),
                resident(w3), resident(b3)]
    args = [xp, w1, s1, b1, w2, s2, b2, w3, b3]

    scratch = [pltpu.VMEM((s, s, hs + 2, ws + 2 * _WPAD, planes), jnp.bfloat16),
               pltpu.VMEM((mo, 9 * planes), jnp.bfloat16)]
    if has_conv_sc:
        scratch.append(pltpu.VMEM((mo, planes + cin), jnp.bfloat16))

    kernel = functools.partial(_bottleneck_kernel, stride=s, hs=hs, ws=ws,
                               final_relu=final_relu, has_conv_sc=has_conv_sc)

    out = pl.pallas_call(
        kernel,
        out_shape=jax.ShapeDtypeStruct((n, mo, cout), jnp.bfloat16),
        grid_spec=pltpu.PrefetchScalarGridSpec(
            num_scalar_prefetch=0,
            grid=(n,),
            in_specs=in_specs,
            out_specs=pl.BlockSpec((1, mo, cout), lambda b: (b, 0, 0)),
            scratch_shapes=scratch,
        ),
        compiler_params=pltpu.CompilerParams(
            dimension_semantics=("parallel",),
            vmem_limit_bytes=_vmem_limit_bytes()),
    )(*args)

    out = out.reshape(n, hs, ws, cout).astype(jnp.float32)
    return jnp.transpose(out, (0, 3, 1, 2))                         # NHWC -> NCHW


# ---------------------------------------------------------------------------
# Parameters: BN folding + matmul-friendly weight layouts
# ---------------------------------------------------------------------------
def fold_bn(gamma, beta, mean, var, eps=_EPS):
    scale = gamma / jnp.sqrt(var + eps)
    bias = beta - mean * scale
    return scale[None, :].astype(jnp.float32), bias[None, :].astype(jnp.float32)


def _conv1x1_to_matmul(w):        # (Cout, Cin, 1, 1) -> (Cin, Cout) f32
    return jnp.transpose(w[:, :, 0, 0], (1, 0))


def _conv3x3_to_kstack(w):        # (Cout, Cin, 3, 3) -> (9*Cin, Cout) f32
    cout, cin = w.shape[0], w.shape[1]
    return jnp.transpose(w, (2, 3, 1, 0)).reshape(9 * cin, cout)


def prepare_params(raw):
    """Fold BN and lay out weights for the fused kernel."""
    s1, b1 = fold_bn(*raw["bn1"])
    s2, b2 = fold_bn(*raw["bn2"])
    s3, b3 = fold_bn(*raw["bn3"])
    has_conv_sc = "w_sc" in raw

    w3m = _conv1x1_to_matmul(raw["w3"]) * s3          # fold BN scale in f32
    if has_conv_sc:
        ssc, bsc = fold_bn(*raw["bn_sc"])
        wscm = _conv1x1_to_matmul(raw["w_sc"]) * ssc
        w3k = jnp.concatenate([w3m, wscm], axis=0).astype(jnp.bfloat16)
        b3k = b3 + bsc
    else:
        w3k = w3m.astype(jnp.bfloat16)
        b3k = b3

    return {
        "w1": _conv1x1_to_matmul(raw["w1"]).astype(jnp.bfloat16), "bn1": (s1, b1),
        "w2": _conv3x3_to_kstack(raw["w2"]).astype(jnp.bfloat16), "bn2": (s2, b2),
        "w3": w3k, "b3": b3k, "has_conv_sc": has_conv_sc,
    }


def init_raw_params(key, in_planes, planes, expansion, stride):
    exp_planes = expansion * planes
    ks = jax.random.split(key, 8)

    def conv_w(k, cout, cin, kh, kw):
        fan_in = cin * kh * kw
        w = jax.random.normal(k, (cout, cin, kh, kw), jnp.float32) / jnp.sqrt(fan_in)
        # round to bf16 so the f32 reference and the bf16 kernel share weights
        return w.astype(jnp.bfloat16).astype(jnp.float32)

    def bn_p(k, c):
        k1, k2, k3, k4 = jax.random.split(k, 4)
        gamma = 1.0 + 0.1 * jax.random.normal(k1, (c,), jnp.float32)
        beta = 0.1 * jax.random.normal(k2, (c,), jnp.float32)
        mean = 0.05 * jax.random.normal(k3, (c,), jnp.float32)
        var = 1.0 + 0.1 * jnp.abs(jax.random.normal(k4, (c,), jnp.float32))
        return (gamma, beta, mean, var)

    raw = {
        "w1": conv_w(ks[0], planes, in_planes, 1, 1),  "bn1": bn_p(ks[1], planes),
        "w2": conv_w(ks[2], planes, planes, 3, 3),     "bn2": bn_p(ks[3], planes),
        "w3": conv_w(ks[4], exp_planes, planes, 1, 1), "bn3": bn_p(ks[5], exp_planes),
    }
    if stride != 1 or in_planes != exp_planes:
        raw["w_sc"] = conv_w(ks[6], exp_planes, in_planes, 1, 1)
        raw["bn_sc"] = bn_p(ks[7], exp_planes)
    return raw


# ---------------------------------------------------------------------------
# Pure-JAX f32 reference (for verification)
# ---------------------------------------------------------------------------
def reference_forward(x, raw, stride, final_relu=True, eps=_EPS):
    def conv(x, w, s=1, p=0):
        return jax.lax.conv_general_dilated(
            x, w, (s, s), [(p, p), (p, p)],
            dimension_numbers=("NCHW", "OIHW", "NCHW"))

    def bn(x, prm):
        g, b, m, v = prm
        g, b, m, v = (t[None, :, None, None] for t in (g, b, m, v))
        return (x - m) / jnp.sqrt(v + eps) * g + b

    out = jax.nn.relu(bn(conv(x, raw["w1"]), raw["bn1"]))
    out = jax.nn.relu(bn(conv(out, raw["w2"], stride, 1), raw["bn2"]))
    out = bn(conv(out, raw["w3"]), raw["bn3"])
    sc = bn(conv(x, raw["w_sc"], stride), raw["bn_sc"]) if "w_sc" in raw else x
    out = out + sc
    if final_relu:
        out = jax.nn.relu(out)
    return out


# ---------------------------------------------------------------------------
if __name__ == "__main__":
    key = jax.random.PRNGKey(0)
    # (in_planes, planes, expansion, stride, final_relu)
    configs = [
        (64, 32, 4, 1, True),    # conv shortcut (channel change), stride 1
        (64, 32, 4, 2, True),    # conv shortcut, stride 2 (downsampling block)
        (128, 32, 4, 1, False),  # identity shortcut (in_planes == expansion*planes)
    ]
    batch, H, W = 2, 16, 16

    for idx, (in_planes, planes, expansion, stride, final_relu) in enumerate(configs):
        kx, kp = jax.random.split(jax.random.fold_in(key, idx))
        x = jax.random.normal(kx, (batch, in_planes, H, W), jnp.float32)
        x = x.astype(jnp.bfloat16).astype(jnp.float32)   # shared bf16-rounded input

        raw = init_raw_params(kp, in_planes, planes, expansion, stride)
        params = prepare_params(raw)

        out = jax.block_until_ready(
            bottleneck_forward(x, params, stride, final_relu=final_relu))
        ref = jax.block_until_ready(
            reference_forward(x, raw, stride, final_relu=final_relu))

        ho, wo = H // stride, W // stride
        assert out.shape == (batch, expansion * planes, ho, wo), out.shape
        max_err = float(jnp.max(jnp.abs(out - ref)))
        assert jnp.allclose(out, ref, atol=4e-2, rtol=4e-2), (idx, max_err)

    print("KERNEL_OK")
</pallas_src>

<mosaic_0001>
module attributes {stable_mosaic.version = 11 : i64} {
  func.func @_bottleneck_kernel(%arg0: i32, %arg1: memref<1x1x1x256x64xbf16, #tpu.memory_space<vmem>>, %arg2: memref<64x32xbf16, #tpu.memory_space<vmem>>, %arg3: memref<1x32xf32, #tpu.memory_space<vmem>>, %arg4: memref<1x32xf32, #tpu.memory_space<vmem>>, %arg5: memref<288x32xbf16, #tpu.memory_space<vmem>>, %arg6: memref<1x32xf32, #tpu.memory_space<vmem>>, %arg7: memref<1x32xf32, #tpu.memory_space<vmem>>, %arg8: memref<96x128xbf16, #tpu.memory_space<vmem>>, %arg9: memref<1x128xf32, #tpu.memory_space<vmem>>, %arg10: memref<1x256x128xbf16, #tpu.memory_space<vmem>>, %arg11: memref<1x1x18x48x32xbf16, #tpu.memory_space<vmem>>, %arg12: memref<256x288xbf16, #tpu.memory_space<vmem>>, %arg13: memref<256x96xbf16, #tpu.memory_space<vmem>>) attributes {dimension_semantics = [#tpu.dimension_semantics<parallel>], iteration_bounds = array<i64: 2>, scalar_prefetch = 0 : i64, scratch_operands = 3 : i64, tpu.core_type = #tpu.core_type<tc>, window_params = [{transform_indices = @transform_0, window_bounds = array<i64: 1, 1, 1, 256, 64>}, {pipeline_mode = #tpu.pipeline_mode<synchronous>, transform_indices = @transform_1, window_bounds = array<i64: 64, 32>}, {pipeline_mode = #tpu.pipeline_mode<synchronous>, transform_indices = @transform_2, window_bounds = array<i64: 1, 32>}, {pipeline_mode = #tpu.pipeline_mode<synchronous>, transform_indices = @transform_3, window_bounds = array<i64: 1, 32>}, {pipeline_mode = #tpu.pipeline_mode<synchronous>, transform_indices = @transform_4, window_bounds = array<i64: 288, 32>}, {pipeline_mode = #tpu.pipeline_mode<synchronous>, transform_indices = @transform_5, window_bounds = array<i64: 1, 32>}, {pipeline_mode = #tpu.pipeline_mode<synchronous>, transform_indices = @transform_6, window_bounds = array<i64: 1, 32>}, {pipeline_mode = #tpu.pipeline_mode<synchronous>, transform_indices = @transform_7, window_bounds = array<i64: 96, 128>}, {pipeline_mode = #tpu.pipeline_mode<synchronous>, transform_indices = @transform_8, window_bounds = array<i64: 1, 128>}, {transform_indices = @transform_9, window_bounds = array<i64: 1, 256, 128>}]} {
    %cst = arith.constant 0.000000e+00 : bf16
    %0 = vector.broadcast %cst : bf16 to vector<1x48x32xbf16>
    %cst_0 = arith.constant 0.000000e+00 : bf16
    %1 = vector.broadcast %cst_0 : bf16 to vector<18x1x32xbf16>
    %c0 = arith.constant 0 : index
    %c0_1 = arith.constant 0 : index
    %c0_2 = arith.constant 0 : index
    %c0_3 = arith.constant 0 : index
    %c0_4 = arith.constant 0 : index
    %2 = vector.load %arg11[%c0, %c0_1, %c0_2, %c0_3, %c0_4] : memref<1x1x18x48x32xbf16, #tpu.memory_space<vmem>>, vector<1x1x1x48x32xbf16>
    %3 = vector.shape_cast %2 : vector<1x1x1x48x32xbf16> to vector<1x48x32xbf16>
    %4 = vector.shape_cast %0 : vector<1x48x32xbf16> to vector<1x1x1x48x32xbf16>
    tpu.vector_store %arg11[%c0, %c0_1, %c0_2, %c0_3, %c0_4], %4 {strides = array<i32>} : memref<1x1x18x48x32xbf16, #tpu.memory_space<vmem>>, vector<1x1x1x48x32xbf16>,
    %c0_5 = arith.constant 0 : index
    %c0_6 = arith.constant 0 : index
    %c17 = arith.constant 17 : index
    %c0_7 = arith.constant 0 : index
    %c0_8 = arith.constant 0 : index
    %5 = vector.load %arg11[%c0_5, %c0_6, %c17, %c0_7, %c0_8] : memref<1x1x18x48x32xbf16, #tpu.memory_space<vmem>>, vector<1x1x1x48x32xbf16>
    %6 = vector.shape_cast %5 : vector<1x1x1x48x32xbf16> to vector<1x48x32xbf16>
    %7 = vector.shape_cast %0 : vector<1x48x32xbf16> to vector<1x1x1x48x32xbf16>
    tpu.vector_store %arg11[%c0_5, %c0_6, %c17, %c0_7, %c0_8], %7 {strides = array<i32>} : memref<1x1x18x48x32xbf16, #tpu.memory_space<vmem>>, vector<1x1x1x48x32xbf16>,
    %c0_9 = arith.constant 0 : index
    %c0_10 = arith.constant 0 : index
    %c0_11 = arith.constant 0 : index
    %c15 = arith.constant 15 : index
    %c0_12 = arith.constant 0 : index
    %8 = vector.load %arg11[%c0_9, %c0_10, %c0_11, %c15, %c0_12] : memref<1x1x18x48x32xbf16, #tpu.memory_space<vmem>>, vector<1x1x18x1x32xbf16>
    %9 = vector.shape_cast %8 : vector<1x1x18x1x32xbf16> to vector<18x1x32xbf16>
    %10 = vector.shape_cast %1 : vector<18x1x32xbf16> to vector<1x1x18x1x32xbf16>
    tpu.vector_store %arg11[%c0_9, %c0_10, %c0_11, %c15, %c0_12], %10 {strides = array<i32>} : memref<1x1x18x48x32xbf16, #tpu.memory_space<vmem>>, vector<1x1x18x1x32xbf16>,
    %c0_13 = arith.constant 0 : index
    %c0_14 = arith.constant 0 : index
    %c0_15 = arith.constant 0 : index
    %c32 = arith.constant 32 : index
    %c0_16 = arith.constant 0 : index
    %11 = vector.load %arg11[%c0_13, %c0_14, %c0_15, %c32, %c0_16] : memref<1x1x18x48x32xbf16, #tpu.memory_space<vmem>>, vector<1x1x18x1x32xbf16>
    %12 = vector.shape_cast %11 : vector<1x1x18x1x32xbf16> to vector<18x1x32xbf16>
    %13 = vector.shape_cast %1 : vector<18x1x32xbf16> to vector<1x1x18x1x32xbf16>
    tpu.vector_store %arg11[%c0_13, %c0_14, %c0_15, %c32, %c0_16], %13 {strides = array<i32>} : memref<1x1x18x48x32xbf16, #tpu.memory_space<vmem>>, vector<1x1x18x1x32xbf16>,
    %c0_17 = arith.constant 0 : index
    %c0_18 = arith.constant 0 : index
    %c0_19 = arith.constant 0 : index
    %c0_20 = arith.constant 0 : index
    %c0_21 = arith.constant 0 : index
    %14 = vector.load %arg1[%c0_17, %c0_18, %c0_19, %c0_20, %c0_21] : memref<1x1x1x256x64xbf16, #tpu.memory_space<vmem>>, vector<1x1x1x256x64xbf16>
    %15 = vector.shape_cast %14 : vector<1x1x1x256x64xbf16> to vector<256x64xbf16>
    %c0_22 = arith.constant 0 : index
    %c0_23 = arith.constant 0 : index
    %16 = vector.load %arg2[%c0_22, %c0_23] : memref<64x32xbf16, #tpu.memory_space<vmem>>, vector<64x32xbf16>
    %cst_24 = arith.constant dense<0.000000e+00> : vector<256x32xf32>
    %17 = tpu.matmul %15, %16, %cst_24 {dimension_numbers = #tpu.dot_dimension_numbers<[1], [0], [0], [1], [0, 0, 1, 1], [], []>} : vector<256x64xbf16>, vector<64x32xbf16>, vector<256x32xf32> -> vector<256x32xf32>
    %c0_25 = arith.constant 0 : index
    %c0_26 = arith.constant 0 : index
    %18 = vector.load %arg3[%c0_25, %c0_26] : memref<1x32xf32, #tpu.memory_space<vmem>>, vector<1x32xf32>
    %19 = vector.broadcast %18 : vector<1x32xf32> to vector<256x32xf32>
    %20 = arith.mulf %17, %19 : vector<256x32xf32>
    %c0_27 = arith.constant 0 : index
    %c0_28 = arith.constant 0 : index
    %21 = vector.load %arg4[%c0_27, %c0_28] : memref<1x32xf32, #tpu.memory_space<vmem>>, vector<1x32xf32>
    %22 = vector.broadcast %21 : vector<1x32xf32> to vector<256x32xf32>
    %23 = arith.addf %20, %22 : vector<256x32xf32>
    %cst_29 = arith.constant 0.000000e+00 : f32
    %24 = vector.broadcast %cst_29 : f32 to vector<256x32xf32>
    %25 = arith.maximumf %23, %24 : vector<256x32xf32>
    %26 = arith.truncf %25 : vector<256x32xf32> to vector<256x32xbf16>
    %27 = vector.shape_cast %26 : vector<256x32xbf16> to vector<1x1x16x16x32xbf16>
    %28 = vector.shape_cast %27 : vector<1x1x16x16x32xbf16> to vector<16x16x32xbf16>
    %c0_30 = arith.constant 0 : index
    %c0_31 = arith.constant 0 : index
    %c1 = arith.constant 1 : index
    %c16 = arith.constant 16 : index
    %c0_32 = arith.constant 0 : index
    %29 = vector.load %arg11[%c0_30, %c0_31, %c1, %c16, %c0_32] : memref<1x1x18x48x32xbf16, #tpu.memory_space<vmem>>, vector<1x1x16x16x32xbf16>
    %30 = vector.shape_cast %29 : vector<1x1x16x16x32xbf16> to vector<16x16x32xbf16>
    %31 = vector.shape_cast %28 : vector<16x16x32xbf16> to vector<1x1x16x16x32xbf16>
    tpu.vector_store %arg11[%c0_30, %c0_31, %c1, %c16, %c0_32], %31 {strides = array<i32>} : memref<1x1x18x48x32xbf16, #tpu.memory_space<vmem>>, vector<1x1x16x16x32xbf16>,
    %c0_33 = arith.constant 0 : index
    %c0_34 = arith.constant 0 : index
    %c0_35 = arith.constant 0 : index
    %c15_36 = arith.constant 15 : index
    %c0_37 = arith.constant 0 : index
    %32 = vector.load %arg11[%c0_33, %c0_34, %c0_35, %c15_36, %c0_37] : memref<1x1x18x48x32xbf16, #tpu.memory_space<vmem>>, vector<1x1x16x16x32xbf16>
    %33 = vector.shape_cast %32 : vector<1x1x16x16x32xbf16> to vector<16x16x32xbf16>
    %34 = vector.shape_cast %33 : vector<16x16x32xbf16> to vector<256x32xbf16>
    %c0_38 = arith.constant 0 : index
    %c0_39 = arith.constant 0 : index
    %35 = vector.load %arg12[%c0_38, %c0_39] : memref<256x288xbf16, #tpu.memory_space<vmem>>, vector<256x32xbf16>
    tpu.vector_store %arg12[%c0_38, %c0_39], %34 {strides = array<i32>} : memref<256x288xbf16, #tpu.memory_space<vmem>>, vector<256x32xbf16>,
    %c0_40 = arith.constant 0 : index
    %c0_41 = arith.constant 0 : index
    %c0_42 = arith.constant 0 : index
    %c16_43 = arith.constant 16 : index
    %c0_44 = arith.constant 0 : index
    %36 = vector.load %arg11[%c0_40, %c0_41, %c0_42, %c16_43, %c0_44] : memref<1x1x18x48x32xbf16, #tpu.memory_space<vmem>>, vector<1x1x16x16x32xbf16>
    %37 = vector.shape_cast %36 : vector<1x1x16x16x32xbf16> to vector<16x16x32xbf16>
    %38 = vector.shape_cast %37 : vector<16x16x32xbf16> to vector<256x32xbf16>
    %c0_45 = arith.constant 0 : index
    %c32_46 = arith.constant 32 : index
    %39 = vector.load %arg12[%c0_45, %c32_46] : memref<256x288xbf16, #tpu.memory_space<vmem>>, vector<256x32xbf16>
    tpu.vector_store %arg12[%c0_45, %c32_46], %38 {strides = array<i32>} : memref<256x288xbf16, #tpu.memory_space<vmem>>, vector<256x32xbf16>,
    %c0_47 = arith.constant 0 : index
    %c0_48 = arith.constant 0 : index
    %c0_49 = arith.constant 0 : index
    %c17_50 = arith.constant 17 : index
    %c0_51 = arith.constant 0 : index
    %40 = vector.load %arg11[%c0_47, %c0_48, %c0_49, %c17_50, %c0_51] : memref<1x1x18x48x32xbf16, #tpu.memory_space<vmem>>, vector<1x1x16x16x32xbf16>
    %41 = vector.shape_cast %40 : vector<1x1x16x16x32xbf16> to vector<16x16x32xbf16>
    %42 = vector.shape_cast %41 : vector<16x16x32xbf16> to vector<256x32xbf16>
    %c0_52 = arith.constant 0 : index
    %c64 = arith.constant 64 : index
    %43 = vector.load %arg12[%c0_52, %c64] : memref<256x288xbf16, #tpu.memory_space<vmem>>, vector<256x32xbf16>
    tpu.vector_store %arg12[%c0_52, %c64], %42 {strides = array<i32>} : memref<256x288xbf16, #tpu.memory_space<vmem>>, vector<256x32xbf16>,
    %c0_53 = arith.constant 0 : index
    %c0_54 = arith.constant 0 : index
    %c1_55 = arith.constant 1 : index
    %c15_56 = arith.constant 15 : index
    %c0_57 = arith.constant 0 : index
    %44 = vector.load %arg11[%c0_53, %c0_54, %c1_55, %c15_56, %c0_57] : memref<1x1x18x48x32xbf16, #tpu.memory_space<vmem>>, vector<1x1x16x16x32xbf16>
    %45 = vector.shape_cast %44 : vector<1x1x16x16x32xbf16> to vector<16x16x32xbf16>
    %46 = vector.shape_cast %45 : vector<16x16x32xbf16> to vector<256x32xbf16>
    %c0_58 = arith.constant 0 : index
    %c96 = arith.constant 96 : index
    %47 = vector.load %arg12[%c0_58, %c96] : memref<256x288xbf16, #tpu.memory_space<vmem>>, vector<256x32xbf16>
    tpu.vector_store %arg12[%c0_58, %c96], %46 {strides = array<i32>} : memref<256x288xbf16, #tpu.memory_space<vmem>>, vector<256x32xbf16>,
    %c0_59 = arith.constant 0 : index
    %c0_60 = arith.constant 0 : index
    %c1_61 = arith.constant 1 : index
    %c16_62 = arith.constant 16 : index
    %c0_63 = arith.constant 0 : index
    %48 = vector.load %arg11[%c0_59, %c0_60, %c1_61, %c16_62, %c0_63] : memref<1x1x18x48x32xbf16, #tpu.memory_space<vmem>>, vector<1x1x16x16x32xbf16>
    %49 = vector.shape_cast %48 : vector<1x1x16x16x32xbf16> to vector<16x16x32xbf16>
    %50 = vector.shape_cast %49 : vector<16x16x32xbf16> to vector<256x32xbf16>
    %c0_64 = arith.constant 0 : index
    %c128 = arith.constant 128 : index
    %51 = vector.load %arg12[%c0_64, %c128] : memref<256x288xbf16, #tpu.memory_space<vmem>>, vector<256x32xbf16>
    tpu.vector_store %arg12[%c0_64, %c128], %50 {strides = array<i32>} : memref<256x288xbf16, #tpu.memory_space<vmem>>, vector<256x32xbf16>,
    %c0_65 = arith.constant 0 : index
    %c0_66 = arith.constant 0 : index
    %c1_67 = arith.constant 1 : index
    %c17_68 = arith.constant 17 : index
    %c0_69 = arith.constant 0 : index
    %52 = vector.load %arg11[%c0_65, %c0_66, %c1_67, %c17_68, %c0_69] : memref<1x1x18x48x32xbf16, #tpu.memory_space<vmem>>, vector<1x1x16x16x32xbf16>
    %53 = vector.shape_cast %52 : vector<1x1x16x16x32xbf16> to vector<16x16x32xbf16>
    %54 = vector.shape_cast %53 : vector<16x16x32xbf16> to vector<256x32xbf16>
    %c0_70 = arith.constant 0 : index
    %c160 = arith.constant 160 : index
    %55 = vector.load %arg12[%c0_70, %c160] : memref<256x288xbf16, #tpu.memory_space<vmem>>, vector<256x32xbf16>
    tpu.vector_store %arg12[%c0_70, %c160], %54 {strides = array<i32>} : memref<256x288xbf16, #tpu.memory_space<vmem>>, vector<256x32xbf16>,
    %c0_71 = arith.constant 0 : index
    %c0_72 = arith.constant 0 : index
    %c2 = arith.constant 2 : index
    %c15_73 = arith.constant 15 : index
    %c0_74 = arith.constant 0 : index
    %56 = vector.load %arg11[%c0_71, %c0_72, %c2, %c15_73, %c0_74] : memref<1x1x18x48x32xbf16, #tpu.memory_space<vmem>>, vector<1x1x16x16x32xbf16>
    %57 = vector.shape_cast %56 : vector<1x1x16x16x32xbf16> to vector<16x16x32xbf16>
    %58 = vector.shape_cast %57 : vector<16x16x32xbf16> to vector<256x32xbf16>
    %c0_75 = arith.constant 0 : index
    %c192 = arith.constant 192 : index
    %59 = vector.load %arg12[%c0_75, %c192] : memref<256x288xbf16, #tpu.memory_space<vmem>>, vector<256x32xbf16>
    tpu.vector_store %arg12[%c0_75, %c192], %58 {strides = array<i32>} : memref<256x288xbf16, #tpu.memory_space<vmem>>, vector<256x32xbf16>,
    %c0_76 = arith.constant 0 : index
    %c0_77 = arith.constant 0 : index
    %c2_78 = arith.constant 2 : index
    %c16_79 = arith.constant 16 : index
    %c0_80 = arith.constant 0 : index
    %60 = vector.load %arg11[%c0_76, %c0_77, %c2_78, %c16_79, %c0_80] : memref<1x1x18x48x32xbf16, #tpu.memory_space<vmem>>, vector<1x1x16x16x32xbf16>
    %61 = vector.shape_cast %60 : vector<1x1x16x16x32xbf16> to vector<16x16x32xbf16>
    %62 = vector.shape_cast %61 : vector<16x16x32xbf16> to vector<256x32xbf16>
    %c0_81 = arith.constant 0 : index
    %c224 = arith.constant 224 : index
    %63 = vector.load %arg12[%c0_81, %c224] : memref<256x288xbf16, #tpu.memory_space<vmem>>, vector<256x32xbf16>
    tpu.vector_store %arg12[%c0_81, %c224], %62 {strides = array<i32>} : memref<256x288xbf16, #tpu.memory_space<vmem>>, vector<256x32xbf16>,
    %c0_82 = arith.constant 0 : index
    %c0_83 = arith.constant 0 : index
    %c2_84 = arith.constant 2 : index
    %c17_85 = arith.constant 17 : index
    %c0_86 = arith.constant 0 : index
    %64 = vector.load %arg11[%c0_82, %c0_83, %c2_84, %c17_85, %c0_86] : memref<1x1x18x48x32xbf16, #tpu.memory_space<vmem>>, vector<1x1x16x16x32xbf16>
    %65 = vector.shape_cast %64 : vector<1x1x16x16x32xbf16> to vector<16x16x32xbf16>
    %66 = vector.shape_cast %65 : vector<16x16x32xbf16> to vector<256x32xbf16>
    %c0_87 = arith.constant 0 : index
    %c256 = arith.constant 256 : index
    %67 = vector.load %arg12[%c0_87, %c256] : memref<256x288xbf16, #tpu.memory_space<vmem>>, vector<256x32xbf16>
    tpu.vector_store %arg12[%c0_87, %c256], %66 {strides = array<i32>} : memref<256x288xbf16, #tpu.memory_space<vmem>>, vector<256x32xbf16>,
    %c0_88 = arith.constant 0 : index
    %c0_89 = arith.constant 0 : index
    %68 = vector.load %arg12[%c0_88, %c0_89] : memref<256x288xbf16, #tpu.memory_space<vmem>>, vector<256x288xbf16>
    %c0_90 = arith.constant 0 : index
    %c0_91 = arith.constant 0 : index
    %69 = vector.load %arg5[%c0_90, %c0_91] : memref<288x32xbf16, #tpu.memory_space<vmem>>, vector<288x32xbf16>
    %cst_92 = arith.constant dense<0.000000e+00> : vector<256x32xf32>
    %70 = tpu.matmul %68, %69, %cst_92 {dimension_numbers = #tpu.dot_dimension_numbers<[1], [0], [0], [1], [0, 0, 1, 1], [], []>} : vector<256x288xbf16>, vector<288x32xbf16>, vector<256x32xf32> -> vector<256x32xf32>
    %c0_93 = arith.constant 0 : index
    %c0_94 = arith.constant 0 : index
    %71 = vector.load %arg6[%c0_93, %c0_94] : memref<1x32xf32, #tpu.memory_space<vmem>>, vector<1x32xf32>
    %72 = vector.broadcast %71 : vector<1x32xf32> to vector<256x32xf32>
    %73 = arith.mulf %70, %72 : vector<256x32xf32>
    %c0_95 = arith.constant 0 : index
    %c0_96 = arith.constant 0 : index
    %74 = vector.load %arg7[%c0_95, %c0_96] : memref<1x32xf32, #tpu.memory_space<vmem>>, vector<1x32xf32>
    %75 = vector.broadcast %74 : vector<1x32xf32> to vector<256x32xf32>
    %76 = arith.addf %73, %75 : vector<256x32xf32>
    %cst_97 = arith.constant 0.000000e+00 : f32
    %77 = vector.broadcast %cst_97 : f32 to vector<256x32xf32>
    %78 = arith.maximumf %76, %77 : vector<256x32xf32>
    %79 = arith.truncf %78 : vector<256x32xf32> to vector<256x32xbf16>
    %c0_98 = arith.constant 0 : index
    %c0_99 = arith.constant 0 : index
    %c0_100 = arith.constant 0 : index
    %c0_101 = arith.constant 0 : index
    %c0_102 = arith.constant 0 : index
    %80 = vector.load %arg1[%c0_98, %c0_99, %c0_100, %c0_101, %c0_102] : memref<1x1x1x256x64xbf16, #tpu.memory_space<vmem>>, vector<1x1x1x256x64xbf16>
    %81 = vector.shape_cast %80 : vector<1x1x1x256x64xbf16> to vector<256x64xbf16>
    %c0_103 = arith.constant 0 : index
    %c0_104 = arith.constant 0 : index
    %82 = vector.load %arg13[%c0_103, %c0_104] : memref<256x96xbf16, #tpu.memory_space<vmem>>, vector<256x32xbf16>
    tpu.vector_store %arg13[%c0_103, %c0_104], %79 {strides = array<i32>} : memref<256x96xbf16, #tpu.memory_space<vmem>>, vector<256x32xbf16>,
    %c0_105 = arith.constant 0 : index
    %c32_106 = arith.constant 32 : index
    %83 = vector.load %arg13[%c0_105, %c32_106] : memref<256x96xbf16, #tpu.memory_space<vmem>>, vector<256x64xbf16>
    tpu.vector_store %arg13[%c0_105, %c32_106], %81 {strides = array<i32>} : memref<256x96xbf16, #tpu.memory_space<vmem>>, vector<256x64xbf16>,
    %c0_107 = arith.constant 0 : index
    %c0_108 = arith.constant 0 : index
    %84 = vector.load %arg13[%c0_107, %c0_108] : memref<256x96xbf16, #tpu.memory_space<vmem>>, vector<256x96xbf16>
    %c0_109 = arith.constant 0 : index
    %c0_110 = arith.constant 0 : index
    %85 = vector.load %arg8[%c0_109, %c0_110] : memref<96x128xbf16, #tpu.memory_space<vmem>>, vector<96x128xbf16>
    %cst_111 = arith.constant dense<0.000000e+00> : vector<256x128xf32>
    %86 = tpu.matmul %84, %85, %cst_111 {dimension_numbers = #tpu.dot_dimension_numbers<[1], [0], [0], [1], [0, 0, 1, 1], [], []>} : vector<256x96xbf16>, vector<96x128xbf16>, vector<256x128xf32> -> vector<256x128xf32>
    %c0_112 = arith.constant 0 : index
    %c0_113 = arith.constant 0 : index
    %87 = vector.load %arg9[%c0_112, %c0_113] : memref<1x128xf32, #tpu.memory_space<vmem>>, vector<1x128xf32>
    %88 = vector.broadcast %87 : vector<1x128xf32> to vector<256x128xf32>
    %89 = arith.addf %86, %88 : vector<256x128xf32>
    %cst_114 = arith.constant 0.000000e+00 : f32
    %90 = vector.broadcast %cst_114 : f32 to vector<256x128xf32>
    %91 = arith.maximumf %89, %90 : vector<256x128xf32>
    %92 = arith.truncf %91 : vector<256x128xf32> to vector<256x128xbf16>
    %c0_115 = arith.constant 0 : index
    %c0_116 = arith.constant 0 : index
    %c0_117 = arith.constant 0 : index
    %93 = vector.load %arg10[%c0_115, %c0_116, %c0_117] : memref<1x256x128xbf16, #tpu.memory_space<vmem>>, vector<1x256x128xbf16>
    %94 = vector.shape_cast %93 : vector<1x256x128xbf16> to vector<256x128xbf16>
    %95 = vector.shape_cast %92 : vector<256x128xbf16> to vector<1x256x128xbf16>
    tpu.vector_store %arg10[%c0_115, %c0_116, %c0_117], %95 {strides = array<i32>} : memref<1x256x128xbf16, #tpu.memory_space<vmem>>, vector<1x256x128xbf16>,
    return
  }
  func.func @transform_0(%arg0: i32) -> (i32, i32, i32, i32, i32) {
    %c0_i32 = arith.constant 0 : i32
    %c0_i32_0 = arith.constant 0 : i32
    %c0_i32_1 = arith.constant 0 : i32
    %c0_i32_2 = arith.constant 0 : i32
    %c0_i32_3 = arith.constant 0 : i32
    return %c0_i32, %c0_i32_0, %arg0, %c0_i32_1, %c0_i32_2 : i32, i32, i32, i32, i32
  }
  func.func @transform_1(%arg0: i32) -> (i32, i32) {
    %c0_i32 = arith.constant 0 : i32
    %c0_i32_0 = arith.constant 0 : i32
    %c0_i32_1 = arith.constant 0 : i32
    return %c0_i32, %c0_i32_0 : i32, i32
  }
  func.func @transform_2(%arg0: i32) -> (i32, i32) {
    %c0_i32 = arith.constant 0 : i32
    %c0_i32_0 = arith.constant 0 : i32
    %c0_i32_1 = arith.constant 0 : i32
    return %c0_i32, %c0_i32_0 : i32, i32
  }
  func.func @transform_3(%arg0: i32) -> (i32, i32) {
    %c0_i32 = arith.constant 0 : i32
    %c0_i32_0 = arith.constant 0 : i32
    %c0_i32_1 = arith.constant 0 : i32
    return %c0_i32, %c0_i32_0 : i32, i32
  }
  func.func @transform_4(%arg0: i32) -> (i32, i32) {
    %c0_i32 = arith.constant 0 : i32
    %c0_i32_0 = arith.constant 0 : i32
    %c0_i32_1 = arith.constant 0 : i32
    return %c0_i32, %c0_i32_0 : i32, i32
  }
  func.func @transform_5(%arg0: i32) -> (i32, i32) {
    %c0_i32 = arith.constant 0 : i32
    %c0_i32_0 = arith.constant 0 : i32
    %c0_i32_1 = arith.constant 0 : i32
    return %c0_i32, %c0_i32_0 : i32, i32
  }
  func.func @transform_6(%arg0: i32) -> (i32, i32) {
    %c0_i32 = arith.constant 0 : i32
    %c0_i32_0 = arith.constant 0 : i32
    %c0_i32_1 = arith.constant 0 : i32
    return %c0_i32, %c0_i32_0 : i32, i32
  }
  func.func @transform_7(%arg0: i32) -> (i32, i32) {
    %c0_i32 = arith.constant 0 : i32
    %c0_i32_0 = arith.constant 0 : i32
    %c0_i32_1 = arith.constant 0 : i32
    return %c0_i32, %c0_i32_0 : i32, i32
  }
  func.func @transform_8(%arg0: i32) -> (i32, i32) {
    %c0_i32 = arith.constant 0 : i32
    %c0_i32_0 = arith.constant 0 : i32
    %c0_i32_1 = arith.constant 0 : i32
    return %c0_i32, %c0_i32_0 : i32, i32
  }
  func.func @transform_9(%arg0: i32) -> (i32, i32, i32) {
    %c0_i32 = arith.constant 0 : i32
    %c0_i32_0 = arith.constant 0 : i32
    %c0_i32_1 = arith.constant 0 : i32
    return %arg0, %c0_i32, %c0_i32_0 : i32, i32, i32
  }
}

</mosaic_0001>

<llo_original>
// kernel: tpu_custom_call.1
$region0: #{tpu_custom_call.1}
  #allocation0 [shape = 'u32[]', space=smem, size = 0x4, offset = 0x4, fixed_abs, tag = 'smem constant byte address 0x4 - core index']
  #allocation1 [shape = 'u32[144,128]{1,0:T(1,128)}', space=vmem, size = 0x12000, scoped, tag = 'internal scratch']
  #allocation2 [shape = 'bf16[1,1,18,48,32]{4,3,2,1,0:T(16,128)(2,1)}', space=vmem, size = 0x36000, scoped, tag = 'scratch operand']
  #allocation3 [shape = 'bf16[256,288]{1,0:T(16,128)(2,1)}', space=vmem, size = 0x30000, scoped, tag = 'scratch operand']
  #allocation4 [shape = 'bf16[256,96]{1,0:T(16,128)(2,1)}', space=vmem, size = 0x10000, scoped, tag = 'scratch operand']
  %s0 = inlined_call_operand.vmem [shape: bf16[1,1,2,256,64], index: 0, kind: input, shape index: {}]
  %s1 = inlined_call_operand.vmem [shape: bf16[64,32], index: 1, kind: input, shape index: {}]
  %s2 = inlined_call_operand.vmem [shape: f32[1,32], index: 2, kind: input, shape index: {}]
  %s3 = inlined_call_operand.vmem [shape: f32[1,32], index: 3, kind: input, shape index: {}]
  %s4 = inlined_call_operand.vmem [shape: bf16[288,32], index: 4, kind: input, shape index: {}]
  %s5 = inlined_call_operand.vmem [shape: f32[1,32], index: 5, kind: input, shape index: {}]
  %s6 = inlined_call_operand.vmem [shape: f32[1,32], index: 6, kind: input, shape index: {}]
  %s7 = inlined_call_operand.vmem [shape: bf16[96,128], index: 7, kind: input, shape index: {}]
  %s8 = inlined_call_operand.vmem [shape: f32[1,128], index: 8, kind: input, shape index: {}]
  %s9 = inlined_call_operand.hbm [shape: bf16[2,256,128], index: 9, kind: output, shape index: {}]
  %s10 = sld [smem:[#allocation0]]
  $region69: #{tpu_custom_call.1} parent=0
    _
  %s12 = ssub.s32 1, %s10
  %s13 = scalar_select 0, %s12, %s10
  $region1: #{tpu_custom_call.1} parent=0
    #allocation5 [shape = 'u8[131072]{0}', space=vmem, size = 0x20000, scoped, tag = 'output window, operand 0']
    #allocation6 [shape = 's32[2]{0}', space=sflag, size = 0x8, scoped, tag = 'scoped memory for tpu_custom_call.1']
    %14 = vsyncpa [#allocation6], 0
    %s15 = scalar_lea.sflag [#allocation6], 1
    %16 = vsyncpa %s15, 0
    loop: start=0, step=1, limit=4
    $region2: #{tpu_custom_call.1} parent=1 // loop_pre_header
      _
    $region3: #{tpu_custom_call.1} parent=1 // loop_header
      %s18 = sphi 0, %s22
      %p19 = scmp.ge.s32.totalorder %s18, 4
      %s28 = sphi 0, %s30
      %s31 = sphi 0, %s28
      %s32 = sphi 0, %s31
      %s48 = sphi 0, %s32
      %s52 = sphi 0, %s52
      %s54 = sphi 0, %s52
      %s55 = sphi 0, %s54
      %s69 = sphi 0, %s55
      %s73 = sphi 0, %s73
      %s75 = sphi 0, %s73
      %s76 = sphi 0, %s75
      %s90 = sphi 0, %s76
      %s94 = sphi 0, %s94
      %s96 = sphi 0, %s94
      %s97 = sphi 0, %s96
      %s111 = sphi 0, %s97
      %s115 = sphi 0, %s115
      %s117 = sphi 0, %s115
      %s118 = sphi 0, %s117
      %s132 = sphi 0, %s118
      %s136 = sphi 0, %s136
      %s138 = sphi 0, %s136
      %s139 = sphi 0, %s138
      %s153 = sphi 0, %s139
      %s157 = sphi 0, %s157
      %s159 = sphi 0, %s157
      %s160 = sphi 0, %s159
      %s174 = sphi 0, %s160
      %s178 = sphi 0, %s178
      %s180 = sphi 0, %s178
      %s181 = sphi 0, %s180
      %s195 = sphi 0, %s181
      %s199 = sphi 0, %s199
      %s201 = sphi 0, %s199
      %s202 = sphi 0, %s201
      %s216 = sphi 0, %s202
      %s222 = sphi 0, %s224
      %s225 = sphi 0, %s222
      %s226 = sphi 0, %s225
      %s242 = sphi 0, %s226
    $region4: #{tpu_custom_call.1} parent=1 // loop_header_branch
      %21 = sbr.rel (%p19) target = $region8
    $region5: #{tpu_custom_call.1} parent=1 // loop_body
      %s23 = ssub.s32 %s18, 1
      %s24 = ssub.s32 %s18, 2
      %s25 = sadd.s32 %s18, 1
      %s26 = ssub.s32 %s18, %s25
      %p27 = scmp.eq.s32.totalorder %s26, 0
      %s29 = sadd.s32 %s28, 1
      %s30 = scalar_select %p27, %s28, %s29
      %p33 = pneg %p27
      %p34 = scmp.eq.s32.totalorder %s18, 1
      %p35 = por %p33, %p34
      %p36 = scmp.ne.s32.totalorder %s28, %s31
      %p37 = scmp.eq.s32.totalorder %s18, 0
      %p38 = por %p36, %p37
      %p39 = scmp.ne.s32.totalorder %s28, %s31
      %p40 = scmp.eq.s32.totalorder %s23, 1
      %p41 = por %p39, %p40
      %p42 = scmp.ne.s32.totalorder %s31, %s32
      %p43 = scmp.eq.s32.totalorder %s23, 0
      %p44 = por %p42, %p43
      %p45 = scmp.ne.s32.totalorder %s31, %s32
      %p46 = scmp.eq.s32.totalorder %s24, 1
      %p47 = por %p45, %p46
      %p49 = scmp.ne.s32.totalorder %s32, %s48
      %p50 = scmp.eq.s32.totalorder %s24, 0
      %p51 = por %p49, %p50
      %s53 = sadd.s32 %s52, 1
      %p56 = scmp.eq.s32.totalorder %s18, 1
      %p57 = scmp.ne.s32.totalorder %s52, %s54
      %p58 = scmp.eq.s32.totalorder %s18, 0
      %p59 = por %p57, %p58
      %p60 = scmp.ne.s32.totalorder %s52, %s54
      %p61 = scmp.eq.s32.totalorder %s23, 1
      %p62 = por %p60, %p61
      %p63 = scmp.ne.s32.totalorder %s54, %s55
      %p64 = scmp.eq.s32.totalorder %s23, 0
      %p65 = por %p63, %p64
      %p66 = scmp.ne.s32.totalorder %s54, %s55
      %p67 = scmp.eq.s32.totalorder %s24, 1
      %p68 = por %p66, %p67
      %p70 = scmp.ne.s32.totalorder %s55, %s69
      %p71 = scmp.eq.s32.totalorder %s24, 0
      %p72 = por %p70, %p71
      %s74 = sadd.s32 %s73, 1
      %p77 = scmp.eq.s32.totalorder %s18, 1
      %p78 = scmp.ne.s32.totalorder %s73, %s75
      %p79 = scmp.eq.s32.totalorder %s18, 0
      %p80 = por %p78, %p79
      %p81 = scmp.ne.s32.totalorder %s73, %s75
      %p82 = scmp.eq.s32.totalorder %s23, 1
      %p83 = por %p81, %p82
      %p84 = scmp.ne.s32.totalorder %s75, %s76
      %p85 = scmp.eq.s32.totalorder %s23, 0
      %p86 = por %p84, %p85
      %p87 = scmp.ne.s32.totalorder %s75, %s76
      %p88 = scmp.eq.s32.totalorder %s24, 1
      %p89 = por %p87, %p88
      %p91 = scmp.ne.s32.totalorder %s76, %s90
      %p92 = scmp.eq.s32.totalorder %s24, 0
      %p93 = por %p91, %p92
      %s95 = sadd.s32 %s94, 1
      %p98 = scmp.eq.s32.totalorder %s18, 1
      %p99 = scmp.ne.s32.totalorder %s94, %s96
      %p100 = scmp.eq.s32.totalorder %s18, 0
      %p101 = por %p99, %p100
      %p102 = scmp.ne.s32.totalorder %s94, %s96
      %p103 = scmp.eq.s32.totalorder %s23, 1
      %p104 = por %p102, %p103
      %p105 = scmp.ne.s32.totalorder %s96, %s97
      %p106 = scmp.eq.s32.totalorder %s23, 0
      %p107 = por %p105, %p106
      %p108 = scmp.ne.s32.totalorder %s96, %s97
      %p109 = scmp.eq.s32.totalorder %s24, 1
      %p110 = por %p108, %p109
      %p112 = scmp.ne.s32.totalorder %s97, %s111
      %p113 = scmp.eq.s32.totalorder %s24, 0
      %p114 = por %p112, %p113
      %s116 = sadd.s32 %s115, 1
      %p119 = scmp.eq.s32.totalorder %s18, 1
      %p120 = scmp.ne.s32.totalorder %s115, %s117
      %p121 = scmp.eq.s32.totalorder %s18, 0
      %p122 = por %p120, %p121
      %p123 = scmp.ne.s32.totalorder %s115, %s117
      %p124 = scmp.eq.s32.totalorder %s23, 1
      %p125 = por %p123, %p124
      %p126 = scmp.ne.s32.totalorder %s117, %s118
      %p127 = scmp.eq.s32.totalorder %s23, 0
      %p128 = por %p126, %p127
      %p129 = scmp.ne.s32.totalorder %s117, %s118
      %p130 = scmp.eq.s32.totalorder %s24, 1
      %p131 = por %p129, %p130
      %p133 = scmp.ne.s32.totalorder %s118, %s132
      %p134 = scmp.eq.s32.totalorder %s24, 0
      %p135 = por %p133, %p134
      %s137 = sadd.s32 %s136, 1
      %p140 = scmp.eq.s32.totalorder %s18, 1
      %p141 = scmp.ne.s32.totalorder %s136, %s138
      %p142 = scmp.eq.s32.totalorder %s18, 0
      %p143 = por %p141, %p142
      %p144 = scmp.ne.s32.totalorder %s136, %s138
      %p145 = scmp.eq.s32.totalorder %s23, 1
      %p146 = por %p144, %p145
      %p147 = scmp.ne.s32.totalorder %s138, %s139
      %p148 = scmp.eq.s32.totalorder %s23, 0
      %p149 = por %p147, %p148
      %p150 = scmp.ne.s32.totalorder %s138, %s139
      %p151 = scmp.eq.s32.totalorder %s24, 1
      %p152 = por %p150, %p151
      %p154 = scmp.ne.s32.totalorder %s139, %s153
      %p155 = scmp.eq.s32.totalorder %s24, 0
      %p156 = por %p154, %p155
      %s158 = sadd.s32 %s157, 1
      %p161 = scmp.eq.s32.totalorder %s18, 1
      %p162 = scmp.ne.s32.totalorder %s157, %s159
      %p163 = scmp.eq.s32.totalorder %s18, 0
      %p164 = por %p162, %p163
      %p165 = scmp.ne.s32.totalorder %s157, %s159
      %p166 = scmp.eq.s32.totalorder %s23, 1
      %p167 = por %p165, %p166
      %p168 = scmp.ne.s32.totalorder %s159, %s160
      %p169 = scmp.eq.s32.totalorder %s23, 0
      %p170 = por %p168, %p169
      %p171 = scmp.ne.s32.totalorder %s159, %s160
      %p172 = scmp.eq.s32.totalorder %s24, 1
      %p173 = por %p171, %p172
      %p175 = scmp.ne.s32.totalorder %s160, %s174
      %p176 = scmp.eq.s32.totalorder %s24, 0
      %p177 = por %p175, %p176
      %s179 = sadd.s32 %s178, 1
      %p182 = scmp.eq.s32.totalorder %s18, 1
      %p183 = scmp.ne.s32.totalorder %s178, %s180
      %p184 = scmp.eq.s32.totalorder %s18, 0
      %p185 = por %p183, %p184
      %p186 = scmp.ne.s32.totalorder %s178, %s180
      %p187 = scmp.eq.s32.totalorder %s23, 1
      %p188 = por %p186, %p187
      %p189 = scmp.ne.s32.totalorder %s180, %s181
      %p190 = scmp.eq.s32.totalorder %s23, 0
      %p191 = por %p189, %p190
      %p192 = scmp.ne.s32.totalorder %s180, %s181
      %p193 = scmp.eq.s32.totalorder %s24, 1
      %p194 = por %p192, %p193
      %p196 = scmp.ne.s32.totalorder %s181, %s195
      %p197 = scmp.eq.s32.totalorder %s24, 0
      %p198 = por %p196, %p197
      %s200 = sadd.s32 %s199, 1
      %p203 = scmp.eq.s32.totalorder %s18, 1
      %p204 = scmp.ne.s32.totalorder %s199, %s201
      %p205 = scmp.eq.s32.totalorder %s18, 0
      %p206 = por %p204, %p205
      %p207 = scmp.ne.s32.totalorder %s199, %s201
      %p208 = scmp.eq.s32.totalorder %s23, 1
      %p209 = por %p207, %p208
      %p210 = scmp.ne.s32.totalorder %s201, %s202
      %p211 = scmp.eq.s32.totalorder %s23, 0
      %p212 = por %p210, %p211
      %p213 = scmp.ne.s32.totalorder %s201, %s202
      %p214 = scmp.eq.s32.totalorder %s24, 1
      %p215 = por %p213, %p214
      %p217 = scmp.ne.s32.totalorder %s202, %s216
      %p218 = scmp.eq.s32.totalorder %s24, 0
      %p219 = por %p217, %p218
      %s220 = ssub.s32 %s18, %s25
      %p221 = scmp.eq.s32.totalorder %s220, 0
      %s223 = sadd.s32 %s222, 1
      %s224 = scalar_select %p221, %s222, %s223
      %p227 = pneg %p221
      %p228 = scmp.eq.s32.totalorder %s18, 1
      %p229 = por %p227, %p228
      %p230 = scmp.ne.s32.totalorder %s222, %s225
      %p231 = scmp.eq.s32.totalorder %s18, 0
      %p232 = por %p230, %p231
      %p233 = scmp.ne.s32.totalorder %s222, %s225
      %p234 = scmp.eq.s32.totalorder %s23, 1
      %p235 = por %p233, %p234
      %p236 = scmp.ne.s32.totalorder %s225, %s226
      %p237 = scmp.eq.s32.totalorder %s23, 0
      %p238 = por %p236, %p237
      %p239 = scmp.ne.s32.totalorder %s225, %s226
      %p240 = scmp.eq.s32.totalorder %s24, 1
      %p241 = por %p239, %p240
      %p243 = scmp.ne.s32.totalorder %s226, %s242
      %p244 = scmp.eq.s32.totalorder %s24, 0
      %p245 = por %p243, %p244
      %p246 = scmp.le.s32.totalorder 1, %s18
      %p247 = scmp.lt.s32.totalorder %s18, 3
      %p248 = pnand %p246, %p247
      %p249 = pneg %p248
      // Predicated region
      $region9: #{tpu_custom_call.1} parent=5 // pred_check
        _
      $region10: #{tpu_custom_call.1} parent=5 // pred_check_branch
        %251 = sbr.rel (%p248) target = $region12
      $region11: #{tpu_custom_call.1} parent=5 // pred_region
        %s252 = ssub.s32 %s18, 1
        // Predicated region
        $region13: #{tpu_custom_call.1} parent=11 // pred_check
          %p253 = pneg %p65
        $region14: #{tpu_custom_call.1} parent=11 // pred_check_branch
          %255 = sbr.rel (%p253) target = $region16
        $region15: #{tpu_custom_call.1} parent=11 // pred_region
          _
        $region16: #{tpu_custom_call.1} parent=11 // pred_fallthru
          _
        // Predicated region
        $region17: #{tpu_custom_call.1} parent=11 // pred_check
          %p256 = pneg %p86
        $region18: #{tpu_custom_call.1} parent=11 // pred_check_branch
          %258 = sbr.rel (%p256) target = $region20
        $region19: #{tpu_custom_call.1} parent=11 // pred_region
          _
        $region20: #{tpu_custom_call.1} parent=11 // pred_fallthru
          _
        // Predicated region
        $region21: #{tpu_custom_call.1} parent=11 // pred_check
          %p259 = pneg %p107
        $region22: #{tpu_custom_call.1} parent=11 // pred_check_branch
          %261 = sbr.rel (%p259) target = $region24
        $region23: #{tpu_custom_call.1} parent=11 // pred_region
          _
        $region24: #{tpu_custom_call.1} parent=11 // pred_fallthru
          _
        // Predicated region
        $region25: #{tpu_custom_call.1} parent=11 // pred_check
          %p262 = pneg %p128
        $region26: #{tpu_custom_call.1} parent=11 // pred_check_branch
          %264 = sbr.rel (%p262) target = $region28
        $region27: #{tpu_custom_call.1} parent=11 // pred_region
          _
        $region28: #{tpu_custom_call.1} parent=11 // pred_fallthru
          _
        // Predicated region
        $region29: #{tpu_custom_call.1} parent=11 // pred_check
          %p265 = pneg %p149
        $region30: #{tpu_custom_call.1} parent=11 // pred_check_branch
          %267 = sbr.rel (%p265) target = $region32
        $region31: #{tpu_custom_call.1} parent=11 // pred_region
          _
        $region32: #{tpu_custom_call.1} parent=11 // pred_fallthru
          _
        // Predicated region
        $region33: #{tpu_custom_call.1} parent=11 // pred_check
          %p268 = pneg %p170
        $region34: #{tpu_custom_call.1} parent=11 // pred_check_branch
          %270 = sbr.rel (%p268) target = $region36
        $region35: #{tpu_custom_call.1} parent=11 // pred_region
          _
        $region36: #{tpu_custom_call.1} parent=11 // pred_fallthru
          _
        // Predicated region
        $region37: #{tpu_custom_call.1} parent=11 // pred_check
          %p271 = pneg %p191
        $region38: #{tpu_custom_call.1} parent=11 // pred_check_branch
          %273 = sbr.rel (%p271) target = $region40
        $region39: #{tpu_custom_call.1} parent=11 // pred_region
          _
        $region40: #{tpu_custom_call.1} parent=11 // pred_fallthru
          _
        // Predicated region
        $region41: #{tpu_custom_call.1} parent=11 // pred_check
          %p274 = pneg %p212
        $region42: #{tpu_custom_call.1} parent=11 // pred_check_branch
          %276 = sbr.rel (%p274) target = $region44
        $region43: #{tpu_custom_call.1} parent=11 // pred_region
          _
        $region44: #{tpu_custom_call.1} parent=11 // pred_fallthru
          _
      $region12: #{tpu_custom_call.1} parent=5 // pred_fallthru
        _
      %p277 = scmp.lt.s32.totalorder %s18, 2
      // Predicated region
      $region45: #{tpu_custom_call.1} parent=5 // pred_check
        %p278 = pneg %p277
      $region46: #{tpu_custom_call.1} parent=5 // pred_check_branch
        %280 = sbr.rel (%p278) target = $region48
      $region47: #{tpu_custom_call.1} parent=5 // pred_region
        // Predicated region
        $region49: #{tpu_custom_call.1} parent=47 // pred_check
          %p281 = pneg %p38
        $region50: #{tpu_custom_call.1} parent=47 // pred_check_branch
          %283 = sbr.rel (%p281) target = $region52
        $region51: #{tpu_custom_call.1} parent=47 // pred_region
          %p284 = scmp.lt.s32.totalorder %s18, 1
          %s285 = scalar_select %p284, %s18, 1
          %s286 = smul.addr %s285, 32
          %s287 = smul.addr %s286, 4
          %s288 = scalar_lea.vmem %s0, %s287
        $region52: #{tpu_custom_call.1} parent=47 // pred_fallthru
          _
      $region48: #{tpu_custom_call.1} parent=5 // pred_fallthru
        _
      %p289 = scmp.le.s32.totalorder 1, %s18
      %p290 = scmp.lt.s32.totalorder %s18, 3
      %p291 = pnand %p289, %p290
      %p292 = pneg %p291
      // Predicated region
      $region53: #{tpu_custom_call.1} parent=5 // pred_check
        _
      $region54: #{tpu_custom_call.1} parent=5 // pred_check_branch
        %294 = sbr.rel (%p291) target = $region56
      $region55: #{tpu_custom_call.1} parent=5 // pred_region
        %s295 = ssub.s32 %s18, 1
        %p296 = scmp.lt.s32.totalorder %s23, 1
        %s297 = scalar_select %p296, %s23, 1
        %s298 = smul.addr %s297, 32
        %s299 = smul.addr %s298, 4
        %s300 = scalar_lea.vmem %s0, %s299
        %p301 = pneg %p44
        %p302 = pneg %p41
        %p303 = pneg %p65
        %p304 = pneg %p62
        %p305 = pneg %p86
        %p306 = pneg %p83
        %p307 = pneg %p107
        %p308 = pneg %p104
        %p309 = pneg %p128
        %p310 = pneg %p125
        %p311 = pneg %p149
        %p312 = pneg %p146
        %p313 = pneg %p170
        %p314 = pneg %p167
        %p315 = pneg %p191
        %p316 = pneg %p188
        %p317 = pneg %p212
        %p318 = pneg %p209
        %p319 = pneg %p238
        %p320 = pneg %p235
        %s321 = sand.u32 %s225, 1
        %s322 = scalar_lea.sflag [#allocation6], %s321
        %s323 = sand.u32 %s225, 1
        %s324 = smul.addr %s323, 128
        %s325 = scalar_lea.vmem [#allocation5], %s324
        %p326 = scmp.lt.s32.totalorder %s23, 1
        %s327 = scalar_select %p326, %s23, 1
        %s328 = smul.addr %s327, 32
        %s329 = smul.addr %s328, 4
        %s330 = scalar_lea.vmem %s0, %s329
        %vm332 = vcmask 261120
        %333 = vst.msk [vmem:[#allocation2] sm:$0xff] %vm332, 0
        %334 = vst.msk [vmem:[#allocation2 + $0x8] sm:$0xff] %vm332, 0
        %335 = vst.msk [vmem:[#allocation2 + $0x10] sm:$0xff] %vm332, 0
        %s336 = scalar_lea.vmem [#allocation2], 408
        %337 = vst.msk [vmem:[%s336] sm:$0xff] %vm332, 0
        %338 = vst.msk [vmem:[%s336 + $0x8] sm:$0xff] %vm332, 0
        %339 = vst.msk [vmem:[%s336 + $0x10] sm:$0xff] %vm332, 0
        %vm340 = vcmask 261127
        %vm341 = vsmask.f32 7966
        %vm342 = vmand %vm340, %vm341
        %v343 = vld [vmem:[#allocation2] sm:$0x80]
        %v344 = vsel %vm342, 0, %v343
        %345 = vst [vmem:[#allocation2] sm:$0x80] %v344
        %v346 = vld [vmem:[#allocation2 + $0x18] sm:$0x80]
        %v347 = vsel %vm342, 0, %v346
        %348 = vst [vmem:[#allocation2 + $0x18] sm:$0x80] %v347
        %v349 = vld [vmem:[#allocation2 + $0x30] sm:$0x80]
        %v350 = vsel %vm342, 0, %v349
        %351 = vst [vmem:[#allocation2 + $0x30] sm:$0x80] %v350
        %v352 = vld [vmem:[#allocation2 + $0x48] sm:$0x80]
        %v353 = vsel %vm342, 0, %v352
        %354 = vst [vmem:[#allocation2 + $0x48] sm:$0x80] %v353
        %v355 = vld [vmem:[#allocation2 + $0x60] sm:$0x80]
        %v356 = vsel %vm342, 0, %v355
        %357 = vst [vmem:[#allocation2 + $0x60] sm:$0x80] %v356
        %v358 = vld [vmem:[#allocation2 + $0x78] sm:$0x80]
        %v359 = vsel %vm342, 0, %v358
        %360 = vst [vmem:[#allocation2 + $0x78] sm:$0x80] %v359
        %v361 = vld [vmem:[#allocation2 + $0x90] sm:$0x80]
        %v362 = vsel %vm342, 0, %v361
        %363 = vst [vmem:[#allocation2 + $0x90] sm:$0x80] %v362
        %v364 = vld [vmem:[#allocation2 + $0xa8] sm:$0x80]
        %v365 = vsel %vm342, 0, %v364
        %366 = vst [vmem:[#allocation2 + $0xa8] sm:$0x80] %v365
        %v367 = vld [vmem:[#allocation2 + $0xc0] sm:$0x80]
        %v368 = vsel %vm342, 0, %v367
        %369 = vst [vmem:[#allocation2 + $0xc0] sm:$0x80] %v368
        %v370 = vld [vmem:[#allocation2 + $0xd8] sm:$0x80]
        %v371 = vsel %vm342, 0, %v370
        %372 = vst [vmem:[#allocation2 + $0xd8] sm:$0x80] %v371
        %v373 = vld [vmem:[#allocation2 + $0xf0] sm:$0x80]
        %v374 = vsel %vm342, 0, %v373
        %375 = vst [vmem:[#allocation2 + $0xf0] sm:$0x80] %v374
        %v376 = vld [vmem:[#allocation2 + $0x108] sm:$0x80]
        %v377 = vsel %vm342, 0, %v376
        %378 = vst [vmem:[#allocation2 + $0x108] sm:$0x80] %v377
        %v379 = vld [vmem:[#allocation2 + $0x120] sm:$0x80]
        %v380 = vsel %vm342, 0, %v379
        %381 = vst [vmem:[#allocation2 + $0x120] sm:$0x80] %v380
        %v382 = vld [vmem:[#allocation2 + $0x138] sm:$0x80]
        %v383 = vsel %vm342, 0, %v382
        %384 = vst [vmem:[#allocation2 + $0x138] sm:$0x80] %v383
        %v385 = vld [vmem:[#allocation2 + $0x150] sm:$0x80]
        %v386 = vsel %vm342, 0, %v385
        %387 = vst [vmem:[#allocation2 + $0x150] sm:$0x80] %v386
        %v388 = vld [vmem:[#allocation2 + $0x168] sm:$0x80]
        %v389 = vsel %vm342, 0, %v388
        %390 = vst [vmem:[#allocation2 + $0x168] sm:$0x80] %v389
        %v391 = vld [vmem:[#allocation2 + $0x180] sm:$0x80]
        %v392 = vsel %vm342, 0, %v391
        %393 = vst [vmem:[#allocation2 + $0x180] sm:$0x80] %v392
        %v394 = vld [vmem:[#allocation2 + $0x198] sm:$0x80]
        %v395 = vsel %vm342, 0, %v394
        %396 = vst [vmem:[#allocation2 + $0x198] sm:$0x80] %v395
        %vm397 = vcmask 253952
        %vm398 = vsmask.f32 256
        %vm399 = vmand %vm397, %vm398
        %v400 = vld [vmem:[#allocation2 + $0x10] sm:$0x1]
        %v401 = vsel %vm399, 0, %v400
        %402 = vst [vmem:[#allocation2 + $0x10] sm:$0x1] %v401
        %v403 = vld [vmem:[#allocation2 + $0x28] sm:$0x1]
        %v404 = vsel %vm399, 0, %v403
        %405 = vst [vmem:[#allocation2 + $0x28] sm:$0x1] %v404
        %v406 = vld [vmem:[#allocation2 + $0x40] sm:$0x1]
        %v407 = vsel %vm399, 0, %v406
        %408 = vst [vmem:[#allocation2 + $0x40] sm:$0x1] %v407
        %v409 = vld [vmem:[#allocation2 + $0x58] sm:$0x1]
        %v410 = vsel %vm399, 0, %v409
        %411 = vst [vmem:[#allocation2 + $0x58] sm:$0x1] %v410
        %v412 = vld [vmem:[#allocation2 + $0x70] sm:$0x1]
        %v413 = vsel %vm399, 0, %v412
        %414 = vst [vmem:[#allocation2 + $0x70] sm:$0x1] %v413
        %v415 = vld [vmem:[#allocation2 + $0x88] sm:$0x1]
        %v416 = vsel %vm399, 0, %v415
        %417 = vst [vmem:[#allocation2 + $0x88] sm:$0x1] %v416
        %v418 = vld [vmem:[#allocation2 + $0xa0] sm:$0x1]
        %v419 = vsel %vm399, 0, %v418
        %420 = vst [vmem:[#allocation2 + $0xa0] sm:$0x1] %v419
        %v421 = vld [vmem:[#allocation2 + $0xb8] sm:$0x1]
        %v422 = vsel %vm399, 0, %v421
        %423 = vst [vmem:[#allocation2 + $0xb8] sm:$0x1] %v422
        %v424 = vld [vmem:[#allocation2 + $0xd0] sm:$0x1]
        %v425 = vsel %vm399, 0, %v424
        %426 = vst [vmem:[#allocation2 + $0xd0] sm:$0x1] %v425
        %v427 = vld [vmem:[#allocation2 + $0xe8] sm:$0x1]
        %v428 = vsel %vm399, 0, %v427
        %429 = vst [vmem:[#allocation2 + $0xe8] sm:$0x1] %v428
        %v430 = vld [vmem:[#allocation2 + $0x100] sm:$0x1]
        %v431 = vsel %vm399, 0, %v430
        %432 = vst [vmem:[#allocation2 + $0x100] sm:$0x1] %v431
        %v433 = vld [vmem:[#allocation2 + $0x118] sm:$0x1]
        %v434 = vsel %vm399, 0, %v433
        %435 = vst [vmem:[#allocation2 + $0x118] sm:$0x1] %v434
        %v436 = vld [vmem:[#allocation2 + $0x130] sm:$0x1]
        %v437 = vsel %vm399, 0, %v436
        %438 = vst [vmem:[#allocation2 + $0x130] sm:$0x1] %v437
        %v439 = vld [vmem:[#allocation2 + $0x148] sm:$0x1]
        %v440 = vsel %vm399, 0, %v439
        %441 = vst [vmem:[#allocation2 + $0x148] sm:$0x1] %v440
        %v442 = vld [vmem:[#allocation2 + $0x160] sm:$0x1]
        %v443 = vsel %vm399, 0, %v442
        %444 = vst [vmem:[#allocation2 + $0x160] sm:$0x1] %v443
        %v445 = vld [vmem:[#allocation2 + $0x178] sm:$0x1]
        %v446 = vsel %vm399, 0, %v445
        %447 = vst [vmem:[#allocation2 + $0x178] sm:$0x1] %v446
        %v448 = vld [vmem:[#allocation2 + $0x190] sm:$0x1]
        %v449 = vsel %vm399, 0, %v448
        %450 = vst [vmem:[#allocation2 + $0x190] sm:$0x1] %v449
        %v451 = vld [vmem:[#allocation2 + $0x1a8] sm:$0x1]
        %v452 = vsel %vm399, 0, %v451
        %453 = vst [vmem:[#allocation2 + $0x1a8] sm:$0x1] %v452
        %v454 = vld [vmem:[%s330] sm:$0xf]
        %v455 = vld [vmem:[%s330 + $0x4] sm:$0xf]
        %v456 = vld [vmem:[%s330 + $0x8] sm:$0xf]
        %v457 = vld [vmem:[%s330 + $0xc] sm:$0xf]
        %v458 = vld [vmem:[%s330 + $0x10] sm:$0xf]
        %v459 = vld [vmem:[%s330 + $0x14] sm:$0xf]
        %v460 = vld [vmem:[%s330 + $0x18] sm:$0xf]
        %v461 = vld [vmem:[%s330 + $0x1c] sm:$0xf]
        %v462 = vld [vmem:[%s330 + $0x20] sm:$0xf]
        %v463 = vld [vmem:[%s330 + $0x24] sm:$0xf]
        %v464 = vld [vmem:[%s330 + $0x28] sm:$0xf]
        %v465 = vld [vmem:[%s330 + $0x2c] sm:$0xf]
        %v466 = vld [vmem:[%s330 + $0x30] sm:$0xf]
        %v467 = vld [vmem:[%s330 + $0x34] sm:$0xf]
        %v468 = vld [vmem:[%s330 + $0x38] sm:$0xf]
        %v469 = vld [vmem:[%s330 + $0x3c] sm:$0xf]
        %v470 = vld [vmem:[%s330 + $0x40] sm:$0xf]
        %v471 = vld [vmem:[%s330 + $0x44] sm:$0xf]
        %v472 = vld [vmem:[%s330 + $0x48] sm:$0xf]
        %v473 = vld [vmem:[%s330 + $0x4c] sm:$0xf]
        %v474 = vld [vmem:[%s330 + $0x50] sm:$0xf]
        %v475 = vld [vmem:[%s330 + $0x54] sm:$0xf]
        %v476 = vld [vmem:[%s330 + $0x58] sm:$0xf]
        %v477 = vld [vmem:[%s330 + $0x5c] sm:$0xf]
        %v478 = vld [vmem:[%s330 + $0x60] sm:$0xf]
        %v479 = vld [vmem:[%s330 + $0x64] sm:$0xf]
        %v480 = vld [vmem:[%s330 + $0x68] sm:$0xf]
        %v481 = vld [vmem:[%s330 + $0x6c] sm:$0xf]
        %v482 = vld [vmem:[%s330 + $0x70] sm:$0xf]
        %v483 = vld [vmem:[%s330 + $0x74] sm:$0xf]
        %v484 = vld [vmem:[%s330 + $0x78] sm:$0xf]
        %v485 = vld [vmem:[%s330 + $0x7c] sm:$0xf]
        %v486 = vld [vmem:[%s1] sm:$0xf]
        %v487 = vld [vmem:[%s1 + $0x4] sm:$0xf]
        %v488 = vld [vmem:[%s1 + $0x8] sm:$0xf]
        %v489 = vld [vmem:[%s1 + $0xc] sm:$0xf]
        %v490 = vld [vmem:[%s1 + $0x10] sm:$0xf]
        %v491 = vld [vmem:[%s1 + $0x14] sm:$0xf]
        %v492 = vld [vmem:[%s1 + $0x18] sm:$0xf]
        %v493 = vld [vmem:[%s1 + $0x1c] sm:$0xf]
        %v526 = vunpack.c.l.b16 %v454
        %v527 = vunpack.c.l.b16 %v455
        %v528 = vunpack.c.l.b16 %v456
        %v529 = vunpack.c.l.b16 %v457
        %v530 = vunpack.c.l.b16 %v458
        %v531 = vunpack.c.l.b16 %v459
        %v532 = vunpack.c.l.b16 %v460
        %v533 = vunpack.c.l.b16 %v461
        %v534 = vunpack.c.l.b16 %v462
        %v535 = vunpack.c.l.b16 %v463
        %v536 = vunpack.c.l.b16 %v464
        %v537 = vunpack.c.l.b16 %v465
        %v538 = vunpack.c.l.b16 %v466
        %v539 = vunpack.c.l.b16 %v467
        %v540 = vunpack.c.l.b16 %v468
        %v541 = vunpack.c.l.b16 %v469
        %v542 = vunpack.c.l.b16 %v470
        %v543 = vunpack.c.l.b16 %v471
        %v544 = vunpack.c.l.b16 %v472
        %v545 = vunpack.c.l.b16 %v473
        %v546 = vunpack.c.l.b16 %v474
        %v547 = vunpack.c.l.b16 %v475
        %v548 = vunpack.c.l.b16 %v476
        %v549 = vunpack.c.l.b16 %v477
        %v550 = vunpack.c.l.b16 %v478
        %v551 = vunpack.c.l.b16 %v479
        %v552 = vunpack.c.l.b16 %v480
        %v553 = vunpack.c.l.b16 %v481
        %v554 = vunpack.c.l.b16 %v482
        %v555 = vunpack.c.l.b16 %v483
        %v556 = vunpack.c.l.b16 %v484
        %v557 = vunpack.c.l.b16 %v485
        %v558 = vpack.c.b16 %v527, %v526
        %v559 = vpack.c.b16 %v529, %v528
        %v560 = vpack.c.b16 %v531, %v530
        %v561 = vpack.c.b16 %v533, %v532
        %v562 = vpack.c.b16 %v535, %v534
        %v563 = vpack.c.b16 %v537, %v536
        %v564 = vpack.c.b16 %v539, %v538
        %v565 = vpack.c.b16 %v541, %v540
        %v566 = vpack.c.b16 %v543, %v542
        %v567 = vpack.c.b16 %v545, %v544
        %v568 = vpack.c.b16 %v547, %v546
        %v569 = vpack.c.b16 %v549, %v548
        %v570 = vpack.c.b16 %v551, %v550
        %v571 = vpack.c.b16 %v553, %v552
        %v572 = vpack.c.b16 %v555, %v554
        %v573 = vpack.c.b16 %v557, %v556
        %v582 = vunpack.c.l.b16 %v486
        %v583 = vunpack.c.l.b16 %v487
        %v584 = vunpack.c.l.b16 %v488
        %v585 = vunpack.c.l.b16 %v489
        %v586 = vunpack.c.l.b16 %v490
        %v587 = vunpack.c.l.b16 %v491
        %v588 = vunpack.c.l.b16 %v492
        %v589 = vunpack.c.l.b16 %v493
        %v590 = vpack.c.b16 %v583, %v582
        %v591 = vpack.c.b16 %v585, %v584
        %v592 = vpack.c.b16 %v587, %v586
        %v593 = vpack.c.b16 %v589, %v588
        %vm598 = vcmask 523264
        %v600 = vsel %vm598, %v558, 0
        %v603 = vsel %vm598, %v559, 0
        %v606 = vsel %vm598, %v560, 0
        %v609 = vsel %vm598, %v561, 0
        %v612 = vsel %vm598, %v562, 0
        %v615 = vsel %vm598, %v563, 0
        %v618 = vsel %vm598, %v564, 0
        %v621 = vsel %vm598, %v565, 0
        %v624 = vsel %vm598, %v566, 0
        %v627 = vsel %vm598, %v567, 0
        %v630 = vsel %vm598, %v568, 0
        %v633 = vsel %vm598, %v569, 0
        %v636 = vsel %vm598, %v570, 0
        %v639 = vsel %vm598, %v571, 0
        %v642 = vsel %vm598, %v572, 0
        %v645 = vsel %vm598, %v573, 0
        %647 = vmatprep.subr.bf16.mxu0 0
        %648 = vmatpush1.bf16.msra.mxu0 %v590
        %649 = vmatprep.subr.bf16.mxu0 0
        %650 = vmatpush1.bf16.msra.mxu0 %v591
        %651 = vmatprep.subr.bf16.mxu0 0
        %652 = vmatpush1.bf16.msra.mxu0 %v592
        %653 = vmatprep.subr.bf16.mxu0 0
        %654 = vmatpush1.bf16.msra.mxu0 %v593
        %655 = vmatprep.subr.bf16.mxu0 0
        %656 = vmatpush1.bf16.msra.mxu0 0
        %657 = vmatprep.subr.bf16.mxu0 0
        %658 = vmatpush1.bf16.msra.mxu0 0
        %659 = vmatprep.subr.bf16.mxu0 0
        %660 = vmatpush1.bf16.msra.mxu0 0
        %661 = vmatprep.subr.bf16.mxu0 0
        %662 = vmatpush1.bf16.msra.mxu0 0
        %663 = vmatprep.subr.bf16.mxu0 0
        %664 = vmatpush1.bf16.msra.mxu0 0
        %665 = vmatprep.subr.bf16.mxu0 0
        %666 = vmatpush1.bf16.msra.mxu0 0
        %667 = vmatprep.subr.bf16.mxu0 0
        %668 = vmatpush1.bf16.msra.mxu0 0
        %669 = vmatprep.subr.bf16.mxu0 0
        %670 = vmatpush1.bf16.msra.mxu0 0
        %671 = vmatprep.subr.bf16.mxu0 0
        %672 = vmatpush1.bf16.msra.mxu0 0
        %673 = vmatprep.subr.bf16.mxu0 0
        %674 = vmatpush1.bf16.msra.mxu0 0
        %675 = vmatprep.subr.bf16.mxu0 0
        %676 = vmatpush1.bf16.msra.mxu0 0
        %677 = vmatprep.subr.bf16.mxu0 0
        %678 = vmatpush1.bf16.msra.mxu0 0
        %679 = vmatprep.mubr.bf16.mxu0 0
        %680 = vmatmul.mubr.bf16.gmra.mrb[0].mxu0 %v600
        %v681 = vpop.f32.mrb[0].mxu0
        %v682 = vadd.f32 0.0, %v681
        %v683 = vpop.f32.mrb[0].mxu0
        %v684 = vpop.f32.mrb[0].mxu0
        %v685 = vadd.f32 0.0, %v684
        %v686 = vpop.f32.mrb[0].mxu0
        %687 = vmatprep.mubr.bf16.mxu0 0
        %688 = vmatmul.mubr.bf16.gmra.mrb[0].mxu0 %v603
        %v689 = vpop.f32.mrb[0].mxu0
        %v690 = vadd.f32 0.0, %v689
        %v691 = vpop.f32.mrb[0].mxu0
        %v692 = vpop.f32.mrb[0].mxu0
        %v693 = vadd.f32 0.0, %v692
        %v694 = vpop.f32.mrb[0].mxu0
        %695 = vmatprep.mubr.bf16.mxu0 0
        %696 = vmatmul.mubr.bf16.gmra.mrb[0].mxu0 %v606
        %v697 = vpop.f32.mrb[0].mxu0
        %v698 = vadd.f32 0.0, %v697
        %v699 = vpop.f32.mrb[0].mxu0
        %v700 = vpop.f32.mrb[0].mxu0
        %v701 = vadd.f32 0.0, %v700
        %v702 = vpop.f32.mrb[0].mxu0
        %703 = vmatprep.mubr.bf16.mxu0 0
        %704 = vmatmul.mubr.bf16.gmra.mrb[0].mxu0 %v609
        %v705 = vpop.f32.mrb[0].mxu0
        %v706 = vadd.f32 0.0, %v705
        %v707 = vpop.f32.mrb[0].mxu0
        %v708 = vpop.f32.mrb[0].mxu0
        %v709 = vadd.f32 0.0, %v708
        %v710 = vpop.f32.mrb[0].mxu0
        %711 = vmatprep.mubr.bf16.mxu0 0
        %712 = vmatmul.mubr.bf16.gmra.mrb[0].mxu0 %v612
        %v713 = vpop.f32.mrb[0].mxu0
        %v714 = vadd.f32 0.0, %v713
        %v715 = vpop.f32.mrb[0].mxu0
        %v716 = vpop.f32.mrb[0].mxu0
        %v717 = vadd.f32 0.0, %v716
        %v718 = vpop.f32.mrb[0].mxu0
        %719 = vmatprep.mubr.bf16.mxu0 0
        %720 = vmatmul.mubr.bf16.gmra.mrb[0].mxu0 %v615
        %v721 = vpop.f32.mrb[0].mxu0
        %v722 = vadd.f32 0.0, %v721
        %v723 = vpop.f32.mrb[0].mxu0
        %v724 = vpop.f32.mrb[0].mxu0
        %v725 = vadd.f32 0.0, %v724
        %v726 = vpop.f32.mrb[0].mxu0
        %727 = vmatprep.mubr.bf16.mxu0 0
        %728 = vmatmul.mubr.bf16.gmra.mrb[0].mxu0 %v618
        %v729 = vpop.f32.mrb[0].mxu0
        %v730 = vadd.f32 0.0, %v729
        %v731 = vpop.f32.mrb[0].mxu0
        %v732 = vpop.f32.mrb[0].mxu0
        %v733 = vadd.f32 0.0, %v732
        %v734 = vpop.f32.mrb[0].mxu0
        %735 = vmatprep.mubr.bf16.mxu0 0
        %736 = vmatmul.mubr.bf16.gmra.mrb[0].mxu0 %v621
        %v737 = vpop.f32.mrb[0].mxu0
        %v738 = vadd.f32 0.0, %v737
        %v739 = vpop.f32.mrb[0].mxu0
        %v740 = vpop.f32.mrb[0].mxu0
        %v741 = vadd.f32 0.0, %v740
        %v742 = vpop.f32.mrb[0].mxu0
        %743 = vmatprep.mubr.bf16.mxu0 0
        %744 = vmatmul.mubr.bf16.gmra.mrb[0].mxu0 %v624
        %v745 = vpop.f32.mrb[0].mxu0
        %v746 = vadd.f32 0.0, %v745
        %v747 = vpop.f32.mrb[0].mxu0
        %v748 = vpop.f32.mrb[0].mxu0
        %v749 = vadd.f32 0.0, %v748
        %v750 = vpop.f32.mrb[0].mxu0
        %751 = vmatprep.mubr.bf16.mxu0 0
        %752 = vmatmul.mubr.bf16.gmra.mrb[0].mxu0 %v627
        %v753 = vpop.f32.mrb[0].mxu0
        %v754 = vadd.f32 0.0, %v753
        %v755 = vpop.f32.mrb[0].mxu0
        %v756 = vpop.f32.mrb[0].mxu0
        %v757 = vadd.f32 0.0, %v756
        %v758 = vpop.f32.mrb[0].mxu0
        %759 = vmatprep.mubr.bf16.mxu0 0
        %760 = vmatmul.mubr.bf16.gmra.mrb[0].mxu0 %v630
        %v761 = vpop.f32.mrb[0].mxu0
        %v762 = vadd.f32 0.0, %v761
        %v763 = vpop.f32.mrb[0].mxu0
        %v764 = vpop.f32.mrb[0].mxu0
        %v765 = vadd.f32 0.0, %v764
        %v766 = vpop.f32.mrb[0].mxu0
        %767 = vmatprep.mubr.bf16.mxu0 0
        %768 = vmatmul.mubr.bf16.gmra.mrb[0].mxu0 %v633
        %v769 = vpop.f32.mrb[0].mxu0
        %v770 = vadd.f32 0.0, %v769
        %v771 = vpop.f32.mrb[0].mxu0
        %v772 = vpop.f32.mrb[0].mxu0
        %v773 = vadd.f32 0.0, %v772
        %v774 = vpop.f32.mrb[0].mxu0
        %775 = vmatprep.mubr.bf16.mxu0 0
        %776 = vmatmul.mubr.bf16.gmra.mrb[0].mxu0 %v636
        %v777 = vpop.f32.mrb[0].mxu0
        %v778 = vadd.f32 0.0, %v777
        %v779 = vpop.f32.mrb[0].mxu0
        %v780 = vpop.f32.mrb[0].mxu0
        %v781 = vadd.f32 0.0, %v780
        %v782 = vpop.f32.mrb[0].mxu0
        %783 = vmatprep.mubr.bf16.mxu0 0
        %784 = vmatmul.mubr.bf16.gmra.mrb[0].mxu0 %v639
        %v785 = vpop.f32.mrb[0].mxu0
        %v786 = vadd.f32 0.0, %v785
        %v787 = vpop.f32.mrb[0].mxu0
        %v788 = vpop.f32.mrb[0].mxu0
        %v789 = vadd.f32 0.0, %v788
        %v790 = vpop.f32.mrb[0].mxu0
        %791 = vmatprep.mubr.bf16.mxu0 0
        %792 = vmatmul.mubr.bf16.gmra.mrb[0].mxu0 %v642
        %v793 = vpop.f32.mrb[0].mxu0
        %v794 = vadd.f32 0.0, %v793
        %v795 = vpop.f32.mrb[0].mxu0
        %v796 = vpop.f32.mrb[0].mxu0
        %v797 = vadd.f32 0.0, %v796
        %v798 = vpop.f32.mrb[0].mxu0
        %799 = vmatprep.mubr.bf16.mxu0 0
        %800 = vmatmul.mubr.bf16.gmra.mrb[0].mxu0 %v645
        %v801 = vpop.f32.mrb[0].mxu0
        %v802 = vadd.f32 0.0, %v801
        %v803 = vpop.f32.mrb[0].mxu0
        %v804 = vpop.f32.mrb[0].mxu0
        %v805 = vadd.f32 0.0, %v804
        %v806 = vpop.f32.mrb[0].mxu0
        %807 = vdwg.mxu0
        %v808 = vld [vmem:[%s2] sm:$0x1]
        %v810 = vlaneseq
        %v811 = vshrl.u32 %v810, 7
        %v812 = vsub.s32 0, %v811
        %v813 = vrot.slane %v808, %v812
        %v815 = vmul.f32 %v682, %v813
        %v816 = vmul.f32 %v685, %v813
        %v817 = vmul.f32 %v690, %v813
        %v818 = vmul.f32 %v693, %v813
        %v819 = vmul.f32 %v698, %v813
        %v820 = vmul.f32 %v701, %v813
        %v821 = vmul.f32 %v706, %v813
        %v822 = vmul.f32 %v709, %v813
        %v823 = vmul.f32 %v714, %v813
        %v824 = vmul.f32 %v717, %v813
        %v825 = vmul.f32 %v722, %v813
        %v826 = vmul.f32 %v725, %v813
        %v827 = vmul.f32 %v730, %v813
        %v828 = vmul.f32 %v733, %v813
        %v829 = vmul.f32 %v738, %v813
        %v830 = vmul.f32 %v741, %v813
        %v831 = vmul.f32 %v746, %v813
        %v832 = vmul.f32 %v749, %v813
        %v833 = vmul.f32 %v754, %v813
        %v834 = vmul.f32 %v757, %v813
        %v835 = vmul.f32 %v762, %v813
        %v836 = vmul.f32 %v765, %v813
        %v837 = vmul.f32 %v770, %v813
        %v838 = vmul.f32 %v773, %v813
        %v839 = vmul.f32 %v778, %v813
        %v840 = vmul.f32 %v781, %v813
        %v841 = vmul.f32 %v786, %v813
        %v842 = vmul.f32 %v789, %v813
        %v843 = vmul.f32 %v794, %v813
        %v844 = vmul.f32 %v797, %v813
        %v845 = vmul.f32 %v802, %v813
        %v846 = vmul.f32 %v805, %v813
        %v847 = vld [vmem:[%s3] sm:$0x1]
        %v849 = vlaneseq
        %v850 = vshrl.u32 %v849, 7
        %v851 = vsub.s32 0, %v850
        %v852 = vrot.slane %v847, %v851
        %v854 = vadd.f32 %v815, %v852
        %v855 = vadd.f32 %v816, %v852
        %v856 = vadd.f32 %v817, %v852
        %v857 = vadd.f32 %v818, %v852
        %v858 = vadd.f32 %v819, %v852
        %v859 = vadd.f32 %v820, %v852
        %v860 = vadd.f32 %v821, %v852
        %v861 = vadd.f32 %v822, %v852
        %v862 = vadd.f32 %v823, %v852
        %v863 = vadd.f32 %v824, %v852
        %v864 = vadd.f32 %v825, %v852
        %v865 = vadd.f32 %v826, %v852
        %v866 = vadd.f32 %v827, %v852
        %v867 = vadd.f32 %v828, %v852
        %v868 = vadd.f32 %v829, %v852
        %v869 = vadd.f32 %v830, %v852
        %v870 = vadd.f32 %v831, %v852
        %v871 = vadd.f32 %v832, %v852
        %v872 = vadd.f32 %v833, %v852
        %v873 = vadd.f32 %v834, %v852
        %v874 = vadd.f32 %v835, %v852
        %v875 = vadd.f32 %v836, %v852
        %v876 = vadd.f32 %v837, %v852
        %v877 = vadd.f32 %v838, %v852
        %v878 = vadd.f32 %v839, %v852
        %v879 = vadd.f32 %v840, %v852
        %v880 = vadd.f32 %v841, %v852
        %v881 = vadd.f32 %v842, %v852
        %v882 = vadd.f32 %v843, %v852
        %v883 = vadd.f32 %v844, %v852
        %v884 = vadd.f32 %v845, %v852
        %v885 = vadd.f32 %v846, %v852
        %v886 = vmax.f32 %v854, 0.0
        %v887 = vmax.f32 %v855, 0.0
        %v888 = vmax.f32 %v856, 0.0
        %v889 = vmax.f32 %v857, 0.0
        %v890 = vmax.f32 %v858, 0.0
        %v891 = vmax.f32 %v859, 0.0
        %v892 = vmax.f32 %v860, 0.0
        %v893 = vmax.f32 %v861, 0.0
        %v894 = vmax.f32 %v862, 0.0
        %v895 = vmax.f32 %v863, 0.0
        %v896 = vmax.f32 %v864, 0.0
        %v897 = vmax.f32 %v865, 0.0
        %v898 = vmax.f32 %v866, 0.0
        %v899 = vmax.f32 %v867, 0.0
        %v900 = vmax.f32 %v868, 0.0
        %v901 = vmax.f32 %v869, 0.0
        %v902 = vmax.f32 %v870, 0.0
        %v903 = vmax.f32 %v871, 0.0
        %v904 = vmax.f32 %v872, 0.0
        %v905 = vmax.f32 %v873, 0.0
        %v906 = vmax.f32 %v874, 0.0
        %v907 = vmax.f32 %v875, 0.0
        %v908 = vmax.f32 %v876, 0.0
        %v909 = vmax.f32 %v877, 0.0
        %v910 = vmax.f32 %v878, 0.0
        %v911 = vmax.f32 %v879, 0.0
        %v912 = vmax.f32 %v880, 0.0
        %v913 = vmax.f32 %v881, 0.0
        %v914 = vmax.f32 %v882, 0.0
        %v915 = vmax.f32 %v883, 0.0
        %v916 = vmax.f32 %v884, 0.0
        %v917 = vmax.f32 %v885, 0.0
        %v918 = vpack.c.bf16 %v887, %v886
        %v919 = vpack.c.bf16 %v889, %v888
        %v920 = vpack.c.bf16 %v891, %v890
        %v921 = vpack.c.bf16 %v893, %v892
        %v922 = vpack.c.bf16 %v895, %v894
        %v923 = vpack.c.bf16 %v897, %v896
        %v924 = vpack.c.bf16 %v899, %v898
        %v925 = vpack.c.bf16 %v901, %v900
        %v926 = vpack.c.bf16 %v903, %v902
        %v927 = vpack.c.bf16 %v905, %v904
        %v928 = vpack.c.bf16 %v907, %v906
        %v929 = vpack.c.bf16 %v909, %v908
        %v930 = vpack.c.bf16 %v911, %v910
        %v931 = vpack.c.bf16 %v913, %v912
        %v932 = vpack.c.bf16 %v915, %v914
        %v933 = vpack.c.bf16 %v917, %v916
        %s934 = scalar_lea.vmem [#allocation2], 24
        %935 = vst.msk [vmem:[%s934 + $0x8] sm:$0xff] %vm332, %v918
        %936 = vst.msk [vmem:[%s934 + $0x20] sm:$0xff] %vm332, %v919
        %937 = vst.msk [vmem:[%s934 + $0x38] sm:$0xff] %vm332, %v920
        %938 = vst.msk [vmem:[%s934 + $0x50] sm:$0xff] %vm332, %v921
        %939 = vst.msk [vmem:[%s934 + $0x68] sm:$0xff] %vm332, %v922
        %940 = vst.msk [vmem:[%s934 + $0x80] sm:$0xff] %vm332, %v923
        %941 = vst.msk [vmem:[%s934 + $0x98] sm:$0xff] %vm332, %v924
        %942 = vst.msk [vmem:[%s934 + $0xb0] sm:$0xff] %vm332, %v925
        %943 = vst.msk [vmem:[%s934 + $0xc8] sm:$0xff] %vm332, %v926
        %944 = vst.msk [vmem:[%s934 + $0xe0] sm:$0xff] %vm332, %v927
        %945 = vst.msk [vmem:[%s934 + $0xf8] sm:$0xff] %vm332, %v928
        %946 = vst.msk [vmem:[%s934 + $0x110] sm:$0xff] %vm332, %v929
        %947 = vst.msk [vmem:[%s934 + $0x128] sm:$0xff] %vm332, %v930
        %948 = vst.msk [vmem:[%s934 + $0x140] sm:$0xff] %vm332, %v931
        %949 = vst.msk [vmem:[%s934 + $0x158] sm:$0xff] %vm332, %v932
        %950 = vst.msk [vmem:[%s934 + $0x170] sm:$0xff] %vm332, %v933
        %v951 = vld [vmem:[#allocation2] sm:$0x80]
        %v952 = vld [vmem:[#allocation2 + $0x8] sm:$0xff]
        %v953 = vld [vmem:[#allocation2 + $0x18] sm:$0x80]
        %v954 = vld [vmem:[#allocation2 + $0x20] sm:$0xff]
        %v955 = vld [vmem:[#allocation2 + $0x30] sm:$0x80]
        %v956 = vld [vmem:[#allocation2 + $0x38] sm:$0xff]
        %v957 = vld [vmem:[#allocation2 + $0x48] sm:$0x80]
        %v958 = vld [vmem:[#allocation2 + $0x50] sm:$0xff]
        %v959 = vld [vmem:[#allocation2 + $0x60] sm:$0x80]
        %v960 = vld [vmem:[#allocation2 + $0x68] sm:$0xff]
        %v961 = vld [vmem:[#allocation2 + $0x78] sm:$0x80]
        %v962 = vld [vmem:[#allocation2 + $0x80] sm:$0xff]
        %v963 = vld [vmem:[#allocation2 + $0x90] sm:$0x80]
        %v964 = vld [vmem:[#allocation2 + $0x98] sm:$0xff]
        %v965 = vld [vmem:[#allocation2 + $0xa8] sm:$0x80]
        %v966 = vld [vmem:[#allocation2 + $0xb0] sm:$0xff]
        %v967 = vld [vmem:[#allocation2 + $0xc0] sm:$0x80]
        %v968 = vld [vmem:[#allocation2 + $0xc8] sm:$0xff]
        %v969 = vld [vmem:[#allocation2 + $0xd8] sm:$0x80]
        %v970 = vld [vmem:[#allocation2 + $0xe0] sm:$0xff]
        %v971 = vld [vmem:[#allocation2 + $0xf0] sm:$0x80]
        %v972 = vld [vmem:[#allocation2 + $0xf8] sm:$0xff]
        %v973 = vld [vmem:[#allocation2 + $0x108] sm:$0x80]
        %v974 = vld [vmem:[#allocation2 + $0x110] sm:$0xff]
        %v975 = vld [vmem:[#allocation2 + $0x120] sm:$0x80]
        %v976 = vld [vmem:[#allocation2 + $0x128] sm:$0xff]
        %v977 = vld [vmem:[#allocation2 + $0x138] sm:$0x80]
        %v978 = vld [vmem:[#allocation2 + $0x140] sm:$0xff]
        %v979 = vld [vmem:[#allocation2 + $0x150] sm:$0x80]
        %v980 = vld [vmem:[#allocation2 + $0x158] sm:$0xff]
        %v981 = vld [vmem:[#allocation2 + $0x168] sm:$0x80]
        %v982 = vld [vmem:[#allocation2 + $0x170] sm:$0xff]
        %v984 = vshrl.u32 %v951, 16
        %v986 = vrot.slane %v984, 7
        %v988 = vshrl.u32 %v952, 16
        %v990 = vrot.slane %v988, 7
        %v991 = vshll.u32 %v952, 16
        %v993 = vor.u32 %v990, %v991
        %v994 = vsel %vm398, %v986, %v993
        %v996 = vshrl.u32 %v953, 16
        %v998 = vrot.slane %v996, 7
        %v1000 = vshrl.u32 %v954, 16
        %v1002 = vrot.slane %v1000, 7
        %v1003 = vshll.u32 %v954, 16
        %v1005 = vor.u32 %v1002, %v1003
        %v1006 = vsel %vm398, %v998, %v1005
        %v1008 = vshrl.u32 %v955, 16
        %v1010 = vrot.slane %v1008, 7
        %v1012 = vshrl.u32 %v956, 16
        %v1014 = vrot.slane %v1012, 7
        %v1015 = vshll.u32 %v956, 16
        %v1017 = vor.u32 %v1014, %v1015
        %v1018 = vsel %vm398, %v1010, %v1017
        %v1020 = vshrl.u32 %v957, 16
        %v1022 = vrot.slane %v1020, 7
        %v1024 = vshrl.u32 %v958, 16
        %v1026 = vrot.slane %v1024, 7
        %v1027 = vshll.u32 %v958, 16
        %v1029 = vor.u32 %v1026, %v1027
        %v1030 = vsel %vm398, %v1022, %v1029
        %v1032 = vshrl.u32 %v959, 16
        %v1034 = vrot.slane %v1032, 7
        %v1036 = vshrl.u32 %v960, 16
        %v1038 = vrot.slane %v1036, 7
        %v1039 = vshll.u32 %v960, 16
        %v1041 = vor.u32 %v1038, %v1039
        %v1042 = vsel %vm398, %v1034, %v1041
        %v1044 = vshrl.u32 %v961, 16
        %v1046 = vrot.slane %v1044, 7
        %v1048 = vshrl.u32 %v962, 16
        %v1050 = vrot.slane %v1048, 7
        %v1051 = vshll.u32 %v962, 16
        %v1053 = vor.u32 %v1050, %v1051
        %v1054 = vsel %vm398, %v1046, %v1053
        %v1056 = vshrl.u32 %v963, 16
        %v1058 = vrot.slane %v1056, 7
        %v1060 = vshrl.u32 %v964, 16
        %v1062 = vrot.slane %v1060, 7
        %v1063 = vshll.u32 %v964, 16
        %v1065 = vor.u32 %v1062, %v1063
        %v1066 = vsel %vm398, %v1058, %v1065
        %v1068 = vshrl.u32 %v965, 16
        %v1070 = vrot.slane %v1068, 7
        %v1072 = vshrl.u32 %v966, 16
        %v1074 = vrot.slane %v1072, 7
        %v1075 = vshll.u32 %v966, 16
        %v1077 = vor.u32 %v1074, %v1075
        %v1078 = vsel %vm398, %v1070, %v1077
        %v1080 = vshrl.u32 %v967, 16
        %v1082 = vrot.slane %v1080, 7
        %v1084 = vshrl.u32 %v968, 16
        %v1086 = vrot.slane %v1084, 7
        %v1087 = vshll.u32 %v968, 16
        %v1089 = vor.u32 %v1086, %v1087
        %v1090 = vsel %vm398, %v1082, %v1089
        %v1092 = vshrl.u32 %v969, 16
        %v1094 = vrot.slane %v1092, 7
        %v1096 = vshrl.u32 %v970, 16
        %v1098 = vrot.slane %v1096, 7
        %v1099 = vshll.u32 %v970, 16
        %v1101 = vor.u32 %v1098, %v1099
        %v1102 = vsel %vm398, %v1094, %v1101
        %v1104 = vshrl.u32 %v971, 16
        %v1106 = vrot.slane %v1104, 7
        %v1108 = vshrl.u32 %v972, 16
        %v1110 = vrot.slane %v1108, 7
        %v1111 = vshll.u32 %v972, 16
        %v1113 = vor.u32 %v1110, %v1111
        %v1114 = vsel %vm398, %v1106, %v1113
        %v1116 = vshrl.u32 %v973, 16
        %v1118 = vrot.slane %v1116, 7
        %v1120 = vshrl.u32 %v974, 16
        %v1122 = vrot.slane %v1120, 7
        %v1123 = vshll.u32 %v974, 16
        %v1125 = vor.u32 %v1122, %v1123
        %v1126 = vsel %vm398, %v1118, %v1125
        %v1128 = vshrl.u32 %v975, 16
        %v1130 = vrot.slane %v1128, 7
        %v1132 = vshrl.u32 %v976, 16
        %v1134 = vrot.slane %v1132, 7
        %v1135 = vshll.u32 %v976, 16
        %v1137 = vor.u32 %v1134, %v1135
        %v1138 = vsel %vm398, %v1130, %v1137
        %v1140 = vshrl.u32 %v977, 16
        %v1142 = vrot.slane %v1140, 7
        %v1144 = vshrl.u32 %v978, 16
        %v1146 = vrot.slane %v1144, 7
        %v1147 = vshll.u32 %v978, 16
        %v1149 = vor.u32 %v1146, %v1147
        %v1150 = vsel %vm398, %v1142, %v1149
        %v1152 = vshrl.u32 %v979, 16
        %v1154 = vrot.slane %v1152, 7
        %v1156 = vshrl.u32 %v980, 16
        %v1158 = vrot.slane %v1156, 7
        %v1159 = vshll.u32 %v980, 16
        %v1161 = vor.u32 %v1158, %v1159
        %v1162 = vsel %vm398, %v1154, %v1161
        %v1164 = vshrl.u32 %v981, 16
        %v1166 = vrot.slane %v1164, 7
        %v1168 = vshrl.u32 %v982, 16
        %v1170 = vrot.slane %v1168, 7
        %v1171 = vshll.u32 %v982, 16
        %v1173 = vor.u32 %v1170, %v1171
        %v1174 = vsel %vm398, %v1166, %v1173
        %1191 = vst.msk [vmem:[#allocation3] sm:$0xff] %vm332, %v994
        %1192 = vst.msk [vmem:[#allocation3 + $0x18] sm:$0xff] %vm332, %v1006
        %1193 = vst.msk [vmem:[#allocation3 + $0x30] sm:$0xff] %vm332, %v1018
        %1194 = vst.msk [vmem:[#allocation3 + $0x48] sm:$0xff] %vm332, %v1030
        %1195 = vst.msk [vmem:[#allocation3 + $0x60] sm:$0xff] %vm332, %v1042
        %1196 = vst.msk [vmem:[#allocation3 + $0x78] sm:$0xff] %vm332, %v1054
        %1197 = vst.msk [vmem:[#allocation3 + $0x90] sm:$0xff] %vm332, %v1066
        %1198 = vst.msk [vmem:[#allocation3 + $0xa8] sm:$0xff] %vm332, %v1078
        %1199 = vst.msk [vmem:[#allocation3 + $0xc0] sm:$0xff] %vm332, %v1090
        %1200 = vst.msk [vmem:[#allocation3 + $0xd8] sm:$0xff] %vm332, %v1102
        %1201 = vst.msk [vmem:[#allocation3 + $0xf0] sm:$0xff] %vm332, %v1114
        %1202 = vst.msk [vmem:[#allocation3 + $0x108] sm:$0xff] %vm332, %v1126
        %1203 = vst.msk [vmem:[#allocation3 + $0x120] sm:$0xff] %vm332, %v1138
        %1204 = vst.msk [vmem:[#allocation3 + $0x138] sm:$0xff] %vm332, %v1150
        %1205 = vst.msk [vmem:[#allocation3 + $0x150] sm:$0xff] %vm332, %v1162
        %1206 = vst.msk [vmem:[#allocation3 + $0x168] sm:$0xff] %vm332, %v1174
        %v1207 = vld [vmem:[#allocation2 + $0x8] sm:$0xff]
        %v1208 = vld [vmem:[#allocation2 + $0x20] sm:$0xff]
        %v1209 = vld [vmem:[#allocation2 + $0x38] sm:$0xff]
        %v1210 = vld [vmem:[#allocation2 + $0x50] sm:$0xff]
        %v1211 = vld [vmem:[#allocation2 + $0x68] sm:$0xff]
        %v1212 = vld [vmem:[#allocation2 + $0x80] sm:$0xff]
        %v1213 = vld [vmem:[#allocation2 + $0x98] sm:$0xff]
        %v1214 = vld [vmem:[#allocation2 + $0xb0] sm:$0xff]
        %v1215 = vld [vmem:[#allocation2 + $0xc8] sm:$0xff]
        %v1216 = vld [vmem:[#allocation2 + $0xe0] sm:$0xff]
        %v1217 = vld [vmem:[#allocation2 + $0xf8] sm:$0xff]
        %v1218 = vld [vmem:[#allocation2 + $0x110] sm:$0xff]
        %v1219 = vld [vmem:[#allocation2 + $0x128] sm:$0xff]
        %v1220 = vld [vmem:[#allocation2 + $0x140] sm:$0xff]
        %v1221 = vld [vmem:[#allocation2 + $0x158] sm:$0xff]
        %v1222 = vld [vmem:[#allocation2 + $0x170] sm:$0xff]
        %1239 = vrot.lane.b32.xlu0 %v1207, 32
        %v1240 = vpop.permute.xlu0 %1239
        %1241 = vrot.lane.b32.xlu0 %v1208, 32
        %v1242 = vpop.permute.xlu0 %1241
        %1243 = vrot.lane.b32.xlu0 %v1209, 32
        %v1244 = vpop.permute.xlu0 %1243
        %1245 = vrot.lane.b32.xlu0 %v1210, 32
        %v1246 = vpop.permute.xlu0 %1245
        %1247 = vrot.lane.b32.xlu0 %v1211, 32
        %v1248 = vpop.permute.xlu0 %1247
        %1249 = vrot.lane.b32.xlu0 %v1212, 32
        %v1250 = vpop.permute.xlu0 %1249
        %1251 = vrot.lane.b32.xlu0 %v1213, 32
        %v1252 = vpop.permute.xlu0 %1251
        %1253 = vrot.lane.b32.xlu0 %v1214, 32
        %v1254 = vpop.permute.xlu0 %1253
        %1255 = vrot.lane.b32.xlu0 %v1215, 32
        %v1256 = vpop.permute.xlu0 %1255
        %1257 = vrot.lane.b32.xlu0 %v1216, 32
        %v1258 = vpop.permute.xlu0 %1257
        %1259 = vrot.lane.b32.xlu0 %v1217, 32
        %v1260 = vpop.permute.xlu0 %1259
        %1261 = vrot.lane.b32.xlu0 %v1218, 32
        %v1262 = vpop.permute.xlu0 %1261
        %1263 = vrot.lane.b32.xlu0 %v1219, 32
        %v1264 = vpop.permute.xlu0 %1263
        %1265 = vrot.lane.b32.xlu0 %v1220, 32
        %v1266 = vpop.permute.xlu0 %1265
        %1267 = vrot.lane.b32.xlu0 %v1221, 32
        %v1268 = vpop.permute.xlu0 %1267
        %1269 = vrot.lane.b32.xlu0 %v1222, 32
        %v1270 = vpop.permute.xlu0 %1269
        %vm1287 = vcmask 523520
        %1288 = vst.msk [vmem:[#allocation3] sm:$0xff] %vm1287, %v1240
        %1289 = vst.msk [vmem:[#allocation3 + $0x18] sm:$0xff] %vm1287, %v1242
        %1290 = vst.msk [vmem:[#allocation3 + $0x30] sm:$0xff] %vm1287, %v1244
        %1291 = vst.msk [vmem:[#allocation3 + $0x48] sm:$0xff] %vm1287, %v1246
        %1292 = vst.msk [vmem:[#allocation3 + $0x60] sm:$0xff] %vm1287, %v1248
        %1293 = vst.msk [vmem:[#allocation3 + $0x78] sm:$0xff] %vm1287, %v1250
        %1294 = vst.msk [vmem:[#allocation3 + $0x90] sm:$0xff] %vm1287, %v1252
        %1295 = vst.msk [vmem:[#allocation3 + $0xa8] sm:$0xff] %vm1287, %v1254
        %1296 = vst.msk [vmem:[#allocation3 + $0xc0] sm:$0xff] %vm1287, %v1256
        %1297 = vst.msk [vmem:[#allocation3 + $0xd8] sm:$0xff] %vm1287, %v1258
        %1298 = vst.msk [vmem:[#allocation3 + $0xf0] sm:$0xff] %vm1287, %v1260
        %1299 = vst.msk [vmem:[#allocation3 + $0x108] sm:$0xff] %vm1287, %v1262
        %1300 = vst.msk [vmem:[#allocation3 + $0x120] sm:$0xff] %vm1287, %v1264
        %1301 = vst.msk [vmem:[#allocation3 + $0x138] sm:$0xff] %vm1287, %v1266
        %1302 = vst.msk [vmem:[#allocation3 + $0x150] sm:$0xff] %vm1287, %v1268
        %1303 = vst.msk [vmem:[#allocation3 + $0x168] sm:$0xff] %vm1287, %v1270
        %v1304 = vld [vmem:[#allocation2 + $0x8] sm:$0xff]
        %v1305 = vld [vmem:[#allocation2 + $0x10] sm:$0x1]
        %v1306 = vld [vmem:[#allocation2 + $0x20] sm:$0xff]
        %v1307 = vld [vmem:[#allocation2 + $0x28] sm:$0x1]
        %v1308 = vld [vmem:[#allocation2 + $0x38] sm:$0xff]
        %v1309 = vld [vmem:[#allocation2 + $0x40] sm:$0x1]
        %v1310 = vld [vmem:[#allocation2 + $0x50] sm:$0xff]
        %v1311 = vld [vmem:[#allocation2 + $0x58] sm:$0x1]
        %v1312 = vld [vmem:[#allocation2 + $0x68] sm:$0xff]
        %v1313 = vld [vmem:[#allocation2 + $0x70] sm:$0x1]
        %v1314 = vld [vmem:[#allocation2 + $0x80] sm:$0xff]
        %v1315 = vld [vmem:[#allocation2 + $0x88] sm:$0x1]
        %v1316 = vld [vmem:[#allocation2 + $0x98] sm:$0xff]
        %v1317 = vld [vmem:[#allocation2 + $0xa0] sm:$0x1]
        %v1318 = vld [vmem:[#allocation2 + $0xb0] sm:$0xff]
        %v1319 = vld [vmem:[#allocation2 + $0xb8] sm:$0x1]
        %v1320 = vld [vmem:[#allocation2 + $0xc8] sm:$0xff]
        %v1321 = vld [vmem:[#allocation2 + $0xd0] sm:$0x1]
        %v1322 = vld [vmem:[#allocation2 + $0xe0] sm:$0xff]
        %v1323 = vld [vmem:[#allocation2 + $0xe8] sm:$0x1]
        %v1324 = vld [vmem:[#allocation2 + $0xf8] sm:$0xff]
        %v1325 = vld [vmem:[#allocation2 + $0x100] sm:$0x1]
        %v1326 = vld [vmem:[#allocation2 + $0x110] sm:$0xff]
        %v1327 = vld [vmem:[#allocation2 + $0x118] sm:$0x1]
        %v1328 = vld [vmem:[#allocation2 + $0x128] sm:$0xff]
        %v1329 = vld [vmem:[#allocation2 + $0x130] sm:$0x1]
        %v1330 = vld [vmem:[#allocation2 + $0x140] sm:$0xff]
        %v1331 = vld [vmem:[#allocation2 + $0x148] sm:$0x1]
        %v1332 = vld [vmem:[#allocation2 + $0x158] sm:$0xff]
        %v1333 = vld [vmem:[#allocation2 + $0x160] sm:$0x1]
        %v1334 = vld [vmem:[#allocation2 + $0x170] sm:$0xff]
        %v1335 = vld [vmem:[#allocation2 + $0x178] sm:$0x1]
        %vm1336 = vsmask.f32 7424
        %v1338 = vshrl.u32 %v1304, 16
        %v1340 = vshll.u32 %v1304, 16
        %v1342 = vrot.slane %v1340, 1
        %v1343 = vor.u32 %v1338, %v1342
        %v1345 = vshll.u32 %v1305, 16
        %v1347 = vrot.slane %v1345, 1
        %v1348 = vsel %vm1336, %v1343, %v1347
        %v1350 = vshrl.u32 %v1306, 16
        %v1352 = vshll.u32 %v1306, 16
        %v1354 = vrot.slane %v1352, 1
        %v1355 = vor.u32 %v1350, %v1354
        %v1357 = vshll.u32 %v1307, 16
        %v1359 = vrot.slane %v1357, 1
        %v1360 = vsel %vm1336, %v1355, %v1359
        %v1362 = vshrl.u32 %v1308, 16
        %v1364 = vshll.u32 %v1308, 16
        %v1366 = vrot.slane %v1364, 1
        %v1367 = vor.u32 %v1362, %v1366
        %v1369 = vshll.u32 %v1309, 16
        %v1371 = vrot.slane %v1369, 1
        %v1372 = vsel %vm1336, %v1367, %v1371
        %v1374 = vshrl.u32 %v1310, 16
        %v1376 = vshll.u32 %v1310, 16
        %v1378 = vrot.slane %v1376, 1
        %v1379 = vor.u32 %v1374, %v1378
        %v1381 = vshll.u32 %v1311, 16
        %v1383 = vrot.slane %v1381, 1
        %v1384 = vsel %vm1336, %v1379, %v1383
        %v1386 = vshrl.u32 %v1312, 16
        %v1388 = vshll.u32 %v1312, 16
        %v1390 = vrot.slane %v1388, 1
        %v1391 = vor.u32 %v1386, %v1390
        %v1393 = vshll.u32 %v1313, 16
        %v1395 = vrot.slane %v1393, 1
        %v1396 = vsel %vm1336, %v1391, %v1395
        %v1398 = vshrl.u32 %v1314, 16
        %v1400 = vshll.u32 %v1314, 16
        %v1402 = vrot.slane %v1400, 1
        %v1403 = vor.u32 %v1398, %v1402
        %v1405 = vshll.u32 %v1315, 16
        %v1407 = vrot.slane %v1405, 1
        %v1408 = vsel %vm1336, %v1403, %v1407
        %v1410 = vshrl.u32 %v1316, 16
        %v1412 = vshll.u32 %v1316, 16
        %v1414 = vrot.slane %v1412, 1
        %v1415 = vor.u32 %v1410, %v1414
        %v1417 = vshll.u32 %v1317, 16
        %v1419 = vrot.slane %v1417, 1
        %v1420 = vsel %vm1336, %v1415, %v1419
        %v1422 = vshrl.u32 %v1318, 16
        %v1424 = vshll.u32 %v1318, 16
        %v1426 = vrot.slane %v1424, 1
        %v1427 = vor.u32 %v1422, %v1426
        %v1429 = vshll.u32 %v1319, 16
        %v1431 = vrot.slane %v1429, 1
        %v1432 = vsel %vm1336, %v1427, %v1431
        %v1434 = vshrl.u32 %v1320, 16
        %v1436 = vshll.u32 %v1320, 16
        %v1438 = vrot.slane %v1436, 1
        %v1439 = vor.u32 %v1434, %v1438
        %v1441 = vshll.u32 %v1321, 16
        %v1443 = vrot.slane %v1441, 1
        %v1444 = vsel %vm1336, %v1439, %v1443
        %v1446 = vshrl.u32 %v1322, 16
        %v1448 = vshll.u32 %v1322, 16
        %v1450 = vrot.slane %v1448, 1
        %v1451 = vor.u32 %v1446, %v1450
        %v1453 = vshll.u32 %v1323, 16
        %v1455 = vrot.slane %v1453, 1
        %v1456 = vsel %vm1336, %v1451, %v1455
        %v1458 = vshrl.u32 %v1324, 16
        %v1460 = vshll.u32 %v1324, 16
        %v1462 = vrot.slane %v1460, 1
        %v1463 = vor.u32 %v1458, %v1462
        %v1465 = vshll.u32 %v1325, 16
        %v1467 = vrot.slane %v1465, 1
        %v1468 = vsel %vm1336, %v1463, %v1467
        %v1470 = vshrl.u32 %v1326, 16
        %v1472 = vshll.u32 %v1326, 16
        %v1474 = vrot.slane %v1472, 1
        %v1475 = vor.u32 %v1470, %v1474
        %v1477 = vshll.u32 %v1327, 16
        %v1479 = vrot.slane %v1477, 1
        %v1480 = vsel %vm1336, %v1475, %v1479
        %v1482 = vshrl.u32 %v1328, 16
        %v1484 = vshll.u32 %v1328, 16
        %v1486 = vrot.slane %v1484, 1
        %v1487 = vor.u32 %v1482, %v1486
        %v1489 = vshll.u32 %v1329, 16
        %v1491 = vrot.slane %v1489, 1
        %v1492 = vsel %vm1336, %v1487, %v1491
        %v1494 = vshrl.u32 %v1330, 16
        %v1496 = vshll.u32 %v1330, 16
        %v1498 = vrot.slane %v1496, 1
        %v1499 = vor.u32 %v1494, %v1498
        %v1501 = vshll.u32 %v1331, 16
        %v1503 = vrot.slane %v1501, 1
        %v1504 = vsel %vm1336, %v1499, %v1503
        %v1506 = vshrl.u32 %v1332, 16
        %v1508 = vshll.u32 %v1332, 16
        %v1510 = vrot.slane %v1508, 1
        %v1511 = vor.u32 %v1506, %v1510
        %v1513 = vshll.u32 %v1333, 16
        %v1515 = vrot.slane %v1513, 1
        %v1516 = vsel %vm1336, %v1511, %v1515
        %v1518 = vshrl.u32 %v1334, 16
        %v1520 = vshll.u32 %v1334, 16
        %v1522 = vrot.slane %v1520, 1
        %v1523 = vor.u32 %v1518, %v1522
        %v1525 = vshll.u32 %v1335, 16
        %v1527 = vrot.slane %v1525, 1
        %v1528 = vsel %vm1336, %v1523, %v1527
        %1529 = vrot.lane.b32.xlu0 %v1348, 64
        %v1530 = vpop.permute.xlu0 %1529
        %1531 = vrot.lane.b32.xlu0 %v1360, 64
        %v1532 = vpop.permute.xlu0 %1531
        %1533 = vrot.lane.b32.xlu0 %v1372, 64
        %v1534 = vpop.permute.xlu0 %1533
        %1535 = vrot.lane.b32.xlu0 %v1384, 64
        %v1536 = vpop.permute.xlu0 %1535
        %1537 = vrot.lane.b32.xlu0 %v1396, 64
        %v1538 = vpop.permute.xlu0 %1537
        %1539 = vrot.lane.b32.xlu0 %v1408, 64
        %v1540 = vpop.permute.xlu0 %1539
        %1541 = vrot.lane.b32.xlu0 %v1420, 64
        %v1542 = vpop.permute.xlu0 %1541
        %1543 = vrot.lane.b32.xlu0 %v1432, 64
        %v1544 = vpop.permute.xlu0 %1543
        %1545 = vrot.lane.b32.xlu0 %v1444, 64
        %v1546 = vpop.permute.xlu0 %1545
        %1547 = vrot.lane.b32.xlu0 %v1456, 64
        %v1548 = vpop.permute.xlu0 %1547
        %1549 = vrot.lane.b32.xlu0 %v1468, 64
        %v1550 = vpop.permute.xlu0 %1549
        %1551 = vrot.lane.b32.xlu0 %v1480, 64
        %v1552 = vpop.permute.xlu0 %1551
        %1553 = vrot.lane.b32.xlu0 %v1492, 64
        %v1554 = vpop.permute.xlu0 %1553
        %1555 = vrot.lane.b32.xlu0 %v1504, 64
        %v1556 = vpop.permute.xlu0 %1555
        %1557 = vrot.lane.b32.xlu0 %v1516, 64
        %v1558 = vpop.permute.xlu0 %1557
        %1559 = vrot.lane.b32.xlu0 %v1528, 64
        %v1560 = vpop.permute.xlu0 %1559
        %vm1577 = vcmask 785920
        %1578 = vst.msk [vmem:[#allocation3] sm:$0xff] %vm1577, %v1530
        %1579 = vst.msk [vmem:[#allocation3 + $0x18] sm:$0xff] %vm1577, %v1532
        %1580 = vst.msk [vmem:[#allocation3 + $0x30] sm:$0xff] %vm1577, %v1534
        %1581 = vst.msk [vmem:[#allocation3 + $0x48] sm:$0xff] %vm1577, %v1536
        %1582 = vst.msk [vmem:[#allocation3 + $0x60] sm:$0xff] %vm1577, %v1538
        %1583 = vst.msk [vmem:[#allocation3 + $0x78] sm:$0xff] %vm1577, %v1540
        %1584 = vst.msk [vmem:[#allocation3 + $0x90] sm:$0xff] %vm1577, %v1542
        %1585 = vst.msk [vmem:[#allocation3 + $0xa8] sm:$0xff] %vm1577, %v1544
        %1586 = vst.msk [vmem:[#allocation3 + $0xc0] sm:$0xff] %vm1577, %v1546
        %1587 = vst.msk [vmem:[#allocation3 + $0xd8] sm:$0xff] %vm1577, %v1548
        %1588 = vst.msk [vmem:[#allocation3 + $0xf0] sm:$0xff] %vm1577, %v1550
        %1589 = vst.msk [vmem:[#allocation3 + $0x108] sm:$0xff] %vm1577, %v1552
        %1590 = vst.msk [vmem:[#allocation3 + $0x120] sm:$0xff] %vm1577, %v1554
        %1591 = vst.msk [vmem:[#allocation3 + $0x138] sm:$0xff] %vm1577, %v1556
        %1592 = vst.msk [vmem:[#allocation3 + $0x150] sm:$0xff] %vm1577, %v1558
        %1593 = vst.msk [vmem:[#allocation3 + $0x168] sm:$0xff] %vm1577, %v1560
        %v1594 = vld [vmem:[%s934] sm:$0x80]
        %v1595 = vld [vmem:[%s934 + $0x8] sm:$0xff]
        %v1596 = vld [vmem:[%s934 + $0x18] sm:$0x80]
        %v1597 = vld [vmem:[%s934 + $0x20] sm:$0xff]
        %v1598 = vld [vmem:[%s934 + $0x30] sm:$0x80]
        %v1599 = vld [vmem:[%s934 + $0x38] sm:$0xff]
        %v1600 = vld [vmem:[%s934 + $0x48] sm:$0x80]
        %v1601 = vld [vmem:[%s934 + $0x50] sm:$0xff]
        %v1602 = vld [vmem:[%s934 + $0x60] sm:$0x80]
        %v1603 = vld [vmem:[%s934 + $0x68] sm:$0xff]
        %v1604 = vld [vmem:[%s934 + $0x78] sm:$0x80]
        %v1605 = vld [vmem:[%s934 + $0x80] sm:$0xff]
        %v1606 = vld [vmem:[%s934 + $0x90] sm:$0x80]
        %v1607 = vld [vmem:[%s934 + $0x98] sm:$0xff]
        %v1608 = vld [vmem:[%s934 + $0xa8] sm:$0x80]
        %v1609 = vld [vmem:[%s934 + $0xb0] sm:$0xff]
        %v1610 = vld [vmem:[%s934 + $0xc0] sm:$0x80]
        %v1611 = vld [vmem:[%s934 + $0xc8] sm:$0xff]
        %v1612 = vld [vmem:[%s934 + $0xd8] sm:$0x80]
        %v1613 = vld [vmem:[%s934 + $0xe0] sm:$0xff]
        %v1614 = vld [vmem:[%s934 + $0xf0] sm:$0x80]
        %v1615 = vld [vmem:[%s934 + $0xf8] sm:$0xff]
        %v1616 = vld [vmem:[%s934 + $0x108] sm:$0x80]
        %v1617 = vld [vmem:[%s934 + $0x110] sm:$0xff]
        %v1618 = vld [vmem:[%s934 + $0x120] sm:$0x80]
        %v1619 = vld [vmem:[%s934 + $0x128] sm:$0xff]
        %v1620 = vld [vmem:[%s934 + $0x138] sm:$0x80]
        %v1621 = vld [vmem:[%s934 + $0x140] sm:$0xff]
        %v1622 = vld [vmem:[%s934 + $0x150] sm:$0x80]
        %v1623 = vld [vmem:[%s934 + $0x158] sm:$0xff]
        %v1624 = vld [vmem:[%s934 + $0x168] sm:$0x80]
        %v1625 = vld [vmem:[%s934 + $0x170] sm:$0xff]
        %v1627 = vshrl.u32 %v1594, 16
        %v1629 = vrot.slane %v1627, 7
        %v1631 = vshrl.u32 %v1595, 16
        %v1633 = vrot.slane %v1631, 7
        %v1634 = vshll.u32 %v1595, 16
        %v1636 = vor.u32 %v1633, %v1634
        %v1637 = vsel %vm398, %v1629, %v1636
        %v1639 = vshrl.u32 %v1596, 16
        %v1641 = vrot.slane %v1639, 7
        %v1643 = vshrl.u32 %v1597, 16
        %v1645 = vrot.slane %v1643, 7
        %v1646 = vshll.u32 %v1597, 16
        %v1648 = vor.u32 %v1645, %v1646
        %v1649 = vsel %vm398, %v1641, %v1648
        %v1651 = vshrl.u32 %v1598, 16
        %v1653 = vrot.slane %v1651, 7
        %v1655 = vshrl.u32 %v1599, 16
        %v1657 = vrot.slane %v1655, 7
        %v1658 = vshll.u32 %v1599, 16
        %v1660 = vor.u32 %v1657, %v1658
        %v1661 = vsel %vm398, %v1653, %v1660
        %v1663 = vshrl.u32 %v1600, 16
        %v1665 = vrot.slane %v1663, 7
        %v1667 = vshrl.u32 %v1601, 16
        %v1669 = vrot.slane %v1667, 7
        %v1670 = vshll.u32 %v1601, 16
        %v1672 = vor.u32 %v1669, %v1670
        %v1673 = vsel %vm398, %v1665, %v1672
        %v1675 = vshrl.u32 %v1602, 16
        %v1677 = vrot.slane %v1675, 7
        %v1679 = vshrl.u32 %v1603, 16
        %v1681 = vrot.slane %v1679, 7
        %v1682 = vshll.u32 %v1603, 16
        %v1684 = vor.u32 %v1681, %v1682
        %v1685 = vsel %vm398, %v1677, %v1684
        %v1687 = vshrl.u32 %v1604, 16
        %v1689 = vrot.slane %v1687, 7
        %v1691 = vshrl.u32 %v1605, 16
        %v1693 = vrot.slane %v1691, 7
        %v1694 = vshll.u32 %v1605, 16
        %v1696 = vor.u32 %v1693, %v1694
        %v1697 = vsel %vm398, %v1689, %v1696
        %v1699 = vshrl.u32 %v1606, 16
        %v1701 = vrot.slane %v1699, 7
        %v1703 = vshrl.u32 %v1607, 16
        %v1705 = vrot.slane %v1703, 7
        %v1706 = vshll.u32 %v1607, 16
        %v1708 = vor.u32 %v1705, %v1706
        %v1709 = vsel %vm398, %v1701, %v1708
        %v1711 = vshrl.u32 %v1608, 16
        %v1713 = vrot.slane %v1711, 7
        %v1715 = vshrl.u32 %v1609, 16
        %v1717 = vrot.slane %v1715, 7
        %v1718 = vshll.u32 %v1609, 16
        %v1720 = vor.u32 %v1717, %v1718
        %v1721 = vsel %vm398, %v1713, %v1720
        %v1723 = vshrl.u32 %v1610, 16
        %v1725 = vrot.slane %v1723, 7
        %v1727 = vshrl.u32 %v1611, 16
        %v1729 = vrot.slane %v1727, 7
        %v1730 = vshll.u32 %v1611, 16
        %v1732 = vor.u32 %v1729, %v1730
        %v1733 = vsel %vm398, %v1725, %v1732
        %v1735 = vshrl.u32 %v1612, 16
        %v1737 = vrot.slane %v1735, 7
        %v1739 = vshrl.u32 %v1613, 16
        %v1741 = vrot.slane %v1739, 7
        %v1742 = vshll.u32 %v1613, 16
        %v1744 = vor.u32 %v1741, %v1742
        %v1745 = vsel %vm398, %v1737, %v1744
        %v1747 = vshrl.u32 %v1614, 16
        %v1749 = vrot.slane %v1747, 7
        %v1751 = vshrl.u32 %v1615, 16
        %v1753 = vrot.slane %v1751, 7
        %v1754 = vshll.u32 %v1615, 16
        %v1756 = vor.u32 %v1753, %v1754
        %v1757 = vsel %vm398, %v1749, %v1756
        %v1759 = vshrl.u32 %v1616, 16
        %v1761 = vrot.slane %v1759, 7
        %v1763 = vshrl.u32 %v1617, 16
        %v1765 = vrot.slane %v1763, 7
        %v1766 = vshll.u32 %v1617, 16
        %v1768 = vor.u32 %v1765, %v1766
        %v1769 = vsel %vm398, %v1761, %v1768
        %v1771 = vshrl.u32 %v1618, 16
        %v1773 = vrot.slane %v1771, 7
        %v1775 = vshrl.u32 %v1619, 16
        %v1777 = vrot.slane %v1775, 7
        %v1778 = vshll.u32 %v1619, 16
        %v1780 = vor.u32 %v1777, %v1778
        %v1781 = vsel %vm398, %v1773, %v1780
        %v1783 = vshrl.u32 %v1620, 16
        %v1785 = vrot.slane %v1783, 7
        %v1787 = vshrl.u32 %v1621, 16
        %v1789 = vrot.slane %v1787, 7
        %v1790 = vshll.u32 %v1621, 16
        %v1792 = vor.u32 %v1789, %v1790
        %v1793 = vsel %vm398, %v1785, %v1792
        %v1795 = vshrl.u32 %v1622, 16
        %v1797 = vrot.slane %v1795, 7
        %v1799 = vshrl.u32 %v1623, 16
        %v1801 = vrot.slane %v1799, 7
        %v1802 = vshll.u32 %v1623, 16
        %v1804 = vor.u32 %v1801, %v1802
        %v1805 = vsel %vm398, %v1797, %v1804
        %v1807 = vshrl.u32 %v1624, 16
        %v1809 = vrot.slane %v1807, 7
        %v1811 = vshrl.u32 %v1625, 16
        %v1813 = vrot.slane %v1811, 7
        %v1814 = vshll.u32 %v1625, 16
        %v1816 = vor.u32 %v1813, %v1814
        %v1817 = vsel %vm398, %v1809, %v1816
        %1818 = vrot.lane.b32.xlu0 %v1637, 96
        %v1819 = vpop.permute.xlu0 %1818
        %1820 = vrot.lane.b32.xlu0 %v1649, 96
        %v1821 = vpop.permute.xlu0 %1820
        %1822 = vrot.lane.b32.xlu0 %v1661, 96
        %v1823 = vpop.permute.xlu0 %1822
        %1824 = vrot.lane.b32.xlu0 %v1673, 96
        %v1825 = vpop.permute.xlu0 %1824
        %1826 = vrot.lane.b32.xlu0 %v1685, 96
        %v1827 = vpop.permute.xlu0 %1826
        %1828 = vrot.lane.b32.xlu0 %v1697, 96
        %v1829 = vpop.permute.xlu0 %1828
        %1830 = vrot.lane.b32.xlu0 %v1709, 96
        %v1831 = vpop.permute.xlu0 %1830
        %1832 = vrot.lane.b32.xlu0 %v1721, 96
        %v1833 = vpop.permute.xlu0 %1832
        %1834 = vrot.lane.b32.xlu0 %v1733, 96
        %v1835 = vpop.permute.xlu0 %1834
        %1836 = vrot.lane.b32.xlu0 %v1745, 96
        %v1837 = vpop.permute.xlu0 %1836
        %1838 = vrot.lane.b32.xlu0 %v1757, 96
        %v1839 = vpop.permute.xlu0 %1838
        %1840 = vrot.lane.b32.xlu0 %v1769, 96
        %v1841 = vpop.permute.xlu0 %1840
        %1842 = vrot.lane.b32.xlu0 %v1781, 96
        %v1843 = vpop.permute.xlu0 %1842
        %1844 = vrot.lane.b32.xlu0 %v1793, 96
        %v1845 = vpop.permute.xlu0 %1844
        %1846 = vrot.lane.b32.xlu0 %v1805, 96
        %v1847 = vpop.permute.xlu0 %1846
        %1848 = vrot.lane.b32.xlu0 %v1817, 96
        %v1849 = vpop.permute.xlu0 %1848
        %vm1866 = vcmask 1048320
        %1867 = vst.msk [vmem:[#allocation3] sm:$0xff] %vm1866, %v1819
        %1868 = vst.msk [vmem:[#allocation3 + $0x18] sm:$0xff] %vm1866, %v1821
        %1869 = vst.msk [vmem:[#allocation3 + $0x30] sm:$0xff] %vm1866, %v1823
        %1870 = vst.msk [vmem:[#allocation3 + $0x48] sm:$0xff] %vm1866, %v1825
        %1871 = vst.msk [vmem:[#allocation3 + $0x60] sm:$0xff] %vm1866, %v1827
        %1872 = vst.msk [vmem:[#allocation3 + $0x78] sm:$0xff] %vm1866, %v1829
        %1873 = vst.msk [vmem:[#allocation3 + $0x90] sm:$0xff] %vm1866, %v1831
        %1874 = vst.msk [vmem:[#allocation3 + $0xa8] sm:$0xff] %vm1866, %v1833
        %1875 = vst.msk [vmem:[#allocation3 + $0xc0] sm:$0xff] %vm1866, %v1835
        %1876 = vst.msk [vmem:[#allocation3 + $0xd8] sm:$0xff] %vm1866, %v1837
        %1877 = vst.msk [vmem:[#allocation3 + $0xf0] sm:$0xff] %vm1866, %v1839
        %1878 = vst.msk [vmem:[#allocation3 + $0x108] sm:$0xff] %vm1866, %v1841
        %1879 = vst.msk [vmem:[#allocation3 + $0x120] sm:$0xff] %vm1866, %v1843
        %1880 = vst.msk [vmem:[#allocation3 + $0x138] sm:$0xff] %vm1866, %v1845
        %1881 = vst.msk [vmem:[#allocation3 + $0x150] sm:$0xff] %vm1866, %v1847
        %1882 = vst.msk [vmem:[#allocation3 + $0x168] sm:$0xff] %vm1866, %v1849
        %v1883 = vld [vmem:[%s934 + $0x8] sm:$0xff]
        %v1884 = vld [vmem:[%s934 + $0x20] sm:$0xff]
        %v1885 = vld [vmem:[%s934 + $0x38] sm:$0xff]
        %v1886 = vld [vmem:[%s934 + $0x50] sm:$0xff]
        %v1887 = vld [vmem:[%s934 + $0x68] sm:$0xff]
        %v1888 = vld [vmem:[%s934 + $0x80] sm:$0xff]
        %v1889 = vld [vmem:[%s934 + $0x98] sm:$0xff]
        %v1890 = vld [vmem:[%s934 + $0xb0] sm:$0xff]
        %v1891 = vld [vmem:[%s934 + $0xc8] sm:$0xff]
        %v1892 = vld [vmem:[%s934 + $0xe0] sm:$0xff]
        %v1893 = vld [vmem:[%s934 + $0xf8] sm:$0xff]
        %v1894 = vld [vmem:[%s934 + $0x110] sm:$0xff]
        %v1895 = vld [vmem:[%s934 + $0x128] sm:$0xff]
        %v1896 = vld [vmem:[%s934 + $0x140] sm:$0xff]
        %v1897 = vld [vmem:[%s934 + $0x158] sm:$0xff]
        %v1898 = vld [vmem:[%s934 + $0x170] sm:$0xff]
        %1899 = vst.msk [vmem:[#allocation3 + $0x8] sm:$0xff] %vm332, %v1883
        %1900 = vst.msk [vmem:[#allocation3 + $0x20] sm:$0xff] %vm332, %v1884
        %1901 = vst.msk [vmem:[#allocation3 + $0x38] sm:$0xff] %vm332, %v1885
        %1902 = vst.msk [vmem:[#allocation3 + $0x50] sm:$0xff] %vm332, %v1886
        %1903 = vst.msk [vmem:[#allocation3 + $0x68] sm:$0xff] %vm332, %v1887
        %1904 = vst.msk [vmem:[#allocation3 + $0x80] sm:$0xff] %vm332, %v1888
        %1905 = vst.msk [vmem:[#allocation3 + $0x98] sm:$0xff] %vm332, %v1889
        %1906 = vst.msk [vmem:[#allocation3 + $0xb0] sm:$0xff] %vm332, %v1890
        %1907 = vst.msk [vmem:[#allocation3 + $0xc8] sm:$0xff] %vm332, %v1891
        %1908 = vst.msk [vmem:[#allocation3 + $0xe0] sm:$0xff] %vm332, %v1892
        %1909 = vst.msk [vmem:[#allocation3 + $0xf8] sm:$0xff] %vm332, %v1893
        %1910 = vst.msk [vmem:[#allocation3 + $0x110] sm:$0xff] %vm332, %v1894
        %1911 = vst.msk [vmem:[#allocation3 + $0x128] sm:$0xff] %vm332, %v1895
        %1912 = vst.msk [vmem:[#allocation3 + $0x140] sm:$0xff] %vm332, %v1896
        %1913 = vst.msk [vmem:[#allocation3 + $0x158] sm:$0xff] %vm332, %v1897
        %1914 = vst.msk [vmem:[#allocation3 + $0x170] sm:$0xff] %vm332, %v1898
        %v1915 = vld [vmem:[%s934 + $0x8] sm:$0xff]
        %v1916 = vld [vmem:[%s934 + $0x10] sm:$0x1]
        %v1917 = vld [vmem:[%s934 + $0x20] sm:$0xff]
        %v1918 = vld [vmem:[%s934 + $0x28] sm:$0x1]
        %v1919 = vld [vmem:[%s934 + $0x38] sm:$0xff]
        %v1920 = vld [vmem:[%s934 + $0x40] sm:$0x1]
        %v1921 = vld [vmem:[%s934 + $0x50] sm:$0xff]
        %v1922 = vld [vmem:[%s934 + $0x58] sm:$0x1]
        %v1923 = vld [vmem:[%s934 + $0x68] sm:$0xff]
        %v1924 = vld [vmem:[%s934 + $0x70] sm:$0x1]
        %v1925 = vld [vmem:[%s934 + $0x80] sm:$0xff]
        %v1926 = vld [vmem:[%s934 + $0x88] sm:$0x1]
        %v1927 = vld [vmem:[%s934 + $0x98] sm:$0xff]
        %v1928 = vld [vmem:[%s934 + $0xa0] sm:$0x1]
        %v1929 = vld [vmem:[%s934 + $0xb0] sm:$0xff]
        %v1930 = vld [vmem:[%s934 + $0xb8] sm:$0x1]
        %v1931 = vld [vmem:[%s934 + $0xc8] sm:$0xff]
        %v1932 = vld [vmem:[%s934 + $0xd0] sm:$0x1]
        %v1933 = vld [vmem:[%s934 + $0xe0] sm:$0xff]
        %v1934 = vld [vmem:[%s934 + $0xe8] sm:$0x1]
        %v1935 = vld [vmem:[%s934 + $0xf8] sm:$0xff]
        %v1936 = vld [vmem:[%s934 + $0x100] sm:$0x1]
        %v1937 = vld [vmem:[%s934 + $0x110] sm:$0xff]
        %v1938 = vld [vmem:[%s934 + $0x118] sm:$0x1]
        %v1939 = vld [vmem:[%s934 + $0x128] sm:$0xff]
        %v1940 = vld [vmem:[%s934 + $0x130] sm:$0x1]
        %v1941 = vld [vmem:[%s934 + $0x140] sm:$0xff]
        %v1942 = vld [vmem:[%s934 + $0x148] sm:$0x1]
        %v1943 = vld [vmem:[%s934 + $0x158] sm:$0xff]
        %v1944 = vld [vmem:[%s934 + $0x160] sm:$0x1]
        %v1945 = vld [vmem:[%s934 + $0x170] sm:$0xff]
        %v1946 = vld [vmem:[%s934 + $0x178] sm:$0x1]
        %v1948 = vshrl.u32 %v1915, 16
        %v1950 = vshll.u32 %v1915, 16
        %v1952 = vrot.slane %v1950, 1
        %v1953 = vor.u32 %v1948, %v1952
        %v1955 = vshll.u32 %v1916, 16
        %v1957 = vrot.slane %v1955, 1
        %v1958 = vsel %vm1336, %v1953, %v1957
        %v1960 = vshrl.u32 %v1917, 16
        %v1962 = vshll.u32 %v1917, 16
        %v1964 = vrot.slane %v1962, 1
        %v1965 = vor.u32 %v1960, %v1964
        %v1967 = vshll.u32 %v1918, 16
        %v1969 = vrot.slane %v1967, 1
        %v1970 = vsel %vm1336, %v1965, %v1969
        %v1972 = vshrl.u32 %v1919, 16
        %v1974 = vshll.u32 %v1919, 16
        %v1976 = vrot.slane %v1974, 1
        %v1977 = vor.u32 %v1972, %v1976
        %v1979 = vshll.u32 %v1920, 16
        %v1981 = vrot.slane %v1979, 1
        %v1982 = vsel %vm1336, %v1977, %v1981
        %v1984 = vshrl.u32 %v1921, 16
        %v1986 = vshll.u32 %v1921, 16
        %v1988 = vrot.slane %v1986, 1
        %v1989 = vor.u32 %v1984, %v1988
        %v1991 = vshll.u32 %v1922, 16
        %v1993 = vrot.slane %v1991, 1
        %v1994 = vsel %vm1336, %v1989, %v1993
        %v1996 = vshrl.u32 %v1923, 16
        %v1998 = vshll.u32 %v1923, 16
        %v2000 = vrot.slane %v1998, 1
        %v2001 = vor.u32 %v1996, %v2000
        %v2003 = vshll.u32 %v1924, 16
        %v2005 = vrot.slane %v2003, 1
        %v2006 = vsel %vm1336, %v2001, %v2005
        %v2008 = vshrl.u32 %v1925, 16
        %v2010 = vshll.u32 %v1925, 16
        %v2012 = vrot.slane %v2010, 1
        %v2013 = vor.u32 %v2008, %v2012
        %v2015 = vshll.u32 %v1926, 16
        %v2017 = vrot.slane %v2015, 1
        %v2018 = vsel %vm1336, %v2013, %v2017
        %v2020 = vshrl.u32 %v1927, 16
        %v2022 = vshll.u32 %v1927, 16
        %v2024 = vrot.slane %v2022, 1
        %v2025 = vor.u32 %v2020, %v2024
        %v2027 = vshll.u32 %v1928, 16
        %v2029 = vrot.slane %v2027, 1
        %v2030 = vsel %vm1336, %v2025, %v2029
        %v2032 = vshrl.u32 %v1929, 16
        %v2034 = vshll.u32 %v1929, 16
        %v2036 = vrot.slane %v2034, 1
        %v2037 = vor.u32 %v2032, %v2036
        %v2039 = vshll.u32 %v1930, 16
        %v2041 = vrot.slane %v2039, 1
        %v2042 = vsel %vm1336, %v2037, %v2041
        %v2044 = vshrl.u32 %v1931, 16
        %v2046 = vshll.u32 %v1931, 16
        %v2048 = vrot.slane %v2046, 1
        %v2049 = vor.u32 %v2044, %v2048
        %v2051 = vshll.u32 %v1932, 16
        %v2053 = vrot.slane %v2051, 1
        %v2054 = vsel %vm1336, %v2049, %v2053
        %v2056 = vshrl.u32 %v1933, 16
        %v2058 = vshll.u32 %v1933, 16
        %v2060 = vrot.slane %v2058, 1
        %v2061 = vor.u32 %v2056, %v2060
        %v2063 = vshll.u32 %v1934, 16
        %v2065 = vrot.slane %v2063, 1
        %v2066 = vsel %vm1336, %v2061, %v2065
        %v2068 = vshrl.u32 %v1935, 16
        %v2070 = vshll.u32 %v1935, 16
        %v2072 = vrot.slane %v2070, 1
        %v2073 = vor.u32 %v2068, %v2072
        %v2075 = vshll.u32 %v1936, 16
        %v2077 = vrot.slane %v2075, 1
        %v2078 = vsel %vm1336, %v2073, %v2077
        %v2080 = vshrl.u32 %v1937, 16
        %v2082 = vshll.u32 %v1937, 16
        %v2084 = vrot.slane %v2082, 1
        %v2085 = vor.u32 %v2080, %v2084
        %v2087 = vshll.u32 %v1938, 16
        %v2089 = vrot.slane %v2087, 1
        %v2090 = vsel %vm1336, %v2085, %v2089
        %v2092 = vshrl.u32 %v1939, 16
        %v2094 = vshll.u32 %v1939, 16
        %v2096 = vrot.slane %v2094, 1
        %v2097 = vor.u32 %v2092, %v2096
        %v2099 = vshll.u32 %v1940, 16
        %v2101 = vrot.slane %v2099, 1
        %v2102 = vsel %vm1336, %v2097, %v2101
        %v2104 = vshrl.u32 %v1941, 16
        %v2106 = vshll.u32 %v1941, 16
        %v2108 = vrot.slane %v2106, 1
        %v2109 = vor.u32 %v2104, %v2108
        %v2111 = vshll.u32 %v1942, 16
        %v2113 = vrot.slane %v2111, 1
        %v2114 = vsel %vm1336, %v2109, %v2113
        %v2116 = vshrl.u32 %v1943, 16
        %v2118 = vshll.u32 %v1943, 16
        %v2120 = vrot.slane %v2118, 1
        %v2121 = vor.u32 %v2116, %v2120
        %v2123 = vshll.u32 %v1944, 16
        %v2125 = vrot.slane %v2123, 1
        %v2126 = vsel %vm1336, %v2121, %v2125
        %v2128 = vshrl.u32 %v1945, 16
        %v2130 = vshll.u32 %v1945, 16
        %v2132 = vrot.slane %v2130, 1
        %v2133 = vor.u32 %v2128, %v2132
        %v2135 = vshll.u32 %v1946, 16
        %v2137 = vrot.slane %v2135, 1
        %v2138 = vsel %vm1336, %v2133, %v2137
        %2139 = vrot.lane.b32.xlu0 %v1958, 32
        %v2140 = vpop.permute.xlu0 %2139
        %2141 = vrot.lane.b32.xlu0 %v1970, 32
        %v2142 = vpop.permute.xlu0 %2141
        %2143 = vrot.lane.b32.xlu0 %v1982, 32
        %v2144 = vpop.permute.xlu0 %2143
        %2145 = vrot.lane.b32.xlu0 %v1994, 32
        %v2146 = vpop.permute.xlu0 %2145
        %2147 = vrot.lane.b32.xlu0 %v2006, 32
        %v2148 = vpop.permute.xlu0 %2147
        %2149 = vrot.lane.b32.xlu0 %v2018, 32
        %v2150 = vpop.permute.xlu0 %2149
        %2151 = vrot.lane.b32.xlu0 %v2030, 32
        %v2152 = vpop.permute.xlu0 %2151
        %2153 = vrot.lane.b32.xlu0 %v2042, 32
        %v2154 = vpop.permute.xlu0 %2153
        %2155 = vrot.lane.b32.xlu0 %v2054, 32
        %v2156 = vpop.permute.xlu0 %2155
        %2157 = vrot.lane.b32.xlu0 %v2066, 32
        %v2158 = vpop.permute.xlu0 %2157
        %2159 = vrot.lane.b32.xlu0 %v2078, 32
        %v2160 = vpop.permute.xlu0 %2159
        %2161 = vrot.lane.b32.xlu0 %v2090, 32
        %v2162 = vpop.permute.xlu0 %2161
        %2163 = vrot.lane.b32.xlu0 %v2102, 32
        %v2164 = vpop.permute.xlu0 %2163
        %2165 = vrot.lane.b32.xlu0 %v2114, 32
        %v2166 = vpop.permute.xlu0 %2165
        %2167 = vrot.lane.b32.xlu0 %v2126, 32
        %v2168 = vpop.permute.xlu0 %2167
        %2169 = vrot.lane.b32.xlu0 %v2138, 32
        %v2170 = vpop.permute.xlu0 %2169
        %2187 = vst.msk [vmem:[#allocation3 + $0x8] sm:$0xff] %vm1287, %v2140
        %2188 = vst.msk [vmem:[#allocation3 + $0x20] sm:$0xff] %vm1287, %v2142
        %2189 = vst.msk [vmem:[#allocation3 + $0x38] sm:$0xff] %vm1287, %v2144
        %2190 = vst.msk [vmem:[#allocation3 + $0x50] sm:$0xff] %vm1287, %v2146
        %2191 = vst.msk [vmem:[#allocation3 + $0x68] sm:$0xff] %vm1287, %v2148
        %2192 = vst.msk [vmem:[#allocation3 + $0x80] sm:$0xff] %vm1287, %v2150
        %2193 = vst.msk [vmem:[#allocation3 + $0x98] sm:$0xff] %vm1287, %v2152
        %2194 = vst.msk [vmem:[#allocation3 + $0xb0] sm:$0xff] %vm1287, %v2154
        %2195 = vst.msk [vmem:[#allocation3 + $0xc8] sm:$0xff] %vm1287, %v2156
        %2196 = vst.msk [vmem:[#allocation3 + $0xe0] sm:$0xff] %vm1287, %v2158
        %2197 = vst.msk [vmem:[#allocation3 + $0xf8] sm:$0xff] %vm1287, %v2160
        %2198 = vst.msk [vmem:[#allocation3 + $0x110] sm:$0xff] %vm1287, %v2162
        %2199 = vst.msk [vmem:[#allocation3 + $0x128] sm:$0xff] %vm1287, %v2164
        %2200 = vst.msk [vmem:[#allocation3 + $0x140] sm:$0xff] %vm1287, %v2166
        %2201 = vst.msk [vmem:[#allocation3 + $0x158] sm:$0xff] %vm1287, %v2168
        %2202 = vst.msk [vmem:[#allocation3 + $0x170] sm:$0xff] %vm1287, %v2170
        %s2203 = scalar_lea.vmem [#allocation2], 48
        %v2204 = vld [vmem:[%s2203] sm:$0x80]
        %v2205 = vld [vmem:[%s2203 + $0x8] sm:$0xff]
        %v2206 = vld [vmem:[%s2203 + $0x18] sm:$0x80]
        %v2207 = vld [vmem:[%s2203 + $0x20] sm:$0xff]
        %v2208 = vld [vmem:[%s2203 + $0x30] sm:$0x80]
        %v2209 = vld [vmem:[%s2203 + $0x38] sm:$0xff]
        %v2210 = vld [vmem:[%s2203 + $0x48] sm:$0x80]
        %v2211 = vld [vmem:[%s2203 + $0x50] sm:$0xff]
        %v2212 = vld [vmem:[%s2203 + $0x60] sm:$0x80]
        %v2213 = vld [vmem:[%s2203 + $0x68] sm:$0xff]
        %v2214 = vld [vmem:[%s2203 + $0x78] sm:$0x80]
        %v2215 = vld [vmem:[%s2203 + $0x80] sm:$0xff]
        %v2216 = vld [vmem:[%s2203 + $0x90] sm:$0x80]
        %v2217 = vld [vmem:[%s2203 + $0x98] sm:$0xff]
        %v2218 = vld [vmem:[%s2203 + $0xa8] sm:$0x80]
        %v2219 = vld [vmem:[%s2203 + $0xb0] sm:$0xff]
        %v2220 = vld [vmem:[%s2203 + $0xc0] sm:$0x80]
        %v2221 = vld [vmem:[%s2203 + $0xc8] sm:$0xff]
        %v2222 = vld [vmem:[%s2203 + $0xd8] sm:$0x80]
        %v2223 = vld [vmem:[%s2203 + $0xe0] sm:$0xff]
        %v2224 = vld [vmem:[%s2203 + $0xf0] sm:$0x80]
        %v2225 = vld [vmem:[%s2203 + $0xf8] sm:$0xff]
        %v2226 = vld [vmem:[%s2203 + $0x108] sm:$0x80]
        %v2227 = vld [vmem:[%s2203 + $0x110] sm:$0xff]
        %v2228 = vld [vmem:[%s2203 + $0x120] sm:$0x80]
        %v2229 = vld [vmem:[%s2203 + $0x128] sm:$0xff]
        %v2230 = vld [vmem:[%s2203 + $0x138] sm:$0x80]
        %v2231 = vld [vmem:[%s2203 + $0x140] sm:$0xff]
        %v2232 = vld [vmem:[%s2203 + $0x150] sm:$0x80]
        %v2233 = vld [vmem:[%s2203 + $0x158] sm:$0xff]
        %v2234 = vld [vmem:[%s2203 + $0x168] sm:$0x80]
        %v2235 = vld [vmem:[%s2203 + $0x170] sm:$0xff]
        %v2237 = vshrl.u32 %v2204, 16
        %v2239 = vrot.slane %v2237, 7
        %v2241 = vshrl.u32 %v2205, 16
        %v2243 = vrot.slane %v2241, 7
        %v2244 = vshll.u32 %v2205, 16
        %v2246 = vor.u32 %v2243, %v2244
        %v2247 = vsel %vm398, %v2239, %v2246
        %v2249 = vshrl.u32 %v2206, 16
        %v2251 = vrot.slane %v2249, 7
        %v2253 = vshrl.u32 %v2207, 16
        %v2255 = vrot.slane %v2253, 7
        %v2256 = vshll.u32 %v2207, 16
        %v2258 = vor.u32 %v2255, %v2256
        %v2259 = vsel %vm398, %v2251, %v2258
        %v2261 = vshrl.u32 %v2208, 16
        %v2263 = vrot.slane %v2261, 7
        %v2265 = vshrl.u32 %v2209, 16
        %v2267 = vrot.slane %v2265, 7
        %v2268 = vshll.u32 %v2209, 16
        %v2270 = vor.u32 %v2267, %v2268
        %v2271 = vsel %vm398, %v2263, %v2270
        %v2273 = vshrl.u32 %v2210, 16
        %v2275 = vrot.slane %v2273, 7
        %v2277 = vshrl.u32 %v2211, 16
        %v2279 = vrot.slane %v2277, 7
        %v2280 = vshll.u32 %v2211, 16
        %v2282 = vor.u32 %v2279, %v2280
        %v2283 = vsel %vm398, %v2275, %v2282
        %v2285 = vshrl.u32 %v2212, 16
        %v2287 = vrot.slane %v2285, 7
        %v2289 = vshrl.u32 %v2213, 16
        %v2291 = vrot.slane %v2289, 7
        %v2292 = vshll.u32 %v2213, 16
        %v2294 = vor.u32 %v2291, %v2292
        %v2295 = vsel %vm398, %v2287, %v2294
        %v2297 = vshrl.u32 %v2214, 16
        %v2299 = vrot.slane %v2297, 7
        %v2301 = vshrl.u32 %v2215, 16
        %v2303 = vrot.slane %v2301, 7
        %v2304 = vshll.u32 %v2215, 16
        %v2306 = vor.u32 %v2303, %v2304
        %v2307 = vsel %vm398, %v2299, %v2306
        %v2309 = vshrl.u32 %v2216, 16
        %v2311 = vrot.slane %v2309, 7
        %v2313 = vshrl.u32 %v2217, 16
        %v2315 = vrot.slane %v2313, 7
        %v2316 = vshll.u32 %v2217, 16
        %v2318 = vor.u32 %v2315, %v2316
        %v2319 = vsel %vm398, %v2311, %v2318
        %v2321 = vshrl.u32 %v2218, 16
        %v2323 = vrot.slane %v2321, 7
        %v2325 = vshrl.u32 %v2219, 16
        %v2327 = vrot.slane %v2325, 7
        %v2328 = vshll.u32 %v2219, 16
        %v2330 = vor.u32 %v2327, %v2328
        %v2331 = vsel %vm398, %v2323, %v2330
        %v2333 = vshrl.u32 %v2220, 16
        %v2335 = vrot.slane %v2333, 7
        %v2337 = vshrl.u32 %v2221, 16
        %v2339 = vrot.slane %v2337, 7
        %v2340 = vshll.u32 %v2221, 16
        %v2342 = vor.u32 %v2339, %v2340
        %v2343 = vsel %vm398, %v2335, %v2342
        %v2345 = vshrl.u32 %v2222, 16
        %v2347 = vrot.slane %v2345, 7
        %v2349 = vshrl.u32 %v2223, 16
        %v2351 = vrot.slane %v2349, 7
        %v2352 = vshll.u32 %v2223, 16
        %v2354 = vor.u32 %v2351, %v2352
        %v2355 = vsel %vm398, %v2347, %v2354
        %v2357 = vshrl.u32 %v2224, 16
        %v2359 = vrot.slane %v2357, 7
        %v2361 = vshrl.u32 %v2225, 16
        %v2363 = vrot.slane %v2361, 7
        %v2364 = vshll.u32 %v2225, 16
        %v2366 = vor.u32 %v2363, %v2364
        %v2367 = vsel %vm398, %v2359, %v2366
        %v2369 = vshrl.u32 %v2226, 16
        %v2371 = vrot.slane %v2369, 7
        %v2373 = vshrl.u32 %v2227, 16
        %v2375 = vrot.slane %v2373, 7
        %v2376 = vshll.u32 %v2227, 16
        %v2378 = vor.u32 %v2375, %v2376
        %v2379 = vsel %vm398, %v2371, %v2378
        %v2381 = vshrl.u32 %v2228, 16
        %v2383 = vrot.slane %v2381, 7
        %v2385 = vshrl.u32 %v2229, 16
        %v2387 = vrot.slane %v2385, 7
        %v2388 = vshll.u32 %v2229, 16
        %v2390 = vor.u32 %v2387, %v2388
        %v2391 = vsel %vm398, %v2383, %v2390
        %v2393 = vshrl.u32 %v2230, 16
        %v2395 = vrot.slane %v2393, 7
        %v2397 = vshrl.u32 %v2231, 16
        %v2399 = vrot.slane %v2397, 7
        %v2400 = vshll.u32 %v2231, 16
        %v2402 = vor.u32 %v2399, %v2400
        %v2403 = vsel %vm398, %v2395, %v2402
        %v2405 = vshrl.u32 %v2232, 16
        %v2407 = vrot.slane %v2405, 7
        %v2409 = vshrl.u32 %v2233, 16
        %v2411 = vrot.slane %v2409, 7
        %v2412 = vshll.u32 %v2233, 16
        %v2414 = vor.u32 %v2411, %v2412
        %v2415 = vsel %vm398, %v2407, %v2414
        %v2417 = vshrl.u32 %v2234, 16
        %v2419 = vrot.slane %v2417, 7
        %v2421 = vshrl.u32 %v2235, 16
        %v2423 = vrot.slane %v2421, 7
        %v2424 = vshll.u32 %v2235, 16
        %v2426 = vor.u32 %v2423, %v2424
        %v2427 = vsel %vm398, %v2419, %v2426
        %2428 = vrot.lane.b32.xlu0 %v2247, 64
        %v2429 = vpop.permute.xlu0 %2428
        %2430 = vrot.lane.b32.xlu0 %v2259, 64
        %v2431 = vpop.permute.xlu0 %2430
        %2432 = vrot.lane.b32.xlu0 %v2271, 64
        %v2433 = vpop.permute.xlu0 %2432
        %2434 = vrot.lane.b32.xlu0 %v2283, 64
        %v2435 = vpop.permute.xlu0 %2434
        %2436 = vrot.lane.b32.xlu0 %v2295, 64
        %v2437 = vpop.permute.xlu0 %2436
        %2438 = vrot.lane.b32.xlu0 %v2307, 64
        %v2439 = vpop.permute.xlu0 %2438
        %2440 = vrot.lane.b32.xlu0 %v2319, 64
        %v2441 = vpop.permute.xlu0 %2440
        %2442 = vrot.lane.b32.xlu0 %v2331, 64
        %v2443 = vpop.permute.xlu0 %2442
        %2444 = vrot.lane.b32.xlu0 %v2343, 64
        %v2445 = vpop.permute.xlu0 %2444
        %2446 = vrot.lane.b32.xlu0 %v2355, 64
        %v2447 = vpop.permute.xlu0 %2446
        %2448 = vrot.lane.b32.xlu0 %v2367, 64
        %v2449 = vpop.permute.xlu0 %2448
        %2450 = vrot.lane.b32.xlu0 %v2379, 64
        %v2451 = vpop.permute.xlu0 %2450
        %2452 = vrot.lane.b32.xlu0 %v2391, 64
        %v2453 = vpop.permute.xlu0 %2452
        %2454 = vrot.lane.b32.xlu0 %v2403, 64
        %v2455 = vpop.permute.xlu0 %2454
        %2456 = vrot.lane.b32.xlu0 %v2415, 64
        %v2457 = vpop.permute.xlu0 %2456
        %2458 = vrot.lane.b32.xlu0 %v2427, 64
        %v2459 = vpop.permute.xlu0 %2458
        %2476 = vst.msk [vmem:[#allocation3 + $0x8] sm:$0xff] %vm1577, %v2429
        %2477 = vst.msk [vmem:[#allocation3 + $0x20] sm:$0xff] %vm1577, %v2431
        %2478 = vst.msk [vmem:[#allocation3 + $0x38] sm:$0xff] %vm1577, %v2433
        %2479 = vst.msk [vmem:[#allocation3 + $0x50] sm:$0xff] %vm1577, %v2435
        %2480 = vst.msk [vmem:[#allocation3 + $0x68] sm:$0xff] %vm1577, %v2437
        %2481 = vst.msk [vmem:[#allocation3 + $0x80] sm:$0xff] %vm1577, %v2439
        %2482 = vst.msk [vmem:[#allocation3 + $0x98] sm:$0xff] %vm1577, %v2441
        %2483 = vst.msk [vmem:[#allocation3 + $0xb0] sm:$0xff] %vm1577, %v2443
        %2484 = vst.msk [vmem:[#allocation3 + $0xc8] sm:$0xff] %vm1577, %v2445
        %2485 = vst.msk [vmem:[#allocation3 + $0xe0] sm:$0xff] %vm1577, %v2447
        %2486 = vst.msk [vmem:[#allocation3 + $0xf8] sm:$0xff] %vm1577, %v2449
        %2487 = vst.msk [vmem:[#allocation3 + $0x110] sm:$0xff] %vm1577, %v2451
        %2488 = vst.msk [vmem:[#allocation3 + $0x128] sm:$0xff] %vm1577, %v2453
        %2489 = vst.msk [vmem:[#allocation3 + $0x140] sm:$0xff] %vm1577, %v2455
        %2490 = vst.msk [vmem:[#allocation3 + $0x158] sm:$0xff] %vm1577, %v2457
        %2491 = vst.msk [vmem:[#allocation3 + $0x170] sm:$0xff] %vm1577, %v2459
        %v2492 = vld [vmem:[%s2203 + $0x8] sm:$0xff]
        %v2493 = vld [vmem:[%s2203 + $0x20] sm:$0xff]
        %v2494 = vld [vmem:[%s2203 + $0x38] sm:$0xff]
        %v2495 = vld [vmem:[%s2203 + $0x50] sm:$0xff]
        %v2496 = vld [vmem:[%s2203 + $0x68] sm:$0xff]
        %v2497 = vld [vmem:[%s2203 + $0x80] sm:$0xff]
        %v2498 = vld [vmem:[%s2203 + $0x98] sm:$0xff]
        %v2499 = vld [vmem:[%s2203 + $0xb0] sm:$0xff]
        %v2500 = vld [vmem:[%s2203 + $0xc8] sm:$0xff]
        %v2501 = vld [vmem:[%s2203 + $0xe0] sm:$0xff]
        %v2502 = vld [vmem:[%s2203 + $0xf8] sm:$0xff]
        %v2503 = vld [vmem:[%s2203 + $0x110] sm:$0xff]
        %v2504 = vld [vmem:[%s2203 + $0x128] sm:$0xff]
        %v2505 = vld [vmem:[%s2203 + $0x140] sm:$0xff]
        %v2506 = vld [vmem:[%s2203 + $0x158] sm:$0xff]
        %v2507 = vld [vmem:[%s2203 + $0x170] sm:$0xff]
        %2524 = vrot.lane.b32.xlu0 %v2492, 96
        %v2525 = vpop.permute.xlu0 %2524
        %2526 = vrot.lane.b32.xlu0 %v2493, 96
        %v2527 = vpop.permute.xlu0 %2526
        %2528 = vrot.lane.b32.xlu0 %v2494, 96
        %v2529 = vpop.permute.xlu0 %2528
        %2530 = vrot.lane.b32.xlu0 %v2495, 96
        %v2531 = vpop.permute.xlu0 %2530
        %2532 = vrot.lane.b32.xlu0 %v2496, 96
        %v2533 = vpop.permute.xlu0 %2532
        %2534 = vrot.lane.b32.xlu0 %v2497, 96
        %v2535 = vpop.permute.xlu0 %2534
        %2536 = vrot.lane.b32.xlu0 %v2498, 96
        %v2537 = vpop.permute.xlu0 %2536
        %2538 = vrot.lane.b32.xlu0 %v2499, 96
        %v2539 = vpop.permute.xlu0 %2538
        %2540 = vrot.lane.b32.xlu0 %v2500, 96
        %v2541 = vpop.permute.xlu0 %2540
        %2542 = vrot.lane.b32.xlu0 %v2501, 96
        %v2543 = vpop.permute.xlu0 %2542
        %2544 = vrot.lane.b32.xlu0 %v2502, 96
        %v2545 = vpop.permute.xlu0 %2544
        %2546 = vrot.lane.b32.xlu0 %v2503, 96
        %v2547 = vpop.permute.xlu0 %2546
        %2548 = vrot.lane.b32.xlu0 %v2504, 96
        %v2549 = vpop.permute.xlu0 %2548
        %2550 = vrot.lane.b32.xlu0 %v2505, 96
        %v2551 = vpop.permute.xlu0 %2550
        %2552 = vrot.lane.b32.xlu0 %v2506, 96
        %v2553 = vpop.permute.xlu0 %2552
        %2554 = vrot.lane.b32.xlu0 %v2507, 96
        %v2555 = vpop.permute.xlu0 %2554
        %2572 = vst.msk [vmem:[#allocation3 + $0x8] sm:$0xff] %vm1866, %v2525
        %2573 = vst.msk [vmem:[#allocation3 + $0x20] sm:$0xff] %vm1866, %v2527
        %2574 = vst.msk [vmem:[#allocation3 + $0x38] sm:$0xff] %vm1866, %v2529
        %2575 = vst.msk [vmem:[#allocation3 + $0x50] sm:$0xff] %vm1866, %v2531
        %2576 = vst.msk [vmem:[#allocation3 + $0x68] sm:$0xff] %vm1866, %v2533
        %2577 = vst.msk [vmem:[#allocation3 + $0x80] sm:$0xff] %vm1866, %v2535
        %2578 = vst.msk [vmem:[#allocation3 + $0x98] sm:$0xff] %vm1866, %v2537
        %2579 = vst.msk [vmem:[#allocation3 + $0xb0] sm:$0xff] %vm1866, %v2539
        %2580 = vst.msk [vmem:[#allocation3 + $0xc8] sm:$0xff] %vm1866, %v2541
        %2581 = vst.msk [vmem:[#allocation3 + $0xe0] sm:$0xff] %vm1866, %v2543
        %2582 = vst.msk [vmem:[#allocation3 + $0xf8] sm:$0xff] %vm1866, %v2545
        %2583 = vst.msk [vmem:[#allocation3 + $0x110] sm:$0xff] %vm1866, %v2547
        %2584 = vst.msk [vmem:[#allocation3 + $0x128] sm:$0xff] %vm1866, %v2549
        %2585 = vst.msk [vmem:[#allocation3 + $0x140] sm:$0xff] %vm1866, %v2551
        %2586 = vst.msk [vmem:[#allocation3 + $0x158] sm:$0xff] %vm1866, %v2553
        %2587 = vst.msk [vmem:[#allocation3 + $0x170] sm:$0xff] %vm1866, %v2555
        %v2588 = vld [vmem:[%s2203 + $0x8] sm:$0xff]
        %v2589 = vld [vmem:[%s2203 + $0x10] sm:$0x1]
        %v2590 = vld [vmem:[%s2203 + $0x20] sm:$0xff]
        %v2591 = vld [vmem:[%s2203 + $0x28] sm:$0x1]
        %v2592 = vld [vmem:[%s2203 + $0x38] sm:$0xff]
        %v2593 = vld [vmem:[%s2203 + $0x40] sm:$0x1]
        %v2594 = vld [vmem:[%s2203 + $0x50] sm:$0xff]
        %v2595 = vld [vmem:[%s2203 + $0x58] sm:$0x1]
        %v2596 = vld [vmem:[%s2203 + $0x68] sm:$0xff]
        %v2597 = vld [vmem:[%s2203 + $0x70] sm:$0x1]
        %v2598 = vld [vmem:[%s2203 + $0x80] sm:$0xff]
        %v2599 = vld [vmem:[%s2203 + $0x88] sm:$0x1]
        %v2600 = vld [vmem:[%s2203 + $0x98] sm:$0xff]
        %v2601 = vld [vmem:[%s2203 + $0xa0] sm:$0x1]
        %v2602 = vld [vmem:[%s2203 + $0xb0] sm:$0xff]
        %v2603 = vld [vmem:[%s2203 + $0xb8] sm:$0x1]
        %v2604 = vld [vmem:[%s2203 + $0xc8] sm:$0xff]
        %v2605 = vld [vmem:[%s2203 + $0xd0] sm:$0x1]
        %v2606 = vld [vmem:[%s2203 + $0xe0] sm:$0xff]
        %v2607 = vld [vmem:[%s2203 + $0xe8] sm:$0x1]
        %v2608 = vld [vmem:[%s2203 + $0xf8] sm:$0xff]
        %v2609 = vld [vmem:[%s2203 + $0x100] sm:$0x1]
        %v2610 = vld [vmem:[%s2203 + $0x110] sm:$0xff]
        %v2611 = vld [vmem:[%s2203 + $0x118] sm:$0x1]
        %v2612 = vld [vmem:[%s2203 + $0x128] sm:$0xff]
        %v2613 = vld [vmem:[%s2203 + $0x130] sm:$0x1]
        %v2614 = vld [vmem:[%s2203 + $0x140] sm:$0xff]
        %v2615 = vld [vmem:[%s2203 + $0x148] sm:$0x1]
        %v2616 = vld [vmem:[%s2203 + $0x158] sm:$0xff]
        %v2617 = vld [vmem:[%s2203 + $0x160] sm:$0x1]
        %v2618 = vld [vmem:[%s2203 + $0x170] sm:$0xff]
        %v2619 = vld [vmem:[%s2203 + $0x178] sm:$0x1]
        %v2621 = vshrl.u32 %v2588, 16
        %v2623 = vshll.u32 %v2588, 16
        %v2625 = vrot.slane %v2623, 1
        %v2626 = vor.u32 %v2621, %v2625
        %v2628 = vshll.u32 %v2589, 16
        %v2630 = vrot.slane %v2628, 1
        %v2631 = vsel %vm1336, %v2626, %v2630
        %v2633 = vshrl.u32 %v2590, 16
        %v2635 = vshll.u32 %v2590, 16
        %v2637 = vrot.slane %v2635, 1
        %v2638 = vor.u32 %v2633, %v2637
        %v2640 = vshll.u32 %v2591, 16
        %v2642 = vrot.slane %v2640, 1
        %v2643 = vsel %vm1336, %v2638, %v2642
        %v2645 = vshrl.u32 %v2592, 16
        %v2647 = vshll.u32 %v2592, 16
        %v2649 = vrot.slane %v2647, 1
        %v2650 = vor.u32 %v2645, %v2649
        %v2652 = vshll.u32 %v2593, 16
        %v2654 = vrot.slane %v2652, 1
        %v2655 = vsel %vm1336, %v2650, %v2654
        %v2657 = vshrl.u32 %v2594, 16
        %v2659 = vshll.u32 %v2594, 16
        %v2661 = vrot.slane %v2659, 1
        %v2662 = vor.u32 %v2657, %v2661
        %v2664 = vshll.u32 %v2595, 16
        %v2666 = vrot.slane %v2664, 1
        %v2667 = vsel %vm1336, %v2662, %v2666
        %v2669 = vshrl.u32 %v2596, 16
        %v2671 = vshll.u32 %v2596, 16
        %v2673 = vrot.slane %v2671, 1
        %v2674 = vor.u32 %v2669, %v2673
        %v2676 = vshll.u32 %v2597, 16
        %v2678 = vrot.slane %v2676, 1
        %v2679 = vsel %vm1336, %v2674, %v2678
        %v2681 = vshrl.u32 %v2598, 16
        %v2683 = vshll.u32 %v2598, 16
        %v2685 = vrot.slane %v2683, 1
        %v2686 = vor.u32 %v2681, %v2685
        %v2688 = vshll.u32 %v2599, 16
        %v2690 = vrot.slane %v2688, 1
        %v2691 = vsel %vm1336, %v2686, %v2690
        %v2693 = vshrl.u32 %v2600, 16
        %v2695 = vshll.u32 %v2600, 16
        %v2697 = vrot.slane %v2695, 1
        %v2698 = vor.u32 %v2693, %v2697
        %v2700 = vshll.u32 %v2601, 16
        %v2702 = vrot.slane %v2700, 1
        %v2703 = vsel %vm1336, %v2698, %v2702
        %v2705 = vshrl.u32 %v2602, 16
        %v2707 = vshll.u32 %v2602, 16
        %v2709 = vrot.slane %v2707, 1
        %v2710 = vor.u32 %v2705, %v2709
        %v2712 = vshll.u32 %v2603, 16
        %v2714 = vrot.slane %v2712, 1
        %v2715 = vsel %vm1336, %v2710, %v2714
        %v2717 = vshrl.u32 %v2604, 16
        %v2719 = vshll.u32 %v2604, 16
        %v2721 = vrot.slane %v2719, 1
        %v2722 = vor.u32 %v2717, %v2721
        %v2724 = vshll.u32 %v2605, 16
        %v2726 = vrot.slane %v2724, 1
        %v2727 = vsel %vm1336, %v2722, %v2726
        %v2729 = vshrl.u32 %v2606, 16
        %v2731 = vshll.u32 %v2606, 16
        %v2733 = vrot.slane %v2731, 1
        %v2734 = vor.u32 %v2729, %v2733
        %v2736 = vshll.u32 %v2607, 16
        %v2738 = vrot.slane %v2736, 1
        %v2739 = vsel %vm1336, %v2734, %v2738
        %v2741 = vshrl.u32 %v2608, 16
        %v2743 = vshll.u32 %v2608, 16
        %v2745 = vrot.slane %v2743, 1
        %v2746 = vor.u32 %v2741, %v2745
        %v2748 = vshll.u32 %v2609, 16
        %v2750 = vrot.slane %v2748, 1
        %v2751 = vsel %vm1336, %v2746, %v2750
        %v2753 = vshrl.u32 %v2610, 16
        %v2755 = vshll.u32 %v2610, 16
        %v2757 = vrot.slane %v2755, 1
        %v2758 = vor.u32 %v2753, %v2757
        %v2760 = vshll.u32 %v2611, 16
        %v2762 = vrot.slane %v2760, 1
        %v2763 = vsel %vm1336, %v2758, %v2762
        %v2765 = vshrl.u32 %v2612, 16
        %v2767 = vshll.u32 %v2612, 16
        %v2769 = vrot.slane %v2767, 1
        %v2770 = vor.u32 %v2765, %v2769
        %v2772 = vshll.u32 %v2613, 16
        %v2774 = vrot.slane %v2772, 1
        %v2775 = vsel %vm1336, %v2770, %v2774
        %v2777 = vshrl.u32 %v2614, 16
        %v2779 = vshll.u32 %v2614, 16
        %v2781 = vrot.slane %v2779, 1
        %v2782 = vor.u32 %v2777, %v2781
        %v2784 = vshll.u32 %v2615, 16
        %v2786 = vrot.slane %v2784, 1
        %v2787 = vsel %vm1336, %v2782, %v2786
        %v2789 = vshrl.u32 %v2616, 16
        %v2791 = vshll.u32 %v2616, 16
        %v2793 = vrot.slane %v2791, 1
        %v2794 = vor.u32 %v2789, %v2793
        %v2796 = vshll.u32 %v2617, 16
        %v2798 = vrot.slane %v2796, 1
        %v2799 = vsel %vm1336, %v2794, %v2798
        %v2801 = vshrl.u32 %v2618, 16
        %v2803 = vshll.u32 %v2618, 16
        %v2805 = vrot.slane %v2803, 1
        %v2806 = vor.u32 %v2801, %v2805
        %v2808 = vshll.u32 %v2619, 16
        %v2810 = vrot.slane %v2808, 1
        %v2811 = vsel %vm1336, %v2806, %v2810
        %2828 = vst.msk [vmem:[#allocation3 + $0x10] sm:$0xff] %vm332, %v2631
        %2829 = vst.msk [vmem:[#allocation3 + $0x28] sm:$0xff] %vm332, %v2643
        %2830 = vst.msk [vmem:[#allocation3 + $0x40] sm:$0xff] %vm332, %v2655
        %2831 = vst.msk [vmem:[#allocation3 + $0x58] sm:$0xff] %vm332, %v2667
        %2832 = vst.msk [vmem:[#allocation3 + $0x70] sm:$0xff] %vm332, %v2679
        %2833 = vst.msk [vmem:[#allocation3 + $0x88] sm:$0xff] %vm332, %v2691
        %2834 = vst.msk [vmem:[#allocation3 + $0xa0] sm:$0xff] %vm332, %v2703
        %2835 = vst.msk [vmem:[#allocation3 + $0xb8] sm:$0xff] %vm332, %v2715
        %2836 = vst.msk [vmem:[#allocation3 + $0xd0] sm:$0xff] %vm332, %v2727
        %2837 = vst.msk [vmem:[#allocation3 + $0xe8] sm:$0xff] %vm332, %v2739
        %2838 = vst.msk [vmem:[#allocation3 + $0x100] sm:$0xff] %vm332, %v2751
        %2839 = vst.msk [vmem:[#allocation3 + $0x118] sm:$0xff] %vm332, %v2763
        %2840 = vst.msk [vmem:[#allocation3 + $0x130] sm:$0xff] %vm332, %v2775
        %2841 = vst.msk [vmem:[#allocation3 + $0x148] sm:$0xff] %vm332, %v2787
        %2842 = vst.msk [vmem:[#allocation3 + $0x160] sm:$0xff] %vm332, %v2799
        %2843 = vst.msk [vmem:[#allocation3 + $0x178] sm:$0xff] %vm332, %v2811
        %v2844 = vld [vmem:[#allocation3] sm:$0xff]
        %v2845 = vld [vmem:[#allocation3 + $0x8] sm:$0xff]
        %v2846 = vld [vmem:[#allocation3 + $0x10] sm:$0xff]
        %v2847 = vld [vmem:[#allocation3 + $0x18] sm:$0xff]
        %v2848 = vld [vmem:[#allocation3 + $0x20] sm:$0xff]
        %v2849 = vld [vmem:[#allocation3 + $0x28] sm:$0xff]
        %v2850 = vld [vmem:[#allocation3 + $0x30] sm:$0xff]
        %v2851 = vld [vmem:[#allocation3 + $0x38] sm:$0xff]
        %v2852 = vld [vmem:[#allocation3 + $0x40] sm:$0xff]
        %v2853 = vld [vmem:[#allocation3 + $0x48] sm:$0xff]
        %v2854 = vld [vmem:[#allocation3 + $0x50] sm:$0xff]
        %v2855 = vld [vmem:[#allocation3 + $0x58] sm:$0xff]
        %v2856 = vld [vmem:[#allocation3 + $0x60] sm:$0xff]
        %v2857 = vld [vmem:[#allocation3 + $0x68] sm:$0xff]
        %v2858 = vld [vmem:[#allocation3 + $0x70] sm:$0xff]
        %v2859 = vld [vmem:[#allocation3 + $0x78] sm:$0xff]
        %v2860 = vld [vmem:[#allocation3 + $0x80] sm:$0xff]
        %v2861 = vld [vmem:[#allocation3 + $0x88] sm:$0xff]
        %v2862 = vld [vmem:[#allocation3 + $0x90] sm:$0xff]
        %v2863 = vld [vmem:[#allocation3 + $0x98] sm:$0xff]
        %v2864 = vld [vmem:[#allocation3 + $0xa0] sm:$0xff]
        %v2865 = vld [vmem:[#allocation3 + $0xa8] sm:$0xff]
        %v2866 = vld [vmem:[#allocation3 + $0xb0] sm:$0xff]
        %v2867 = vld [vmem:[#allocation3 + $0xb8] sm:$0xff]
        %v2868 = vld [vmem:[#allocation3 + $0xc0] sm:$0xff]
        %v2869 = vld [vmem:[#allocation3 + $0xc8] sm:$0xff]
        %v2870 = vld [vmem:[#allocation3 + $0xd0] sm:$0xff]
        %v2871 = vld [vmem:[#allocation3 + $0xd8] sm:$0xff]
        %v2872 = vld [vmem:[#allocation3 + $0xe0] sm:$0xff]
        %v2873 = vld [vmem:[#allocation3 + $0xe8] sm:$0xff]
        %v2874 = vld [vmem:[#allocation3 + $0xf0] sm:$0xff]
        %v2875 = vld [vmem:[#allocation3 + $0xf8] sm:$0xff]
        %v2876 = vld [vmem:[#allocation3 + $0x100] sm:$0xff]
        %v2877 = vld [vmem:[#allocation3 + $0x108] sm:$0xff]
        %v2878 = vld [vmem:[#allocation3 + $0x110] sm:$0xff]
        %v2879 = vld [vmem:[#allocation3 + $0x118] sm:$0xff]
        %v2880 = vld [vmem:[#allocation3 + $0x120] sm:$0xff]
        %v2881 = vld [vmem:[#allocation3 + $0x128] sm:$0xff]
        %v2882 = vld [vmem:[#allocation3 + $0x130] sm:$0xff]
        %v2883 = vld [vmem:[#allocation3 + $0x138] sm:$0xff]
        %v2884 = vld [vmem:[#allocation3 + $0x140] sm:$0xff]
        %v2885 = vld [vmem:[#allocation3 + $0x148] sm:$0xff]
        %v2886 = vld [vmem:[#allocation3 + $0x150] sm:$0xff]
        %v2887 = vld [vmem:[#allocation3 + $0x158] sm:$0xff]
        %v2888 = vld [vmem:[#allocation3 + $0x160] sm:$0xff]
        %v2889 = vld [vmem:[#allocation3 + $0x168] sm:$0xff]
        %v2890 = vld [vmem:[#allocation3 + $0x170] sm:$0xff]
        %v2891 = vld [vmem:[#allocation3 + $0x178] sm:$0xff]
        %v2892 = vld [vmem:[%s4] sm:$0xf]
        %v2893 = vld [vmem:[%s4 + $0x4] sm:$0xf]
        %v2894 = vld [vmem:[%s4 + $0x8] sm:$0xf]
        %v2895 = vld [vmem:[%s4 + $0xc] sm:$0xf]
        %v2896 = vld [vmem:[%s4 + $0x10] sm:$0xf]
        %v2897 = vld [vmem:[%s4 + $0x14] sm:$0xf]
        %v2898 = vld [vmem:[%s4 + $0x18] sm:$0xf]
        %v2899 = vld [vmem:[%s4 + $0x1c] sm:$0xf]
        %v2900 = vld [vmem:[%s4 + $0x20] sm:$0xf]
        %v2901 = vld [vmem:[%s4 + $0x24] sm:$0xf]
        %v2902 = vld [vmem:[%s4 + $0x28] sm:$0xf]
        %v2903 = vld [vmem:[%s4 + $0x2c] sm:$0xf]
        %v2904 = vld [vmem:[%s4 + $0x30] sm:$0xf]
        %v2905 = vld [vmem:[%s4 + $0x34] sm:$0xf]
        %v2906 = vld [vmem:[%s4 + $0x38] sm:$0xf]
        %v2907 = vld [vmem:[%s4 + $0x3c] sm:$0xf]
        %v2908 = vld [vmem:[%s4 + $0x40] sm:$0xf]
        %v2909 = vld [vmem:[%s4 + $0x44] sm:$0xf]
        %v2910 = vld [vmem:[%s4 + $0x48] sm:$0xf]
        %v2911 = vld [vmem:[%s4 + $0x4c] sm:$0xf]
        %v2912 = vld [vmem:[%s4 + $0x50] sm:$0xf]
        %v2913 = vld [vmem:[%s4 + $0x54] sm:$0xf]
        %v2914 = vld [vmem:[%s4 + $0x58] sm:$0xf]
        %v2915 = vld [vmem:[%s4 + $0x5c] sm:$0xf]
        %v2916 = vld [vmem:[%s4 + $0x60] sm:$0xf]
        %v2917 = vld [vmem:[%s4 + $0x64] sm:$0xf]
        %v2918 = vld [vmem:[%s4 + $0x68] sm:$0xf]
        %v2919 = vld [vmem:[%s4 + $0x6c] sm:$0xf]
        %v2920 = vld [vmem:[%s4 + $0x70] sm:$0xf]
        %v2921 = vld [vmem:[%s4 + $0x74] sm:$0xf]
        %v2922 = vld [vmem:[%s4 + $0x78] sm:$0xf]
        %v2923 = vld [vmem:[%s4 + $0x7c] sm:$0xf]
        %v2924 = vld [vmem:[%s4 + $0x80] sm:$0xf]
        %v2925 = vld [vmem:[%s4 + $0x84] sm:$0xf]
        %v2926 = vld [vmem:[%s4 + $0x88] sm:$0xf]
        %v2927 = vld [vmem:[%s4 + $0x8c] sm:$0xf]
        %v2964 = vunpack.c.l.b16 %v2892
        %v2965 = vunpack.c.l.b16 %v2893
        %v2966 = vunpack.c.l.b16 %v2894
        %v2967 = vunpack.c.l.b16 %v2895
        %v2968 = vunpack.c.l.b16 %v2896
        %v2969 = vunpack.c.l.b16 %v2897
        %v2970 = vunpack.c.l.b16 %v2898
        %v2971 = vunpack.c.l.b16 %v2899
        %v2972 = vunpack.c.l.b16 %v2900
        %v2973 = vunpack.c.l.b16 %v2901
        %v2974 = vunpack.c.l.b16 %v2902
        %v2975 = vunpack.c.l.b16 %v2903
        %v2976 = vunpack.c.l.b16 %v2904
        %v2977 = vunpack.c.l.b16 %v2905
        %v2978 = vunpack.c.l.b16 %v2906
        %v2979 = vunpack.c.l.b16 %v2907
        %v2980 = vunpack.c.l.b16 %v2908
        %v2981 = vunpack.c.l.b16 %v2909
        %v2982 = vunpack.c.l.b16 %v2910
        %v2983 = vunpack.c.l.b16 %v2911
        %v2984 = vunpack.c.l.b16 %v2912
        %v2985 = vunpack.c.l.b16 %v2913
        %v2986 = vunpack.c.l.b16 %v2914
        %v2987 = vunpack.c.l.b16 %v2915
        %v2988 = vunpack.c.l.b16 %v2916
        %v2989 = vunpack.c.l.b16 %v2917
        %v2990 = vunpack.c.l.b16 %v2918
        %v2991 = vunpack.c.l.b16 %v2919
        %v2992 = vunpack.c.l.b16 %v2920
        %v2993 = vunpack.c.l.b16 %v2921
        %v2994 = vunpack.c.l.b16 %v2922
        %v2995 = vunpack.c.l.b16 %v2923
        %v2996 = vunpack.c.l.b16 %v2924
        %v2997 = vunpack.c.l.b16 %v2925
        %v2998 = vunpack.c.l.b16 %v2926
        %v2999 = vunpack.c.l.b16 %v2927
        %v3000 = vpack.c.b16 %v2965, %v2964
        %v3001 = vpack.c.b16 %v2967, %v2966
        %v3002 = vpack.c.b16 %v2969, %v2968
        %v3003 = vpack.c.b16 %v2971, %v2970
        %v3004 = vpack.c.b16 %v2973, %v2972
        %v3005 = vpack.c.b16 %v2975, %v2974
        %v3006 = vpack.c.b16 %v2977, %v2976
        %v3007 = vpack.c.b16 %v2979, %v2978
        %v3008 = vpack.c.b16 %v2981, %v2980
        %v3009 = vpack.c.b16 %v2983, %v2982
        %v3010 = vpack.c.b16 %v2985, %v2984
        %v3011 = vpack.c.b16 %v2987, %v2986
        %v3012 = vpack.c.b16 %v2989, %v2988
        %v3013 = vpack.c.b16 %v2991, %v2990
        %v3014 = vpack.c.b16 %v2993, %v2992
        %v3015 = vpack.c.b16 %v2995, %v2994
        %v3016 = vpack.c.b16 %v2997, %v2996
        %v3017 = vpack.c.b16 %v2999, %v2998
        %v3037 = vsel %vm332, %v2846, 0
        %v3040 = vsel %vm332, %v2849, 0
        %v3043 = vsel %vm332, %v2852, 0
        %v3046 = vsel %vm332, %v2855, 0
        %v3049 = vsel %vm332, %v2858, 0
        %v3052 = vsel %vm332, %v2861, 0
        %v3055 = vsel %vm332, %v2864, 0
        %v3058 = vsel %vm332, %v2867, 0
        %v3061 = vsel %vm332, %v2870, 0
        %v3064 = vsel %vm332, %v2873, 0
        %v3067 = vsel %vm332, %v2876, 0
        %v3070 = vsel %vm332, %v2879, 0
        %v3073 = vsel %vm332, %v2882, 0
        %v3076 = vsel %vm332, %v2885, 0
        %v3079 = vsel %vm332, %v2888, 0
        %v3082 = vsel %vm332, %v2891, 0
        %3084 = vmatprep.subr.bf16.mxu0 0
        %3085 = vmatpush1.bf16.msra.mxu0 %v3000
        %3086 = vmatprep.subr.bf16.mxu0 0
        %3087 = vmatpush1.bf16.msra.mxu0 %v3001
        %3088 = vmatprep.subr.bf16.mxu0 0
        %3089 = vmatpush1.bf16.msra.mxu0 %v3002
        %3090 = vmatprep.subr.bf16.mxu0 0
        %3091 = vmatpush1.bf16.msra.mxu0 %v3003
        %3092 = vmatprep.subr.bf16.mxu0 0
        %3093 = vmatpush1.bf16.msra.mxu0 %v3004
        %3094 = vmatprep.subr.bf16.mxu0 0
        %3095 = vmatpush1.bf16.msra.mxu0 %v3005
        %3096 = vmatprep.subr.bf16.mxu0 0
        %3097 = vmatpush1.bf16.msra.mxu0 %v3006
        %3098 = vmatprep.subr.bf16.mxu0 0
        %3099 = vmatpush1.bf16.msra.mxu0 %v3007
        %3100 = vmatprep.subr.bf16.mxu0 0
        %3101 = vmatpush1.bf16.msra.mxu0 %v3008
        %3102 = vmatprep.subr.bf16.mxu0 0
        %3103 = vmatpush1.bf16.msra.mxu0 %v3009
        %3104 = vmatprep.subr.bf16.mxu0 0
        %3105 = vmatpush1.bf16.msra.mxu0 %v3010
        %3106 = vmatprep.subr.bf16.mxu0 0
        %3107 = vmatpush1.bf16.msra.mxu0 %v3011
        %3108 = vmatprep.subr.bf16.mxu0 0
        %3109 = vmatpush1.bf16.msra.mxu0 %v3012
        %3110 = vmatprep.subr.bf16.mxu0 0
        %3111 = vmatpush1.bf16.msra.mxu0 %v3013
        %3112 = vmatprep.subr.bf16.mxu0 0
        %3113 = vmatpush1.bf16.msra.mxu0 %v3014
        %3114 = vmatprep.subr.bf16.mxu0 0
        %3115 = vmatpush1.bf16.msra.mxu0 %v3015
        %3116 = vmatprep.mubr.bf16.mxu0 %v2845
        %3117 = vmatmul.mubr.bf16.gmra.mrb[0].mxu0 %v2844
        %v3118 = vpop.f32.mrb[0].mxu0
        %v3119 = vadd.f32 0.0, %v3118
        %v3120 = vpop.f32.mrb[0].mxu0
        %v3121 = vpop.f32.mrb[0].mxu0
        %v3122 = vadd.f32 0.0, %v3121
        %v3123 = vpop.f32.mrb[0].mxu0
        %3124 = vmatprep.mubr.bf16.mxu0 %v2848
        %3125 = vmatmul.mubr.bf16.gmra.mrb[0].mxu0 %v2847
        %v3126 = vpop.f32.mrb[0].mxu0
        %v3127 = vadd.f32 0.0, %v3126
        %v3128 = vpop.f32.mrb[0].mxu0
        %v3129 = vpop.f32.mrb[0].mxu0
        %v3130 = vadd.f32 0.0, %v3129
        %v3131 = vpop.f32.mrb[0].mxu0
        %3132 = vmatprep.mubr.bf16.mxu0 %v2851
        %3133 = vmatmul.mubr.bf16.gmra.mrb[0].mxu0 %v2850
        %v3134 = vpop.f32.mrb[0].mxu0
        %v3135 = vadd.f32 0.0, %v3134
        %v3136 = vpop.f32.mrb[0].mxu0
        %v3137 = vpop.f32.mrb[0].mxu0
        %v3138 = vadd.f32 0.0, %v3137
        %v3139 = vpop.f32.mrb[0].mxu0
        %3140 = vmatprep.mubr.bf16.mxu0 %v2854
        %3141 = vmatmul.mubr.bf16.gmra.mrb[0].mxu0 %v2853
        %v3142 = vpop.f32.mrb[0].mxu0
        %v3143 = vadd.f32 0.0, %v3142
        %v3144 = vpop.f32.mrb[0].mxu0
        %v3145 = vpop.f32.mrb[0].mxu0
        %v3146 = vadd.f32 0.0, %v3145
        %v3147 = vpop.f32.mrb[0].mxu0
        %3148 = vmatprep.mubr.bf16.mxu0 %v2857
        %3149 = vmatmul.mubr.bf16.gmra.mrb[0].mxu0 %v2856
        %v3150 = vpop.f32.mrb[0].mxu0
        %v3151 = vadd.f32 0.0, %v3150
        %v3152 = vpop.f32.mrb[0].mxu0
        %v3153 = vpop.f32.mrb[0].mxu0
        %v3154 = vadd.f32 0.0, %v3153
        %v3155 = vpop.f32.mrb[0].mxu0
        %3156 = vmatprep.mubr.bf16.mxu0 %v2860
        %3157 = vmatmul.mubr.bf16.gmra.mrb[0].mxu0 %v2859
        %v3158 = vpop.f32.mrb[0].mxu0
        %v3159 = vadd.f32 0.0, %v3158
        %v3160 = vpop.f32.mrb[0].mxu0
        %v3161 = vpop.f32.mrb[0].mxu0
        %v3162 = vadd.f32 0.0, %v3161
        %v3163 = vpop.f32.mrb[0].mxu0
        %3164 = vmatprep.mubr.bf16.mxu0 %v2863
        %3165 = vmatmul.mubr.bf16.gmra.mrb[0].mxu0 %v2862
        %v3166 = vpop.f32.mrb[0].mxu0
        %v3167 = vadd.f32 0.0, %v3166
        %v3168 = vpop.f32.mrb[0].mxu0
        %v3169 = vpop.f32.mrb[0].mxu0
        %v3170 = vadd.f32 0.0, %v3169
        %v3171 = vpop.f32.mrb[0].mxu0
        %3172 = vmatprep.mubr.bf16.mxu0 %v2866
        %3173 = vmatmul.mubr.bf16.gmra.mrb[0].mxu0 %v2865
        %v3174 = vpop.f32.mrb[0].mxu0
        %v3175 = vadd.f32 0.0, %v3174
        %v3176 = vpop.f32.mrb[0].mxu0
        %v3177 = vpop.f32.mrb[0].mxu0
        %v3178 = vadd.f32 0.0, %v3177
        %v3179 = vpop.f32.mrb[0].mxu0
        %3180 = vmatprep.mubr.bf16.mxu0 %v2869
        %3181 = vmatmul.mubr.bf16.gmra.mrb[0].mxu0 %v2868
        %v3182 = vpop.f32.mrb[0].mxu0
        %v3183 = vadd.f32 0.0, %v3182
        %v3184 = vpop.f32.mrb[0].mxu0
        %v3185 = vpop.f32.mrb[0].mxu0
        %v3186 = vadd.f32 0.0, %v3185
        %v3187 = vpop.f32.mrb[0].mxu0
        %3188 = vmatprep.mubr.bf16.mxu0 %v2872
        %3189 = vmatmul.mubr.bf16.gmra.mrb[0].mxu0 %v2871
        %v3190 = vpop.f32.mrb[0].mxu0
        %v3191 = vadd.f32 0.0, %v3190
        %v3192 = vpop.f32.mrb[0].mxu0
        %v3193 = vpop.f32.mrb[0].mxu0
        %v3194 = vadd.f32 0.0, %v3193
        %v3195 = vpop.f32.mrb[0].mxu0
        %3196 = vmatprep.mubr.bf16.mxu0 %v2875
        %3197 = vmatmul.mubr.bf16.gmra.mrb[0].mxu0 %v2874
        %v3198 = vpop.f32.mrb[0].mxu0
        %v3199 = vadd.f32 0.0, %v3198
        %v3200 = vpop.f32.mrb[0].mxu0
        %v3201 = vpop.f32.mrb[0].mxu0
        %v3202 = vadd.f32 0.0, %v3201
        %v3203 = vpop.f32.mrb[0].mxu0
        %3204 = vmatprep.mubr.bf16.mxu0 %v2878
        %3205 = vmatmul.mubr.bf16.gmra.mrb[0].mxu0 %v2877
        %v3206 = vpop.f32.mrb[0].mxu0
        %v3207 = vadd.f32 0.0, %v3206
        %v3208 = vpop.f32.mrb[0].mxu0
        %v3209 = vpop.f32.mrb[0].mxu0
        %v3210 = vadd.f32 0.0, %v3209
        %v3211 = vpop.f32.mrb[0].mxu0
        %3212 = vmatprep.mubr.bf16.mxu0 %v2881
        %3213 = vmatmul.mubr.bf16.gmra.mrb[0].mxu0 %v2880
        %v3214 = vpop.f32.mrb[0].mxu0
        %v3215 = vadd.f32 0.0, %v3214
        %v3216 = vpop.f32.mrb[0].mxu0
        %v3217 = vpop.f32.mrb[0].mxu0
        %v3218 = vadd.f32 0.0, %v3217
        %v3219 = vpop.f32.mrb[0].mxu0
        %3220 = vmatprep.mubr.bf16.mxu0 %v2884
        %3221 = vmatmul.mubr.bf16.gmra.mrb[0].mxu0 %v2883
        %v3222 = vpop.f32.mrb[0].mxu0
        %v3223 = vadd.f32 0.0, %v3222
        %v3224 = vpop.f32.mrb[0].mxu0
        %v3225 = vpop.f32.mrb[0].mxu0
        %v3226 = vadd.f32 0.0, %v3225
        %v3227 = vpop.f32.mrb[0].mxu0
        %3228 = vmatprep.mubr.bf16.mxu0 %v2887
        %3229 = vmatmul.mubr.bf16.gmra.mrb[0].mxu0 %v2886
        %v3230 = vpop.f32.mrb[0].mxu0
        %v3231 = vadd.f32 0.0, %v3230
        %v3232 = vpop.f32.mrb[0].mxu0
        %v3233 = vpop.f32.mrb[0].mxu0
        %v3234 = vadd.f32 0.0, %v3233
        %v3235 = vpop.f32.mrb[0].mxu0
        %3236 = vmatprep.mubr.bf16.mxu0 %v2890
        %3237 = vmatmul.mubr.bf16.gmra.mrb[0].mxu0 %v2889
        %v3238 = vpop.f32.mrb[0].mxu0
        %v3239 = vadd.f32 0.0, %v3238
        %v3240 = vpop.f32.mrb[0].mxu0
        %v3241 = vpop.f32.mrb[0].mxu0
        %v3242 = vadd.f32 0.0, %v3241
        %v3243 = vpop.f32.mrb[0].mxu0
        %3244 = vdwg.mxu0
        %3245 = vmatprep.subr.bf16.mxu0 0
        %3246 = vmatpush1.bf16.msra.mxu0 %v3016
        %3247 = vmatprep.subr.bf16.mxu0 0
        %3248 = vmatpush1.bf16.msra.mxu0 %v3017
        %3249 = vmatprep.subr.bf16.mxu0 0
        %3250 = vmatpush1.bf16.msra.mxu0 0
        %3251 = vmatprep.subr.bf16.mxu0 0
        %3252 = vmatpush1.bf16.msra.mxu0 0
        %3253 = vmatprep.subr.bf16.mxu0 0
        %3254 = vmatpush1.bf16.msra.mxu0 0
        %3255 = vmatprep.subr.bf16.mxu0 0
        %3256 = vmatpush1.bf16.msra.mxu0 0
        %3257 = vmatprep.subr.bf16.mxu0 0
        %3258 = vmatpush1.bf16.msra.mxu0 0
        %3259 = vmatprep.subr.bf16.mxu0 0
        %3260 = vmatpush1.bf16.msra.mxu0 0
        %3261 = vmatprep.subr.bf16.mxu0 0
        %3262 = vmatpush1.bf16.msra.mxu0 0
        %3263 = vmatprep.subr.bf16.mxu0 0
        %3264 = vmatpush1.bf16.msra.mxu0 0
        %3265 = vmatprep.subr.bf16.mxu0 0
        %3266 = vmatpush1.bf16.msra.mxu0 0
        %3267 = vmatprep.subr.bf16.mxu0 0
        %3268 = vmatpush1.bf16.msra.mxu0 0
        %3269 = vmatprep.subr.bf16.mxu0 0
        %3270 = vmatpush1.bf16.msra.mxu0 0
        %3271 = vmatprep.subr.bf16.mxu0 0
        %3272 = vmatpush1.bf16.msra.mxu0 0
        %3273 = vmatprep.subr.bf16.mxu0 0
        %3274 = vmatpush1.bf16.msra.mxu0 0
        %3275 = vmatprep.subr.bf16.mxu0 0
        %3276 = vmatpush1.bf16.msra.mxu0 0
        %3277 = vmatprep.mubr.bf16.mxu0 0
        %3278 = vmatmul.mubr.bf16.gmra.mrb[0].mxu0 %v3037
        %v3279 = vpop.f32.mrb[0].mxu0
        %v3280 = vadd.f32 %v3119, %v3279
        %v3281 = vpop.f32.mrb[0].mxu0
        %v3282 = vpop.f32.mrb[0].mxu0
        %v3283 = vadd.f32 %v3122, %v3282
        %v3284 = vpop.f32.mrb[0].mxu0
        %3285 = vmatprep.mubr.bf16.mxu0 0
        %3286 = vmatmul.mubr.bf16.gmra.mrb[0].mxu0 %v3040
        %v3287 = vpop.f32.mrb[0].mxu0
        %v3288 = vadd.f32 %v3127, %v3287
        %v3289 = vpop.f32.mrb[0].mxu0
        %v3290 = vpop.f32.mrb[0].mxu0
        %v3291 = vadd.f32 %v3130, %v3290
        %v3292 = vpop.f32.mrb[0].mxu0
        %3293 = vmatprep.mubr.bf16.mxu0 0
        %3294 = vmatmul.mubr.bf16.gmra.mrb[0].mxu0 %v3043
        %v3295 = vpop.f32.mrb[0].mxu0
        %v3296 = vadd.f32 %v3135, %v3295
        %v3297 = vpop.f32.mrb[0].mxu0
        %v3298 = vpop.f32.mrb[0].mxu0
        %v3299 = vadd.f32 %v3138, %v3298
        %v3300 = vpop.f32.mrb[0].mxu0
        %3301 = vmatprep.mubr.bf16.mxu0 0
        %3302 = vmatmul.mubr.bf16.gmra.mrb[0].mxu0 %v3046
        %v3303 = vpop.f32.mrb[0].mxu0
        %v3304 = vadd.f32 %v3143, %v3303
        %v3305 = vpop.f32.mrb[0].mxu0
        %v3306 = vpop.f32.mrb[0].mxu0
        %v3307 = vadd.f32 %v3146, %v3306
        %v3308 = vpop.f32.mrb[0].mxu0
        %3309 = vmatprep.mubr.bf16.mxu0 0
        %3310 = vmatmul.mubr.bf16.gmra.mrb[0].mxu0 %v3049
        %v3311 = vpop.f32.mrb[0].mxu0
        %v3312 = vadd.f32 %v3151, %v3311
        %v3313 = vpop.f32.mrb[0].mxu0
        %v3314 = vpop.f32.mrb[0].mxu0
        %v3315 = vadd.f32 %v3154, %v3314
        %v3316 = vpop.f32.mrb[0].mxu0
        %3317 = vmatprep.mubr.bf16.mxu0 0
        %3318 = vmatmul.mubr.bf16.gmra.mrb[0].mxu0 %v3052
        %v3319 = vpop.f32.mrb[0].mxu0
        %v3320 = vadd.f32 %v3159, %v3319
        %v3321 = vpop.f32.mrb[0].mxu0
        %v3322 = vpop.f32.mrb[0].mxu0
        %v3323 = vadd.f32 %v3162, %v3322
        %v3324 = vpop.f32.mrb[0].mxu0
        %3325 = vmatprep.mubr.bf16.mxu0 0
        %3326 = vmatmul.mubr.bf16.gmra.mrb[0].mxu0 %v3055
        %v3327 = vpop.f32.mrb[0].mxu0
        %v3328 = vadd.f32 %v3167, %v3327
        %v3329 = vpop.f32.mrb[0].mxu0
        %v3330 = vpop.f32.mrb[0].mxu0
        %v3331 = vadd.f32 %v3170, %v3330
        %v3332 = vpop.f32.mrb[0].mxu0
        %3333 = vmatprep.mubr.bf16.mxu0 0
        %3334 = vmatmul.mubr.bf16.gmra.mrb[0].mxu0 %v3058
        %v3335 = vpop.f32.mrb[0].mxu0
        %v3336 = vadd.f32 %v3175, %v3335
        %v3337 = vpop.f32.mrb[0].mxu0
        %v3338 = vpop.f32.mrb[0].mxu0
        %v3339 = vadd.f32 %v3178, %v3338
        %v3340 = vpop.f32.mrb[0].mxu0
        %3341 = vmatprep.mubr.bf16.mxu0 0
        %3342 = vmatmul.mubr.bf16.gmra.mrb[0].mxu0 %v3061
        %v3343 = vpop.f32.mrb[0].mxu0
        %v3344 = vadd.f32 %v3183, %v3343
        %v3345 = vpop.f32.mrb[0].mxu0
        %v3346 = vpop.f32.mrb[0].mxu0
        %v3347 = vadd.f32 %v3186, %v3346
        %v3348 = vpop.f32.mrb[0].mxu0
        %3349 = vmatprep.mubr.bf16.mxu0 0
        %3350 = vmatmul.mubr.bf16.gmra.mrb[0].mxu0 %v3064
        %v3351 = vpop.f32.mrb[0].mxu0
        %v3352 = vadd.f32 %v3191, %v3351
        %v3353 = vpop.f32.mrb[0].mxu0
        %v3354 = vpop.f32.mrb[0].mxu0
        %v3355 = vadd.f32 %v3194, %v3354
        %v3356 = vpop.f32.mrb[0].mxu0
        %3357 = vmatprep.mubr.bf16.mxu0 0
        %3358 = vmatmul.mubr.bf16.gmra.mrb[0].mxu0 %v3067
        %v3359 = vpop.f32.mrb[0].mxu0
        %v3360 = vadd.f32 %v3199, %v3359
        %v3361 = vpop.f32.mrb[0].mxu0
        %v3362 = vpop.f32.mrb[0].mxu0
        %v3363 = vadd.f32 %v3202, %v3362
        %v3364 = vpop.f32.mrb[0].mxu0
        %3365 = vmatprep.mubr.bf16.mxu0 0
        %3366 = vmatmul.mubr.bf16.gmra.mrb[0].mxu0 %v3070
        %v3367 = vpop.f32.mrb[0].mxu0
        %v3368 = vadd.f32 %v3207, %v3367
        %v3369 = vpop.f32.mrb[0].mxu0
        %v3370 = vpop.f32.mrb[0].mxu0
        %v3371 = vadd.f32 %v3210, %v3370
        %v3372 = vpop.f32.mrb[0].mxu0
        %3373 = vmatprep.mubr.bf16.mxu0 0
        %3374 = vmatmul.mubr.bf16.gmra.mrb[0].mxu0 %v3073
        %v3375 = vpop.f32.mrb[0].mxu0
        %v3376 = vadd.f32 %v3215, %v3375
        %v3377 = vpop.f32.mrb[0].mxu0
        %v3378 = vpop.f32.mrb[0].mxu0
        %v3379 = vadd.f32 %v3218, %v3378
        %v3380 = vpop.f32.mrb[0].mxu0
        %3381 = vmatprep.mubr.bf16.mxu0 0
        %3382 = vmatmul.mubr.bf16.gmra.mrb[0].mxu0 %v3076
        %v3383 = vpop.f32.mrb[0].mxu0
        %v3384 = vadd.f32 %v3223, %v3383
        %v3385 = vpop.f32.mrb[0].mxu0
        %v3386 = vpop.f32.mrb[0].mxu0
        %v3387 = vadd.f32 %v3226, %v3386
        %v3388 = vpop.f32.mrb[0].mxu0
        %3389 = vmatprep.mubr.bf16.mxu0 0
        %3390 = vmatmul.mubr.bf16.gmra.mrb[0].mxu0 %v3079
        %v3391 = vpop.f32.mrb[0].mxu0
        %v3392 = vadd.f32 %v3231, %v3391
        %v3393 = vpop.f32.mrb[0].mxu0
        %v3394 = vpop.f32.mrb[0].mxu0
        %v3395 = vadd.f32 %v3234, %v3394
        %v3396 = vpop.f32.mrb[0].mxu0
        %3397 = vmatprep.mubr.bf16.mxu0 0
        %3398 = vmatmul.mubr.bf16.gmra.mrb[0].mxu0 %v3082
        %v3399 = vpop.f32.mrb[0].mxu0
        %v3400 = vadd.f32 %v3239, %v3399
        %v3401 = vpop.f32.mrb[0].mxu0
        %v3402 = vpop.f32.mrb[0].mxu0
        %v3403 = vadd.f32 %v3242, %v3402
        %v3404 = vpop.f32.mrb[0].mxu0
        %3405 = vdwg.mxu0
        %v3406 = vld [vmem:[%s5] sm:$0x1]
        %v3408 = vlaneseq
        %v3409 = vshrl.u32 %v3408, 7
        %v3410 = vsub.s32 0, %v3409
        %v3411 = vrot.slane %v3406, %v3410
        %v3413 = vmul.f32 %v3280, %v3411
        %v3414 = vmul.f32 %v3283, %v3411
        %v3415 = vmul.f32 %v3288, %v3411
        %v3416 = vmul.f32 %v3291, %v3411
        %v3417 = vmul.f32 %v3296, %v3411
        %v3418 = vmul.f32 %v3299, %v3411
        %v3419 = vmul.f32 %v3304, %v3411
        %v3420 = vmul.f32 %v3307, %v3411
        %v3421 = vmul.f32 %v3312, %v3411
        %v3422 = vmul.f32 %v3315, %v3411
        %v3423 = vmul.f32 %v3320, %v3411
        %v3424 = vmul.f32 %v3323, %v3411
        %v3425 = vmul.f32 %v3328, %v3411
        %v3426 = vmul.f32 %v3331, %v3411
        %v3427 = vmul.f32 %v3336, %v3411
        %v3428 = vmul.f32 %v3339, %v3411
        %v3429 = vmul.f32 %v3344, %v3411
        %v3430 = vmul.f32 %v3347, %v3411
        %v3431 = vmul.f32 %v3352, %v3411
        %v3432 = vmul.f32 %v3355, %v3411
        %v3433 = vmul.f32 %v3360, %v3411
        %v3434 = vmul.f32 %v3363, %v3411
        %v3435 = vmul.f32 %v3368, %v3411
        %v3436 = vmul.f32 %v3371, %v3411
        %v3437 = vmul.f32 %v3376, %v3411
        %v3438 = vmul.f32 %v3379, %v3411
        %v3439 = vmul.f32 %v3384, %v3411
        %v3440 = vmul.f32 %v3387, %v3411
        %v3441 = vmul.f32 %v3392, %v3411
        %v3442 = vmul.f32 %v3395, %v3411
        %v3443 = vmul.f32 %v3400, %v3411
        %v3444 = vmul.f32 %v3403, %v3411
        %v3445 = vld [vmem:[%s6] sm:$0x1]
        %v3447 = vlaneseq
        %v3448 = vshrl.u32 %v3447, 7
        %v3449 = vsub.s32 0, %v3448
        %v3450 = vrot.slane %v3445, %v3449
        %v3452 = vadd.f32 %v3413, %v3450
        %v3453 = vadd.f32 %v3414, %v3450
        %v3454 = vadd.f32 %v3415, %v3450
        %v3455 = vadd.f32 %v3416, %v3450
        %v3456 = vadd.f32 %v3417, %v3450
        %v3457 = vadd.f32 %v3418, %v3450
        %v3458 = vadd.f32 %v3419, %v3450
        %v3459 = vadd.f32 %v3420, %v3450
        %v3460 = vadd.f32 %v3421, %v3450
        %v3461 = vadd.f32 %v3422, %v3450
        %v3462 = vadd.f32 %v3423, %v3450
        %v3463 = vadd.f32 %v3424, %v3450
        %v3464 = vadd.f32 %v3425, %v3450
        %v3465 = vadd.f32 %v3426, %v3450
        %v3466 = vadd.f32 %v3427, %v3450
        %v3467 = vadd.f32 %v3428, %v3450
        %v3468 = vadd.f32 %v3429, %v3450
        %v3469 = vadd.f32 %v3430, %v3450
        %v3470 = vadd.f32 %v3431, %v3450
        %v3471 = vadd.f32 %v3432, %v3450
        %v3472 = vadd.f32 %v3433, %v3450
        %v3473 = vadd.f32 %v3434, %v3450
        %v3474 = vadd.f32 %v3435, %v3450
        %v3475 = vadd.f32 %v3436, %v3450
        %v3476 = vadd.f32 %v3437, %v3450
        %v3477 = vadd.f32 %v3438, %v3450
        %v3478 = vadd.f32 %v3439, %v3450
        %v3479 = vadd.f32 %v3440, %v3450
        %v3480 = vadd.f32 %v3441, %v3450
        %v3481 = vadd.f32 %v3442, %v3450
        %v3482 = vadd.f32 %v3443, %v3450
        %v3483 = vadd.f32 %v3444, %v3450
        %v3484 = vmax.f32 %v3452, 0.0
        %v3485 = vmax.f32 %v3453, 0.0
        %v3486 = vmax.f32 %v3454, 0.0
        %v3487 = vmax.f32 %v3455, 0.0
        %v3488 = vmax.f32 %v3456, 0.0
        %v3489 = vmax.f32 %v3457, 0.0
        %v3490 = vmax.f32 %v3458, 0.0
        %v3491 = vmax.f32 %v3459, 0.0
        %v3492 = vmax.f32 %v3460, 0.0
        %v3493 = vmax.f32 %v3461, 0.0
        %v3494 = vmax.f32 %v3462, 0.0
        %v3495 = vmax.f32 %v3463, 0.0
        %v3496 = vmax.f32 %v3464, 0.0
        %v3497 = vmax.f32 %v3465, 0.0
        %v3498 = vmax.f32 %v3466, 0.0
        %v3499 = vmax.f32 %v3467, 0.0
        %v3500 = vmax.f32 %v3468, 0.0
        %v3501 = vmax.f32 %v3469, 0.0
        %v3502 = vmax.f32 %v3470, 0.0
        %v3503 = vmax.f32 %v3471, 0.0
        %v3504 = vmax.f32 %v3472, 0.0
        %v3505 = vmax.f32 %v3473, 0.0
        %v3506 = vmax.f32 %v3474, 0.0
        %v3507 = vmax.f32 %v3475, 0.0
        %v3508 = vmax.f32 %v3476, 0.0
        %v3509 = vmax.f32 %v3477, 0.0
        %v3510 = vmax.f32 %v3478, 0.0
        %v3511 = vmax.f32 %v3479, 0.0
        %v3512 = vmax.f32 %v3480, 0.0
        %v3513 = vmax.f32 %v3481, 0.0
        %v3514 = vmax.f32 %v3482, 0.0
        %v3515 = vmax.f32 %v3483, 0.0
        %v3516 = vpack.c.bf16 %v3485, %v3484
        %v3517 = vpack.c.bf16 %v3487, %v3486
        %v3518 = vpack.c.bf16 %v3489, %v3488
        %v3519 = vpack.c.bf16 %v3491, %v3490
        %v3520 = vpack.c.bf16 %v3493, %v3492
        %v3521 = vpack.c.bf16 %v3495, %v3494
        %v3522 = vpack.c.bf16 %v3497, %v3496
        %v3523 = vpack.c.bf16 %v3499, %v3498
        %v3524 = vpack.c.bf16 %v3501, %v3500
        %v3525 = vpack.c.bf16 %v3503, %v3502
        %v3526 = vpack.c.bf16 %v3505, %v3504
        %v3527 = vpack.c.bf16 %v3507, %v3506
        %v3528 = vpack.c.bf16 %v3509, %v3508
        %v3529 = vpack.c.bf16 %v3511, %v3510
        %v3530 = vpack.c.bf16 %v3513, %v3512
        %v3531 = vpack.c.bf16 %v3515, %v3514
        %v3532 = vld [vmem:[%s330] sm:$0xf]
        %v3533 = vld [vmem:[%s330 + $0x4] sm:$0xf]
        %v3534 = vld [vmem:[%s330 + $0x8] sm:$0xf]
        %v3535 = vld [vmem:[%s330 + $0xc] sm:$0xf]
        %v3536 = vld [vmem:[%s330 + $0x10] sm:$0xf]
        %v3537 = vld [vmem:[%s330 + $0x14] sm:$0xf]
        %v3538 = vld [vmem:[%s330 + $0x18] sm:$0xf]
        %v3539 = vld [vmem:[%s330 + $0x1c] sm:$0xf]
        %v3540 = vld [vmem:[%s330 + $0x20] sm:$0xf]
        %v3541 = vld [vmem:[%s330 + $0x24] sm:$0xf]
        %v3542 = vld [vmem:[%s330 + $0x28] sm:$0xf]
        %v3543 = vld [vmem:[%s330 + $0x2c] sm:$0xf]
        %v3544 = vld [vmem:[%s330 + $0x30] sm:$0xf]
        %v3545 = vld [vmem:[%s330 + $0x34] sm:$0xf]
        %v3546 = vld [vmem:[%s330 + $0x38] sm:$0xf]
        %v3547 = vld [vmem:[%s330 + $0x3c] sm:$0xf]
        %v3548 = vld [vmem:[%s330 + $0x40] sm:$0xf]
        %v3549 = vld [vmem:[%s330 + $0x44] sm:$0xf]
        %v3550 = vld [vmem:[%s330 + $0x48] sm:$0xf]
        %v3551 = vld [vmem:[%s330 + $0x4c] sm:$0xf]
        %v3552 = vld [vmem:[%s330 + $0x50] sm:$0xf]
        %v3553 = vld [vmem:[%s330 + $0x54] sm:$0xf]
        %v3554 = vld [vmem:[%s330 + $0x58] sm:$0xf]
        %v3555 = vld [vmem:[%s330 + $0x5c] sm:$0xf]
        %v3556 = vld [vmem:[%s330 + $0x60] sm:$0xf]
        %v3557 = vld [vmem:[%s330 + $0x64] sm:$0xf]
        %v3558 = vld [vmem:[%s330 + $0x68] sm:$0xf]
        %v3559 = vld [vmem:[%s330 + $0x6c] sm:$0xf]
        %v3560 = vld [vmem:[%s330 + $0x70] sm:$0xf]
        %v3561 = vld [vmem:[%s330 + $0x74] sm:$0xf]
        %v3562 = vld [vmem:[%s330 + $0x78] sm:$0xf]
        %v3563 = vld [vmem:[%s330 + $0x7c] sm:$0xf]
        %3564 = vst.msk [vmem:[#allocation4] sm:$0xff] %vm332, %v3516
        %3565 = vst.msk [vmem:[#allocation4 + $0x8] sm:$0xff] %vm332, %v3517
        %3566 = vst.msk [vmem:[#allocation4 + $0x10] sm:$0xff] %vm332, %v3518
        %3567 = vst.msk [vmem:[#allocation4 + $0x18] sm:$0xff] %vm332, %v3519
        %3568 = vst.msk [vmem:[#allocation4 + $0x20] sm:$0xff] %vm332, %v3520
        %3569 = vst.msk [vmem:[#allocation4 + $0x28] sm:$0xff] %vm332, %v3521
        %3570 = vst.msk [vmem:[#allocation4 + $0x30] sm:$0xff] %vm332, %v3522
        %3571 = vst.msk [vmem:[#allocation4 + $0x38] sm:$0xff] %vm332, %v3523
        %3572 = vst.msk [vmem:[#allocation4 + $0x40] sm:$0xff] %vm332, %v3524
        %3573 = vst.msk [vmem:[#allocation4 + $0x48] sm:$0xff] %vm332, %v3525
        %3574 = vst.msk [vmem:[#allocation4 + $0x50] sm:$0xff] %vm332, %v3526
        %3575 = vst.msk [vmem:[#allocation4 + $0x58] sm:$0xff] %vm332, %v3527
        %3576 = vst.msk [vmem:[#allocation4 + $0x60] sm:$0xff] %vm332, %v3528
        %3577 = vst.msk [vmem:[#allocation4 + $0x68] sm:$0xff] %vm332, %v3529
        %3578 = vst.msk [vmem:[#allocation4 + $0x70] sm:$0xff] %vm332, %v3530
        %3579 = vst.msk [vmem:[#allocation4 + $0x78] sm:$0xff] %vm332, %v3531
        %v3612 = vunpack.c.l.b16 %v3532
        %v3613 = vunpack.c.l.b16 %v3533
        %v3614 = vunpack.c.l.b16 %v3534
        %v3615 = vunpack.c.l.b16 %v3535
        %v3616 = vunpack.c.l.b16 %v3536
        %v3617 = vunpack.c.l.b16 %v3537
        %v3618 = vunpack.c.l.b16 %v3538
        %v3619 = vunpack.c.l.b16 %v3539
        %v3620 = vunpack.c.l.b16 %v3540
        %v3621 = vunpack.c.l.b16 %v3541
        %v3622 = vunpack.c.l.b16 %v3542
        %v3623 = vunpack.c.l.b16 %v3543
        %v3624 = vunpack.c.l.b16 %v3544
        %v3625 = vunpack.c.l.b16 %v3545
        %v3626 = vunpack.c.l.b16 %v3546
        %v3627 = vunpack.c.l.b16 %v3547
        %v3628 = vunpack.c.l.b16 %v3548
        %v3629 = vunpack.c.l.b16 %v3549
        %v3630 = vunpack.c.l.b16 %v3550
        %v3631 = vunpack.c.l.b16 %v3551
        %v3632 = vunpack.c.l.b16 %v3552
        %v3633 = vunpack.c.l.b16 %v3553
        %v3634 = vunpack.c.l.b16 %v3554
        %v3635 = vunpack.c.l.b16 %v3555
        %v3636 = vunpack.c.l.b16 %v3556
        %v3637 = vunpack.c.l.b16 %v3557
        %v3638 = vunpack.c.l.b16 %v3558
        %v3639 = vunpack.c.l.b16 %v3559
        %v3640 = vunpack.c.l.b16 %v3560
        %v3641 = vunpack.c.l.b16 %v3561
        %v3642 = vunpack.c.l.b16 %v3562
        %v3643 = vunpack.c.l.b16 %v3563
        %v3644 = vpack.c.b16 %v3613, %v3612
        %v3645 = vpack.c.b16 %v3615, %v3614
        %v3646 = vpack.c.b16 %v3617, %v3616
        %v3647 = vpack.c.b16 %v3619, %v3618
        %v3648 = vpack.c.b16 %v3621, %v3620
        %v3649 = vpack.c.b16 %v3623, %v3622
        %v3650 = vpack.c.b16 %v3625, %v3624
        %v3651 = vpack.c.b16 %v3627, %v3626
        %v3652 = vpack.c.b16 %v3629, %v3628
        %v3653 = vpack.c.b16 %v3631, %v3630
        %v3654 = vpack.c.b16 %v3633, %v3632
        %v3655 = vpack.c.b16 %v3635, %v3634
        %v3656 = vpack.c.b16 %v3637, %v3636
        %v3657 = vpack.c.b16 %v3639, %v3638
        %v3658 = vpack.c.b16 %v3641, %v3640
        %v3659 = vpack.c.b16 %v3643, %v3642
        %3660 = vrot.lane.b32.xlu0 %v3644, 32
        %v3661 = vpop.permute.xlu0 %3660
        %3662 = vrot.lane.b32.xlu0 %v3645, 32
        %v3663 = vpop.permute.xlu0 %3662
        %3664 = vrot.lane.b32.xlu0 %v3646, 32
        %v3665 = vpop.permute.xlu0 %3664
        %3666 = vrot.lane.b32.xlu0 %v3647, 32
        %v3667 = vpop.permute.xlu0 %3666
        %3668 = vrot.lane.b32.xlu0 %v3648, 32
        %v3669 = vpop.permute.xlu0 %3668
        %3670 = vrot.lane.b32.xlu0 %v3649, 32
        %v3671 = vpop.permute.xlu0 %3670
        %3672 = vrot.lane.b32.xlu0 %v3650, 32
        %v3673 = vpop.permute.xlu0 %3672
        %3674 = vrot.lane.b32.xlu0 %v3651, 32
        %v3675 = vpop.permute.xlu0 %3674
        %3676 = vrot.lane.b32.xlu0 %v3652, 32
        %v3677 = vpop.permute.xlu0 %3676
        %3678 = vrot.lane.b32.xlu0 %v3653, 32
        %v3679 = vpop.permute.xlu0 %3678
        %3680 = vrot.lane.b32.xlu0 %v3654, 32
        %v3681 = vpop.permute.xlu0 %3680
        %3682 = vrot.lane.b32.xlu0 %v3655, 32
        %v3683 = vpop.permute.xlu0 %3682
        %3684 = vrot.lane.b32.xlu0 %v3656, 32
        %v3685 = vpop.permute.xlu0 %3684
        %3686 = vrot.lane.b32.xlu0 %v3657, 32
        %v3687 = vpop.permute.xlu0 %3686
        %3688 = vrot.lane.b32.xlu0 %v3658, 32
        %v3689 = vpop.permute.xlu0 %3688
        %3690 = vrot.lane.b32.xlu0 %v3659, 32
        %v3691 = vpop.permute.xlu0 %3690
        %vm3708 = vcmask 785664
        %3709 = vst.msk [vmem:[#allocation4] sm:$0xff] %vm3708, %v3661
        %3710 = vst.msk [vmem:[#allocation4 + $0x8] sm:$0xff] %vm3708, %v3663
        %3711 = vst.msk [vmem:[#allocation4 + $0x10] sm:$0xff] %vm3708, %v3665
        %3712 = vst.msk [vmem:[#allocation4 + $0x18] sm:$0xff] %vm3708, %v3667
        %3713 = vst.msk [vmem:[#allocation4 + $0x20] sm:$0xff] %vm3708, %v3669
        %3714 = vst.msk [vmem:[#allocation4 + $0x28] sm:$0xff] %vm3708, %v3671
        %3715 = vst.msk [vmem:[#allocation4 + $0x30] sm:$0xff] %vm3708, %v3673
        %3716 = vst.msk [vmem:[#allocation4 + $0x38] sm:$0xff] %vm3708, %v3675
        %3717 = vst.msk [vmem:[#allocation4 + $0x40] sm:$0xff] %vm3708, %v3677
        %3718 = vst.msk [vmem:[#allocation4 + $0x48] sm:$0xff] %vm3708, %v3679
        %3719 = vst.msk [vmem:[#allocation4 + $0x50] sm:$0xff] %vm3708, %v3681
        %3720 = vst.msk [vmem:[#allocation4 + $0x58] sm:$0xff] %vm3708, %v3683
        %3721 = vst.msk [vmem:[#allocation4 + $0x60] sm:$0xff] %vm3708, %v3685
        %3722 = vst.msk [vmem:[#allocation4 + $0x68] sm:$0xff] %vm3708, %v3687
        %3723 = vst.msk [vmem:[#allocation4 + $0x70] sm:$0xff] %vm3708, %v3689
        %3724 = vst.msk [vmem:[#allocation4 + $0x78] sm:$0xff] %vm3708, %v3691
        %v3725 = vld [vmem:[#allocation4] sm:$0xff]
        %v3726 = vld [vmem:[#allocation4 + $0x8] sm:$0xff]
        %v3727 = vld [vmem:[#allocation4 + $0x10] sm:$0xff]
        %v3728 = vld [vmem:[#allocation4 + $0x18] sm:$0xff]
        %v3729 = vld [vmem:[#allocation4 + $0x20] sm:$0xff]
        %v3730 = vld [vmem:[#allocation4 + $0x28] sm:$0xff]
        %v3731 = vld [vmem:[#allocation4 + $0x30] sm:$0xff]
        %v3732 = vld [vmem:[#allocation4 + $0x38] sm:$0xff]
        %v3733 = vld [vmem:[#allocation4 + $0x40] sm:$0xff]
        %v3734 = vld [vmem:[#allocation4 + $0x48] sm:$0xff]
        %v3735 = vld [vmem:[#allocation4 + $0x50] sm:$0xff]
        %v3736 = vld [vmem:[#allocation4 + $0x58] sm:$0xff]
        %v3737 = vld [vmem:[#allocation4 + $0x60] sm:$0xff]
        %v3738 = vld [vmem:[#allocation4 + $0x68] sm:$0xff]
        %v3739 = vld [vmem:[#allocation4 + $0x70] sm:$0xff]
        %v3740 = vld [vmem:[#allocation4 + $0x78] sm:$0xff]
        %v3741 = vld [vmem:[%s7] sm:$0xf]
        %v3742 = vld [vmem:[%s7 + $0x4] sm:$0xf]
        %v3743 = vld [vmem:[%s7 + $0x8] sm:$0xf]
        %v3744 = vld [vmem:[%s7 + $0xc] sm:$0xf]
        %v3745 = vld [vmem:[%s7 + $0x10] sm:$0xf]
        %v3746 = vld [vmem:[%s7 + $0x14] sm:$0xf]
        %v3747 = vld [vmem:[%s7 + $0x18] sm:$0xf]
        %v3748 = vld [vmem:[%s7 + $0x1c] sm:$0xf]
        %v3749 = vld [vmem:[%s7 + $0x20] sm:$0xf]
        %v3750 = vld [vmem:[%s7 + $0x24] sm:$0xf]
        %v3751 = vld [vmem:[%s7 + $0x28] sm:$0xf]
        %v3752 = vld [vmem:[%s7 + $0x2c] sm:$0xf]
        %v3753 = vld [vmem:[%s8] sm:$0x1]
        %v3755 = vlaneseq
        %v3756 = vshrl.u32 %v3755, 7
        %v3757 = vsub.s32 0, %v3756
        %v3758 = vrot.slane %v3753, %v3757
        %v3772 = vunpack.c.l.b16 %v3741
        %v3773 = vunpack.c.l.b16 %v3742
        %v3774 = vunpack.c.l.b16 %v3743
        %v3775 = vunpack.c.l.b16 %v3744
        %v3776 = vunpack.c.l.b16 %v3745
        %v3777 = vunpack.c.l.b16 %v3746
        %v3778 = vunpack.c.l.b16 %v3747
        %v3779 = vunpack.c.l.b16 %v3748
        %v3780 = vunpack.c.l.b16 %v3749
        %v3781 = vunpack.c.l.b16 %v3750
        %v3782 = vunpack.c.l.b16 %v3751
        %v3783 = vunpack.c.l.b16 %v3752
        %v3784 = vpack.c.b16 %v3773, %v3772
        %v3785 = vpack.c.b16 %v3775, %v3774
        %v3786 = vpack.c.b16 %v3777, %v3776
        %v3787 = vpack.c.b16 %v3779, %v3778
        %v3788 = vpack.c.b16 %v3781, %v3780
        %v3789 = vpack.c.b16 %v3783, %v3782
        %vm3796 = vcmask 785408
        %v3798 = vsel %vm3796, %v3725, 0
        %v3801 = vsel %vm3796, %v3726, 0
        %v3804 = vsel %vm3796, %v3727, 0
        %v3807 = vsel %vm3796, %v3728, 0
        %v3810 = vsel %vm3796, %v3729, 0
        %v3813 = vsel %vm3796, %v3730, 0
        %v3816 = vsel %vm3796, %v3731, 0
        %v3819 = vsel %vm3796, %v3732, 0
        %v3822 = vsel %vm3796, %v3733, 0
        %v3825 = vsel %vm3796, %v3734, 0
        %v3828 = vsel %vm3796, %v3735, 0
        %v3831 = vsel %vm3796, %v3736, 0
        %v3834 = vsel %vm3796, %v3737, 0
        %v3837 = vsel %vm3796, %v3738, 0
        %v3840 = vsel %vm3796, %v3739, 0
        %v3843 = vsel %vm3796, %v3740, 0
        %3845 = vmatprep.subr.bf16.mxu0 0
        %3846 = vmatpush1.bf16.msra.mxu0 %v3784
        %3847 = vmatprep.subr.bf16.mxu0 0
        %3848 = vmatpush1.bf16.msra.mxu0 %v3785
        %3849 = vmatprep.subr.bf16.mxu0 0
        %3850 = vmatpush1.bf16.msra.mxu0 %v3786
        %3851 = vmatprep.subr.bf16.mxu0 0
        %3852 = vmatpush1.bf16.msra.mxu0 %v3787
        %3853 = vmatprep.subr.bf16.mxu0 0
        %3854 = vmatpush1.bf16.msra.mxu0 %v3788
        %3855 = vmatprep.subr.bf16.mxu0 0
        %3856 = vmatpush1.bf16.msra.mxu0 %v3789
        %3857 = vmatprep.subr.bf16.mxu0 0
        %3858 = vmatpush1.bf16.msra.mxu0 0
        %3859 = vmatprep.subr.bf16.mxu0 0
        %3860 = vmatpush1.bf16.msra.mxu0 0
        %3861 = vmatprep.subr.bf16.mxu0 0
        %3862 = vmatpush1.bf16.msra.mxu0 0
        %3863 = vmatprep.subr.bf16.mxu0 0
        %3864 = vmatpush1.bf16.msra.mxu0 0
        %3865 = vmatprep.subr.bf16.mxu0 0
        %3866 = vmatpush1.bf16.msra.mxu0 0
        %3867 = vmatprep.subr.bf16.mxu0 0
        %3868 = vmatpush1.bf16.msra.mxu0 0
        %3869 = vmatprep.subr.bf16.mxu0 0
        %3870 = vmatpush1.bf16.msra.mxu0 0
        %3871 = vmatprep.subr.bf16.mxu0 0
        %3872 = vmatpush1.bf16.msra.mxu0 0
        %3873 = vmatprep.subr.bf16.mxu0 0
        %3874 = vmatpush1.bf16.msra.mxu0 0
        %3875 = vmatprep.subr.bf16.mxu0 0
        %3876 = vmatpush1.bf16.msra.mxu0 0
        %3877 = vmatprep.mubr.bf16.mxu0 0
        %3878 = vmatmul.mubr.bf16.gmra.mrb[0].mxu0 %v3798
        %v3879 = vpop.f32.mrb[0].mxu0
        %v3880 = vadd.f32 %v3758, %v3879
        %v3881 = vpop.f32.mrb[0].mxu0
        %v3882 = vpop.f32.mrb[0].mxu0
        %v3883 = vadd.f32 %v3758, %v3882
        %v3884 = vpop.f32.mrb[0].mxu0
        %3885 = vmatprep.mubr.bf16.mxu0 0
        %3886 = vmatmul.mubr.bf16.gmra.mrb[0].mxu0 %v3801
        %v3887 = vpop.f32.mrb[0].mxu0
        %v3888 = vadd.f32 %v3758, %v3887
        %v3889 = vpop.f32.mrb[0].mxu0
        %v3890 = vpop.f32.mrb[0].mxu0
        %v3891 = vadd.f32 %v3758, %v3890
        %v3892 = vpop.f32.mrb[0].mxu0
        %3893 = vmatprep.mubr.bf16.mxu0 0
        %3894 = vmatmul.mubr.bf16.gmra.mrb[0].mxu0 %v3804
        %v3895 = vpop.f32.mrb[0].mxu0
        %v3896 = vadd.f32 %v3758, %v3895
        %v3897 = vpop.f32.mrb[0].mxu0
        %v3898 = vpop.f32.mrb[0].mxu0
        %v3899 = vadd.f32 %v3758, %v3898
        %v3900 = vpop.f32.mrb[0].mxu0
        %3901 = vmatprep.mubr.bf16.mxu0 0
        %3902 = vmatmul.mubr.bf16.gmra.mrb[0].mxu0 %v3807
        %v3903 = vpop.f32.mrb[0].mxu0
        %v3904 = vadd.f32 %v3758, %v3903
        %v3905 = vpop.f32.mrb[0].mxu0
        %v3906 = vpop.f32.mrb[0].mxu0
        %v3907 = vadd.f32 %v3758, %v3906
        %v3908 = vpop.f32.mrb[0].mxu0
        %3909 = vmatprep.mubr.bf16.mxu0 0
        %3910 = vmatmul.mubr.bf16.gmra.mrb[0].mxu0 %v3810
        %v3911 = vpop.f32.mrb[0].mxu0
        %v3912 = vadd.f32 %v3758, %v3911
        %v3913 = vpop.f32.mrb[0].mxu0
        %v3914 = vpop.f32.mrb[0].mxu0
        %v3915 = vadd.f32 %v3758, %v3914
        %v3916 = vpop.f32.mrb[0].mxu0
        %3917 = vmatprep.mubr.bf16.mxu0 0
        %3918 = vmatmul.mubr.bf16.gmra.mrb[0].mxu0 %v3813
        %v3919 = vpop.f32.mrb[0].mxu0
        %v3920 = vadd.f32 %v3758, %v3919
        %v3921 = vpop.f32.mrb[0].mxu0
        %v3922 = vpop.f32.mrb[0].mxu0
        %v3923 = vadd.f32 %v3758, %v3922
        %v3924 = vpop.f32.mrb[0].mxu0
        %3925 = vmatprep.mubr.bf16.mxu0 0
        %3926 = vmatmul.mubr.bf16.gmra.mrb[0].mxu0 %v3816
        %v3927 = vpop.f32.mrb[0].mxu0
        %v3928 = vadd.f32 %v3758, %v3927
        %v3929 = vpop.f32.mrb[0].mxu0
        %v3930 = vpop.f32.mrb[0].mxu0
        %v3931 = vadd.f32 %v3758, %v3930
        %v3932 = vpop.f32.mrb[0].mxu0
        %3933 = vmatprep.mubr.bf16.mxu0 0
        %3934 = vmatmul.mubr.bf16.gmra.mrb[0].mxu0 %v3819
        %v3935 = vpop.f32.mrb[0].mxu0
        %v3936 = vadd.f32 %v3758, %v3935
        %v3937 = vpop.f32.mrb[0].mxu0
        %v3938 = vpop.f32.mrb[0].mxu0
        %v3939 = vadd.f32 %v3758, %v3938
        %v3940 = vpop.f32.mrb[0].mxu0
        %3941 = vmatprep.mubr.bf16.mxu0 0
        %3942 = vmatmul.mubr.bf16.gmra.mrb[0].mxu0 %v3822
        %v3943 = vpop.f32.mrb[0].mxu0
        %v3944 = vadd.f32 %v3758, %v3943
        %v3945 = vpop.f32.mrb[0].mxu0
        %v3946 = vpop.f32.mrb[0].mxu0
        %v3947 = vadd.f32 %v3758, %v3946
        %v3948 = vpop.f32.mrb[0].mxu0
        %3949 = vmatprep.mubr.bf16.mxu0 0
        %3950 = vmatmul.mubr.bf16.gmra.mrb[0].mxu0 %v3825
        %v3951 = vpop.f32.mrb[0].mxu0
        %v3952 = vadd.f32 %v3758, %v3951
        %v3953 = vpop.f32.mrb[0].mxu0
        %v3954 = vpop.f32.mrb[0].mxu0
        %v3955 = vadd.f32 %v3758, %v3954
        %v3956 = vpop.f32.mrb[0].mxu0
        %3957 = vmatprep.mubr.bf16.mxu0 0
        %3958 = vmatmul.mubr.bf16.gmra.mrb[0].mxu0 %v3828
        %v3959 = vpop.f32.mrb[0].mxu0
        %v3960 = vadd.f32 %v3758, %v3959
        %v3961 = vpop.f32.mrb[0].mxu0
        %v3962 = vpop.f32.mrb[0].mxu0
        %v3963 = vadd.f32 %v3758, %v3962
        %v3964 = vpop.f32.mrb[0].mxu0
        %3965 = vmatprep.mubr.bf16.mxu0 0
        %3966 = vmatmul.mubr.bf16.gmra.mrb[0].mxu0 %v3831
        %v3967 = vpop.f32.mrb[0].mxu0
        %v3968 = vadd.f32 %v3758, %v3967
        %v3969 = vpop.f32.mrb[0].mxu0
        %v3970 = vpop.f32.mrb[0].mxu0
        %v3971 = vadd.f32 %v3758, %v3970
        %v3972 = vpop.f32.mrb[0].mxu0
        %3973 = vmatprep.mubr.bf16.mxu0 0
        %3974 = vmatmul.mubr.bf16.gmra.mrb[0].mxu0 %v3834
        %v3975 = vpop.f32.mrb[0].mxu0
        %v3976 = vadd.f32 %v3758, %v3975
        %v3977 = vpop.f32.mrb[0].mxu0
        %v3978 = vpop.f32.mrb[0].mxu0
        %v3979 = vadd.f32 %v3758, %v3978
        %v3980 = vpop.f32.mrb[0].mxu0
        %3981 = vmatprep.mubr.bf16.mxu0 0
        %3982 = vmatmul.mubr.bf16.gmra.mrb[0].mxu0 %v3837
        %v3983 = vpop.f32.mrb[0].mxu0
        %v3984 = vadd.f32 %v3758, %v3983
        %v3985 = vpop.f32.mrb[0].mxu0
        %v3986 = vpop.f32.mrb[0].mxu0
        %v3987 = vadd.f32 %v3758, %v3986
        %v3988 = vpop.f32.mrb[0].mxu0
        %3989 = vmatprep.mubr.bf16.mxu0 0
        %3990 = vmatmul.mubr.bf16.gmra.mrb[0].mxu0 %v3840
        %v3991 = vpop.f32.mrb[0].mxu0
        %v3992 = vadd.f32 %v3758, %v3991
        %v3993 = vpop.f32.mrb[0].mxu0
        %v3994 = vpop.f32.mrb[0].mxu0
        %v3995 = vadd.f32 %v3758, %v3994
        %v3996 = vpop.f32.mrb[0].mxu0
        %3997 = vmatprep.mubr.bf16.mxu0 0
        %3998 = vmatmul.mubr.bf16.gmra.mrb[0].mxu0 %v3843
        %v3999 = vpop.f32.mrb[0].mxu0
        %v4000 = vadd.f32 %v3758, %v3999
        %v4001 = vpop.f32.mrb[0].mxu0
        %v4002 = vpop.f32.mrb[0].mxu0
        %v4003 = vadd.f32 %v3758, %v4002
        %v4004 = vpop.f32.mrb[0].mxu0
        %4005 = vdwg.mxu0
        %v4006 = vmax.f32 %v3880, 0.0
        %v4007 = vmax.f32 %v3883, 0.0
        %v4008 = vmax.f32 %v3888, 0.0
        %v4009 = vmax.f32 %v3891, 0.0
        %v4010 = vmax.f32 %v3896, 0.0
        %v4011 = vmax.f32 %v3899, 0.0
        %v4012 = vmax.f32 %v3904, 0.0
        %v4013 = vmax.f32 %v3907, 0.0
        %v4014 = vmax.f32 %v3912, 0.0
        %v4015 = vmax.f32 %v3915, 0.0
        %v4016 = vmax.f32 %v3920, 0.0
        %v4017 = vmax.f32 %v3923, 0.0
        %v4018 = vmax.f32 %v3928, 0.0
        %v4019 = vmax.f32 %v3931, 0.0
        %v4020 = vmax.f32 %v3936, 0.0
        %v4021 = vmax.f32 %v3939, 0.0
        %v4022 = vmax.f32 %v3944, 0.0
        %v4023 = vmax.f32 %v3947, 0.0
        %v4024 = vmax.f32 %v3952, 0.0
        %v4025 = vmax.f32 %v3955, 0.0
        %v4026 = vmax.f32 %v3960, 0.0
        %v4027 = vmax.f32 %v3963, 0.0
        %v4028 = vmax.f32 %v3968, 0.0
        %v4029 = vmax.f32 %v3971, 0.0
        %v4030 = vmax.f32 %v3976, 0.0
        %v4031 = vmax.f32 %v3979, 0.0
        %v4032 = vmax.f32 %v3984, 0.0
        %v4033 = vmax.f32 %v3987, 0.0
        %v4034 = vmax.f32 %v3992, 0.0
        %v4035 = vmax.f32 %v3995, 0.0
        %v4036 = vmax.f32 %v4000, 0.0
        %v4037 = vmax.f32 %v4003, 0.0
        %v4038 = vpack.c.bf16 %v4007, %v4006
        %v4039 = vpack.c.bf16 %v4009, %v4008
        %v4040 = vpack.c.bf16 %v4011, %v4010
        %v4041 = vpack.c.bf16 %v4013, %v4012
        %v4042 = vpack.c.bf16 %v4015, %v4014
        %v4043 = vpack.c.bf16 %v4017, %v4016
        %v4044 = vpack.c.bf16 %v4019, %v4018
        %v4045 = vpack.c.bf16 %v4021, %v4020
        %v4046 = vpack.c.bf16 %v4023, %v4022
        %v4047 = vpack.c.bf16 %v4025, %v4024
        %v4048 = vpack.c.bf16 %v4027, %v4026
        %v4049 = vpack.c.bf16 %v4029, %v4028
        %v4050 = vpack.c.bf16 %v4031, %v4030
        %v4051 = vpack.c.bf16 %v4033, %v4032
        %v4052 = vpack.c.bf16 %v4035, %v4034
        %v4053 = vpack.c.bf16 %v4037, %v4036
        %v4070 = vunpack.c.l.b16 %v4038
        %v4071 = vunpack.c.h.b16 %v4038
        %v4072 = vunpack.c.l.b16 %v4039
        %v4073 = vunpack.c.h.b16 %v4039
        %v4074 = vunpack.c.l.b16 %v4040
        %v4075 = vunpack.c.h.b16 %v4040
        %v4076 = vunpack.c.l.b16 %v4041
        %v4077 = vunpack.c.h.b16 %v4041
        %v4078 = vunpack.c.l.b16 %v4042
        %v4079 = vunpack.c.h.b16 %v4042
        %v4080 = vunpack.c.l.b16 %v4043
        %v4081 = vunpack.c.h.b16 %v4043
        %v4082 = vunpack.c.l.b16 %v4044
        %v4083 = vunpack.c.h.b16 %v4044
        %v4084 = vunpack.c.l.b16 %v4045
        %v4085 = vunpack.c.h.b16 %v4045
        %v4086 = vunpack.c.l.b16 %v4046
        %v4087 = vunpack.c.h.b16 %v4046
        %v4088 = vunpack.c.l.b16 %v4047
        %v4089 = vunpack.c.h.b16 %v4047
        %v4090 = vunpack.c.l.b16 %v4048
        %v4091 = vunpack.c.h.b16 %v4048
        %v4092 = vunpack.c.l.b16 %v4049
        %v4093 = vunpack.c.h.b16 %v4049
        %v4094 = vunpack.c.l.b16 %v4050
        %v4095 = vunpack.c.h.b16 %v4050
        %v4096 = vunpack.c.l.b16 %v4051
        %v4097 = vunpack.c.h.b16 %v4051
        %v4098 = vunpack.c.l.b16 %v4052
        %v4099 = vunpack.c.h.b16 %v4052
        %v4100 = vunpack.c.l.b16 %v4053
        %v4101 = vunpack.c.h.b16 %v4053
        %v4102 = vpack.c.b16 %v4070, %v4070
        %v4103 = vpack.c.b16 %v4071, %v4071
        %v4104 = vpack.c.b16 %v4072, %v4072
        %v4105 = vpack.c.b16 %v4073, %v4073
        %v4106 = vpack.c.b16 %v4074, %v4074
        %v4107 = vpack.c.b16 %v4075, %v4075
        %v4108 = vpack.c.b16 %v4076, %v4076
        %v4109 = vpack.c.b16 %v4077, %v4077
        %v4110 = vpack.c.b16 %v4078, %v4078
        %v4111 = vpack.c.b16 %v4079, %v4079
        %v4112 = vpack.c.b16 %v4080, %v4080
        %v4113 = vpack.c.b16 %v4081, %v4081
        %v4114 = vpack.c.b16 %v4082, %v4082
        %v4115 = vpack.c.b16 %v4083, %v4083
        %v4116 = vpack.c.b16 %v4084, %v4084
        %v4117 = vpack.c.b16 %v4085, %v4085
        %v4118 = vpack.c.b16 %v4086, %v4086
        %v4119 = vpack.c.b16 %v4087, %v4087
        %v4120 = vpack.c.b16 %v4088, %v4088
        %v4121 = vpack.c.b16 %v4089, %v4089
        %v4122 = vpack.c.b16 %v4090, %v4090
        %v4123 = vpack.c.b16 %v4091, %v4091
        %v4124 = vpack.c.b16 %v4092, %v4092
        %v4125 = vpack.c.b16 %v4093, %v4093
        %v4126 = vpack.c.b16 %v4094, %v4094
        %v4127 = vpack.c.b16 %v4095, %v4095
        %v4128 = vpack.c.b16 %v4096, %v4096
        %v4129 = vpack.c.b16 %v4097, %v4097
        %v4130 = vpack.c.b16 %v4098, %v4098
        %v4131 = vpack.c.b16 %v4099, %v4099
        %v4132 = vpack.c.b16 %v4100, %v4100
        %v4133 = vpack.c.b16 %v4101, %v4101
        %4166 = vst [vmem:[%s325] sm:$0xf] %v4102
        %4167 = vst [vmem:[%s325 + $0x4] sm:$0xf] %v4103
        %4168 = vst [vmem:[%s325 + $0x8] sm:$0xf] %v4104
        %4169 = vst [vmem:[%s325 + $0xc] sm:$0xf] %v4105
        %4170 = vst [vmem:[%s325 + $0x10] sm:$0xf] %v4106
        %4171 = vst [vmem:[%s325 + $0x14] sm:$0xf] %v4107
        %4172 = vst [vmem:[%s325 + $0x18] sm:$0xf] %v4108
        %4173 = vst [vmem:[%s325 + $0x1c] sm:$0xf] %v4109
        %4174 = vst [vmem:[%s325 + $0x20] sm:$0xf] %v4110
        %4175 = vst [vmem:[%s325 + $0x24] sm:$0xf] %v4111
        %4176 = vst [vmem:[%s325 + $0x28] sm:$0xf] %v4112
        %4177 = vst [vmem:[%s325 + $0x2c] sm:$0xf] %v4113
        %4178 = vst [vmem:[%s325 + $0x30] sm:$0xf] %v4114
        %4179 = vst [vmem:[%s325 + $0x34] sm:$0xf] %v4115
        %4180 = vst [vmem:[%s325 + $0x38] sm:$0xf] %v4116
        %4181 = vst [vmem:[%s325 + $0x3c] sm:$0xf] %v4117
        %4182 = vst [vmem:[%s325 + $0x40] sm:$0xf] %v4118
        %4183 = vst [vmem:[%s325 + $0x44] sm:$0xf] %v4119
        %4184 = vst [vmem:[%s325 + $0x48] sm:$0xf] %v4120
        %4185 = vst [vmem:[%s325 + $0x4c] sm:$0xf] %v4121
        %4186 = vst [vmem:[%s325 + $0x50] sm:$0xf] %v4122
        %4187 = vst [vmem:[%s325 + $0x54] sm:$0xf] %v4123
        %4188 = vst [vmem:[%s325 + $0x58] sm:$0xf] %v4124
        %4189 = vst [vmem:[%s325 + $0x5c] sm:$0xf] %v4125
        %4190 = vst [vmem:[%s325 + $0x60] sm:$0xf] %v4126
        %4191 = vst [vmem:[%s325 + $0x64] sm:$0xf] %v4127
        %4192 = vst [vmem:[%s325 + $0x68] sm:$0xf] %v4128
        %4193 = vst [vmem:[%s325 + $0x6c] sm:$0xf] %v4129
        %4194 = vst [vmem:[%s325 + $0x70] sm:$0xf] %v4130
        %4195 = vst [vmem:[%s325 + $0x74] sm:$0xf] %v4131
        %4196 = vst [vmem:[%s325 + $0x78] sm:$0xf] %v4132
        %4197 = vst [vmem:[%s325 + $0x7c] sm:$0xf] %v4133
        %s4198 = sand.u32 %s225, 1
        %s4199 = scalar_lea.sflag [#allocation6], %s4198
        %s4200 = sand.u32 %s225, 1
        %s4201 = smul.addr %s4200, 128
        %s4202 = scalar_lea.vmem [#allocation5], %s4201
        // Predicated region
        $region57: #{tpu_custom_call.1} parent=55 // pred_check
          %p4203 = pneg %p235
        $region58: #{tpu_custom_call.1} parent=55 // pred_check_branch
          %4205 = sbr.rel (%p4203) target = $region60
        $region59: #{tpu_custom_call.1} parent=55 // pred_region
          %s4207 = ssub.s32 2048, 2048
          %4208 = vsyncadd %s4199, %s4207
          %s4209 = smul.addr %s23, 32
          %s4210 = smul.addr %s4209, 64
          %s4211 = scalar_lea.hbm %s9, %s4210
          %s4212 = sshll.u32 %s4202, 4
          %s4213 = int_to_ptr.vmem [resolvable:$true] %s4212
          %4218 = dma.vmem_to_hbm [thread:$0]  %s4213, 2048, %s4211, %s4199, 64, 64, 4
        $region60: #{tpu_custom_call.1} parent=55 // pred_fallthru
          _
      $region56: #{tpu_custom_call.1} parent=5 // pred_fallthru
        _
      %p4219 = scmp.le.s32.totalorder 2, %s18
      // Predicated region
      $region61: #{tpu_custom_call.1} parent=5 // pred_check
        %p4220 = pneg %p4219
      $region62: #{tpu_custom_call.1} parent=5 // pred_check_branch
        %4222 = sbr.rel (%p4220) target = $region64
      $region63: #{tpu_custom_call.1} parent=5 // pred_region
        %s4223 = ssub.s32 %s18, 2
        // Predicated region
        $region65: #{tpu_custom_call.1} parent=63 // pred_check
          %p4224 = pneg %p241
        $region66: #{tpu_custom_call.1} parent=63 // pred_check_branch
          %4226 = sbr.rel (%p4224) target = $region68
        $region67: #{tpu_custom_call.1} parent=63 // pred_region
          %s4227 = sand.u32 %s226, 1
          %s4228 = scalar_lea.sflag [#allocation6], %s4227
          %s4229 = sand.u32 %s226, 1
          %s4230 = smul.addr %s4229, 128
          %s4231 = scalar_lea.vmem [#allocation5], %s4230
          %4232 = dma.done %s4228, 2048
        $region68: #{tpu_custom_call.1} parent=63 // pred_fallthru
          _
      $region64: #{tpu_custom_call.1} parent=5 // pred_fallthru
        _
    $region6: #{tpu_custom_call.1} parent=1 // loop_footer
      %s22 = sadd.s32 1, %s18
    $region7: #{tpu_custom_call.1} parent=1 // loop_footer_branch
      %17 = sbr.rel target = $region3
    $region8: #{tpu_custom_call.1} parent=1 // loop_exit
      _
    %4233 = vsyncpa [#allocation6], 1
    %s4234 = scalar_lea.sflag [#allocation6], 1
    %4235 = vsyncpa %s4234, 1

</llo_original>
